<compile_context>
chip_gen: v5e
topology: v5e:2x2
jax: 0.10.0
libtpu: 0.0.40
codegen_flags: <defaults>
</compile_context>

<pallas_src>
import functools

import jax
import jax.numpy as jnp
from jax import lax
from jax.experimental import pallas as pl
from jax.experimental.pallas import tpu as pltpu

K_PARTIAL = 4          # PC-DARTS partial-channel factor (self.k)
NUM_OPS = 5
BN_EPS = 1e-5
SUBLANES = 8           # f32 sublanes per vreg


def _mixed_op_kernel(alpha_ref, x_ref, coords_ref, inv_cnt_ref,
                     sdw1_ref, spw1_ref, sdw2_ref, spw2_ref,
                     ddw_ref, dpw_ref,
                     out_ref, *, N, N_pad, H, W, Cg):
    """part_x = sum_i coeff(w_i) * op_i(xtemp) on a lane-dense (N_pad, H*W*Cg) layout."""
    HW = H * W
    HWC = HW * Cg
    inv_bn_count = 1.0 / float(N * HW)          # true batch size, not padded

    x = x_ref[...]                              # (N_pad, HWC) f32
    h_pos = coords_ref[pl.ds(0, 1), :]          # (1, HWC) int32 h coordinate per lane
    w_pos = coords_ref[pl.ds(1, 1), :]          # (1, HWC) int32 w coordinate per lane

    # ---------- boundary masks for window taps (pre-populated in the OUTER trace so the
    # ---------- pl.when bodies only capture them, never create-and-cache inside a branch) ------
    mask_cache = {}

    def valid_mask(dh, dw):
        key = (dh, dw)
        if key not in mask_cache:
            conds = []
            if dh < 0:
                conds.append(h_pos >= -dh)
            if dh > 0:
                conds.append(h_pos < H - dh)
            if dw < 0:
                conds.append(w_pos >= -dw)
            if dw > 0:
                conds.append(w_pos < W - dw)
            m = conds[0]
            for c in conds[1:]:
                m = m & c
            mask_cache[key] = m
        return mask_cache[key]

    for _dil in (1, 2):
        for _kh in range(3):
            for _kw in range(3):
                if _kh == 1 and _kw == 1:
                    continue
                valid_mask(_dil * (_kh - 1), _dil * (_kw - 1))

    def rolled(a, dh, dw):
        # rolled[n, h, w, c] == a[n, h+dh, w+dw, c] wherever valid_mask(dh, dw) holds
        sh = (-(dh * W + dw) * Cg) % HWC
        return pltpu.roll(a, shift=sh, axis=1)

    def shifted(a, dh, dw, fill):
        if dh == 0 and dw == 0:
            return a
        return jnp.where(valid_mask(dh, dw), rolled(a, dh, dw), fill)

    # ---------- depthwise 3x3 conv (stride 1, padding=dil, dilation=dil) ----------
    def dw_conv3(a, w_ref, dil):
        acc = a * w_ref[pl.ds(4, 1), :]                       # center tap (kh=kw=1)
        for kh in range(3):
            for kw in range(3):
                if kh == 1 and kw == 1:
                    continue
                t = shifted(a, dil * (kh - 1), dil * (kw - 1), 0.0)
                acc = acc + t * w_ref[pl.ds(kh * 3 + kw, 1), :]
        return acc

    # ---------- 1x1 (pointwise) conv as a banded lane map ----------
    def pw_conv(a, map_ref):
        # TODO(synk): for Cg >= 8 use an MXU jnp.dot on an (N*HW, Cg) layout instead.
        out = a * map_ref[pl.ds(Cg - 1, 1), :]                # diagonal band (ci == co)
        for s in range(1, Cg):
            out = out + pltpu.roll(a, shift=s, axis=1) * map_ref[pl.ds(Cg - 1 + s, 1), :]
            out = out + pltpu.roll(a, shift=HWC - s, axis=1) * map_ref[pl.ds(Cg - 1 - s, 1), :]
        return out

    # ---------- BatchNorm2d(affine=False), training-mode batch statistics ----------
    if N_pad != N:
        row_ok = lax.broadcasted_iota(jnp.int32, (N_pad, HWC), 0) < N
    else:
        row_ok = None

    def bn_train(a):
        if row_ok is not None:
            a = jnp.where(row_ok, a, 0.0)                     # padded rows don't pollute stats
        # pair sum(a) and sum(a*a) so one roll-reduce tree serves both rows
        s = jnp.concatenate([jnp.sum(a, axis=0, keepdims=True),
                             jnp.sum(a * a, axis=0, keepdims=True)], axis=0)   # (2, HWC)
        if (HW & (HW - 1)) == 0:                              # power-of-two groups: log-doubling
            sh = Cg
            while sh < HWC:
                s = s + pltpu.roll(s, shift=sh, axis=1)
                sh *= 2
        else:                                                 # general fallback: linear roll-reduce
            base = s
            for j in range(1, HW):
                s = s + pltpu.roll(base, shift=(j * Cg) % HWC, axis=1)
        mean = s[0:1, :] * inv_bn_count
        ex2 = s[1:2, :] * inv_bn_count
        var = jnp.maximum(ex2 - mean * mean, 0.0)             # biased variance (training mode)
        return (a - mean) * lax.rsqrt(var + BN_EPS)

    # ---------- architecture coefficients (reference: include op i iff 0 < w_i <= 1) ----------
    def coeff(i):
        a = alpha_ref[i]
        return jnp.where((a > 0.0) & (a <= 1.0), a, 0.0)

    def active(i):
        a = alpha_ref[i]
        return (a > 0.0) & (a <= 1.0)

    # ---------- fused spatial pass: max_pool_3x3 + avg_pool_3x3 + sep_conv dw-stage-1 ----------
    # The 8 window rolls are shared; ReLU/zero-fill commute with the roll so
    # relu(shifted(x)) == max(where(mask, rolled(x), 0), 0).
    r = jnp.maximum(x, 0.0)                                   # shared by sep_conv and dil_conv
    mx = x
    sm = x
    sep1 = r * sdw1_ref[pl.ds(4, 1), :]                       # sep dw1 center tap
    for kh in range(3):
        for kw in range(3):
            if kh == 1 and kw == 1:
                continue
            dh, dw = kh - 1, kw - 1
            b = rolled(x, dh, dw)
            m = valid_mask(dh, dw)
            bz = jnp.where(m, b, 0.0)
            mx = jnp.maximum(mx, jnp.where(m, b, -jnp.inf))
            sm = sm + bz
            sep1 = sep1 + jnp.maximum(bz, 0.0) * sdw1_ref[pl.ds(kh * 3 + kw, 1), :]

    # ops 0..2: max_pool / avg_pool (count_include_pad=False, host-precomputed divisor) / skip
    out_ref[...] = (coeff(0) * mx
                    + coeff(1) * (sm * inv_cnt_ref[...])
                    + coeff(2) * x)

    # ---------- op 3: sep_conv_3x3 = [ReLU -> dw3x3 -> pw1x1 -> BN] x 2 (first dw fused above) --
    @pl.when(active(3))
    def _():
        z1 = bn_train(pw_conv(sep1, spw1_ref))
        z2 = bn_train(pw_conv(dw_conv3(jnp.maximum(z1, 0.0), sdw2_ref, 1), spw2_ref))
        out_ref[...] = out_ref[...] + coeff(3) * z2

    # ---------- op 4: dil_conv_3x3 = ReLU -> dw3x3(dil=2, pad=2) -> pw1x1 -> BN ----------
    @pl.when(active(4))
    def _():
        zd = bn_train(pw_conv(dw_conv3(r, ddw_ref, 2), dpw_ref))
        out_ref[...] = out_ref[...] + coeff(4) * zd


def _dw_lane_map(w_dw, hw):
    """(3, 3, Cg) depthwise weight -> (9, hw*Cg) lane-tiled map (value depends on lane % Cg)."""
    kh, kw, cg = w_dw.shape
    return jnp.tile(w_dw.reshape(kh * kw, cg), (1, hw))


def _pw_band_map(w_pw, hw):
    """(Cg_in, Cg_out) 1x1 weight -> (2*Cg-1, hw*Cg) banded lane map.

    map[s + Cg - 1, g*Cg + co] = w_pw[co - s, co] if 0 <= co - s < Cg else 0.
    """
    cg = w_pw.shape[0]
    s = jnp.arange(-(cg - 1), cg, dtype=jnp.int32)[:, None]   # (2cg-1, 1) band offset
    co = jnp.arange(cg, dtype=jnp.int32)[None, :]             # (1, cg)   output channel
    ci = co - s
    valid = (ci >= 0) & (ci < cg)
    band = jnp.where(valid,
                     w_pw[jnp.clip(ci, 0, cg - 1), jnp.broadcast_to(co, ci.shape)],
                     0.0)                                     # (2cg-1, cg)
    return jnp.tile(band, (1, hw))                            # (2cg-1, hw*cg)


def _part_x_pallas(x_fold, weights, coords, inv_cnt, maps, n, n_pad, h, w, cg):
    kernel = functools.partial(_mixed_op_kernel, N=n, N_pad=n_pad, H=h, W=w, Cg=cg)
    return pl.pallas_call(
        kernel,
        out_shape=jax.ShapeDtypeStruct((n_pad, h * w * cg), jnp.float32),
        in_specs=[pl.BlockSpec(memory_space=pltpu.MemorySpace.SMEM)]          # alpha weights (5,)
                 + [pl.BlockSpec(memory_space=pltpu.MemorySpace.VMEM)] * 9,
        out_specs=pl.BlockSpec(memory_space=pltpu.MemorySpace.VMEM),
        compiler_params=pltpu.CompilerParams(vmem_limit_bytes=32 * 1024 * 1024),
    )(weights, x_fold, coords, inv_cnt,
      maps["sep_dw1"], maps["sep_pw1"], maps["sep_dw2"], maps["sep_pw2"],
      maps["dil_dw"], maps["dil_pw"])


def channel_shuffle_nchw(x, groups):
    n, c, h, w = x.shape
    cpg = c // groups
    x = x.reshape(n, groups, cpg, h, w)
    x = jnp.transpose(x, (0, 2, 1, 3, 4))
    return x.reshape(n, c, h, w)


@jax.jit
def mixed_op_pcdarts_forward(x_nchw, weights, params):
    """Forward of _MixedOp_PCDarts (stride=1). x_nchw: (N, C, H, W) float32."""
    n, c, h, w = x_nchw.shape
    cg = c // K_PARTIAL
    hw = h * w
    xtemp = x_nchw[:, :cg, :, :]
    xtemp2 = x_nchw[:, cg:, :, :]

    # lane-dense folded layout: channels innermost on the lane axis -> (N_pad, H*W*Cg)
    n_pad = -(-n // SUBLANES) * SUBLANES          # fill all 8 f32 sublanes per vreg
    x_fold = jnp.transpose(xtemp, (0, 2, 3, 1)).reshape(n, hw * cg)
    if n_pad != n:
        x_fold = jnp.pad(x_fold, ((0, n_pad - n), (0, 0)))

    # (h, w) coordinate of every lane, used for boundary masks inside the kernel
    hh = jnp.broadcast_to(jnp.arange(h, dtype=jnp.int32)[:, None, None], (h, w, cg)).reshape(1, -1)
    ww = jnp.broadcast_to(jnp.arange(w, dtype=jnp.int32)[None, :, None], (h, w, cg)).reshape(1, -1)
    coords = jnp.concatenate([hh, ww], axis=0)                          # (2, H*W*Cg) int32

    # avg_pool_3x3 divisor (count_include_pad=False), precomputed on the host
    rv = 3.0 - (jnp.arange(h) == 0).astype(jnp.float32) - (jnp.arange(h) == h - 1).astype(jnp.float32)
    cv = 3.0 - (jnp.arange(w) == 0).astype(jnp.float32) - (jnp.arange(w) == w - 1).astype(jnp.float32)
    cnt = rv[:, None] * cv[None, :]                                     # (h, w)
    inv_cnt = jnp.broadcast_to((1.0 / cnt)[:, :, None], (h, w, cg)).reshape(1, hw * cg)
    inv_cnt = inv_cnt.astype(jnp.float32)

    maps = {
        "sep_dw1": _dw_lane_map(params["sep_dw1"], hw),
        "sep_pw1": _pw_band_map(params["sep_pw1"], hw),
        "sep_dw2": _dw_lane_map(params["sep_dw2"], hw),
        "sep_pw2": _pw_band_map(params["sep_pw2"], hw),
        "dil_dw": _dw_lane_map(params["dil_dw"], hw),
        "dil_pw": _pw_band_map(params["dil_pw"], hw),
    }

    part_fold = _part_x_pallas(x_fold, weights, coords, inv_cnt, maps, n, n_pad, h, w, cg)
    part_x = jnp.transpose(part_fold[:n].reshape(n, h, w, cg), (0, 3, 1, 2))

    # stride == 1 -> part_x spatial matches x, so concat with un-pooled xtemp2
    ans = jnp.concatenate([part_x, xtemp2], axis=1)
    return channel_shuffle_nchw(ans, K_PARTIAL)


def init_params(key, cg):
    ks = jax.random.split(key, 6)
    scale = 0.1
    # depthwise weights stored as (kh, kw, C): w[kh, kw, c] == torch_weight[c, 0, kh, kw]
    # pointwise weights stored as (C_in, C_out): w[ci, co] == torch_weight[co, ci, 0, 0]
    return {
        "sep_dw1": scale * jax.random.normal(ks[0], (3, 3, cg), jnp.float32),
        "sep_pw1": scale * jax.random.normal(ks[1], (cg, cg), jnp.float32),
        "sep_dw2": scale * jax.random.normal(ks[2], (3, 3, cg), jnp.float32),
        "sep_pw2": scale * jax.random.normal(ks[3], (cg, cg), jnp.float32),
        "dil_dw": scale * jax.random.normal(ks[4], (3, 3, cg), jnp.float32),
        "dil_pw": scale * jax.random.normal(ks[5], (cg, cg), jnp.float32),
    }


if __name__ == "__main__":
    key = jax.random.PRNGKey(0)
    k_x, k_w, k_p = jax.random.split(key, 3)

    N, C_in, H, W = 2, 16, 8, 8          # C_in divisible by k=4 -> per-op channels Cg = 4
    x = jax.random.normal(k_x, (N, C_in, H, W), jnp.float32)

    # architecture weights: softmax -> all in (0, 1), so every op participates (scaled)
    weights = jax.nn.softmax(jax.random.normal(k_w, (NUM_OPS,), jnp.float32))

    params = init_params(k_p, C_in // K_PARTIAL)

    out = mixed_op_pcdarts_forward(x, weights, params)
    out = jax.block_until_ready(out)
    assert out.shape == x.shape and out.dtype == jnp.float32
    assert bool(jnp.all(jnp.isfinite(out)))
    print("KERNEL_OK")
</pallas_src>

<mosaic_0001>
module attributes {stable_mosaic.version = 11 : i64} {
  func.func @_mixed_op_kernel(%arg0: memref<5xf32, #tpu.memory_space<smem>>, %arg1: memref<8x256xf32, #tpu.memory_space<vmem>>, %arg2: memref<2x256xi32, #tpu.memory_space<vmem>>, %arg3: memref<1x256xf32, #tpu.memory_space<vmem>>, %arg4: memref<9x256xf32, #tpu.memory_space<vmem>>, %arg5: memref<7x256xf32, #tpu.memory_space<vmem>>, %arg6: memref<9x256xf32, #tpu.memory_space<vmem>>, %arg7: memref<7x256xf32, #tpu.memory_space<vmem>>, %arg8: memref<9x256xf32, #tpu.memory_space<vmem>>, %arg9: memref<7x256xf32, #tpu.memory_space<vmem>>, %arg10: memref<8x256xf32, #tpu.memory_space<vmem>>) attributes {dimension_semantics = [], scalar_prefetch = 0 : i64, scratch_operands = 0 : i64, tpu.core_type = #tpu.core_type<tc>} {
    %c0 = arith.constant 0 : index
    %c0_0 = arith.constant 0 : index
    %0 = vector.load %arg1[%c0, %c0_0] : memref<8x256xf32, #tpu.memory_space<vmem>>, vector<8x256xf32>
    %c0_1 = arith.constant 0 : index
    %c0_2 = arith.constant 0 : index
    %1 = vector.load %arg2[%c0_1, %c0_2] : memref<2x256xi32, #tpu.memory_space<vmem>>, vector<1x256xi32>
    %c1 = arith.constant 1 : index
    %c0_3 = arith.constant 0 : index
    %2 = vector.load %arg2[%c1, %c0_3] : memref<2x256xi32, #tpu.memory_space<vmem>>, vector<1x256xi32>
    %c1_i32 = arith.constant 1 : i32
    %3 = vector.broadcast %c1_i32 : i32 to vector<1x256xi32>
    %4 = arith.cmpi sge, %1, %3 : vector<1x256xi32>
    %c1_i32_4 = arith.constant 1 : i32
    %5 = vector.broadcast %c1_i32_4 : i32 to vector<1x256xi32>
    %6 = arith.cmpi sge, %2, %5 : vector<1x256xi32>
    %7 = arith.andi %4, %6 : vector<1x256xi1>
    %c1_i32_5 = arith.constant 1 : i32
    %8 = vector.broadcast %c1_i32_5 : i32 to vector<1x256xi32>
    %9 = arith.cmpi sge, %1, %8 : vector<1x256xi32>
    %c1_i32_6 = arith.constant 1 : i32
    %10 = vector.broadcast %c1_i32_6 : i32 to vector<1x256xi32>
    %11 = arith.cmpi sge, %1, %10 : vector<1x256xi32>
    %c7_i32 = arith.constant 7 : i32
    %12 = vector.broadcast %c7_i32 : i32 to vector<1x256xi32>
    %13 = arith.cmpi slt, %2, %12 : vector<1x256xi32>
    %14 = arith.andi %11, %13 : vector<1x256xi1>
    %c1_i32_7 = arith.constant 1 : i32
    %15 = vector.broadcast %c1_i32_7 : i32 to vector<1x256xi32>
    %16 = arith.cmpi sge, %2, %15 : vector<1x256xi32>
    %c7_i32_8 = arith.constant 7 : i32
    %17 = vector.broadcast %c7_i32_8 : i32 to vector<1x256xi32>
    %18 = arith.cmpi slt, %2, %17 : vector<1x256xi32>
    %c7_i32_9 = arith.constant 7 : i32
    %19 = vector.broadcast %c7_i32_9 : i32 to vector<1x256xi32>
    %20 = arith.cmpi slt, %1, %19 : vector<1x256xi32>
    %c1_i32_10 = arith.constant 1 : i32
    %21 = vector.broadcast %c1_i32_10 : i32 to vector<1x256xi32>
    %22 = arith.cmpi sge, %2, %21 : vector<1x256xi32>
    %23 = arith.andi %20, %22 : vector<1x256xi1>
    %c7_i32_11 = arith.constant 7 : i32
    %24 = vector.broadcast %c7_i32_11 : i32 to vector<1x256xi32>
    %25 = arith.cmpi slt, %1, %24 : vector<1x256xi32>
    %c7_i32_12 = arith.constant 7 : i32
    %26 = vector.broadcast %c7_i32_12 : i32 to vector<1x256xi32>
    %27 = arith.cmpi slt, %1, %26 : vector<1x256xi32>
    %c7_i32_13 = arith.constant 7 : i32
    %28 = vector.broadcast %c7_i32_13 : i32 to vector<1x256xi32>
    %29 = arith.cmpi slt, %2, %28 : vector<1x256xi32>
    %30 = arith.andi %27, %29 : vector<1x256xi1>
    %c2_i32 = arith.constant 2 : i32
    %31 = vector.broadcast %c2_i32 : i32 to vector<1x256xi32>
    %32 = arith.cmpi sge, %1, %31 : vector<1x256xi32>
    %c2_i32_14 = arith.constant 2 : i32
    %33 = vector.broadcast %c2_i32_14 : i32 to vector<1x256xi32>
    %34 = arith.cmpi sge, %2, %33 : vector<1x256xi32>
    %35 = arith.andi %32, %34 : vector<1x256xi1>
    %c2_i32_15 = arith.constant 2 : i32
    %36 = vector.broadcast %c2_i32_15 : i32 to vector<1x256xi32>
    %37 = arith.cmpi sge, %1, %36 : vector<1x256xi32>
    %c2_i32_16 = arith.constant 2 : i32
    %38 = vector.broadcast %c2_i32_16 : i32 to vector<1x256xi32>
    %39 = arith.cmpi sge, %1, %38 : vector<1x256xi32>
    %c6_i32 = arith.constant 6 : i32
    %40 = vector.broadcast %c6_i32 : i32 to vector<1x256xi32>
    %41 = arith.cmpi slt, %2, %40 : vector<1x256xi32>
    %42 = arith.andi %39, %41 : vector<1x256xi1>
    %c2_i32_17 = arith.constant 2 : i32
    %43 = vector.broadcast %c2_i32_17 : i32 to vector<1x256xi32>
    %44 = arith.cmpi sge, %2, %43 : vector<1x256xi32>
    %c6_i32_18 = arith.constant 6 : i32
    %45 = vector.broadcast %c6_i32_18 : i32 to vector<1x256xi32>
    %46 = arith.cmpi slt, %2, %45 : vector<1x256xi32>
    %c6_i32_19 = arith.constant 6 : i32
    %47 = vector.broadcast %c6_i32_19 : i32 to vector<1x256xi32>
    %48 = arith.cmpi slt, %1, %47 : vector<1x256xi32>
    %c2_i32_20 = arith.constant 2 : i32
    %49 = vector.broadcast %c2_i32_20 : i32 to vector<1x256xi32>
    %50 = arith.cmpi sge, %2, %49 : vector<1x256xi32>
    %51 = arith.andi %48, %50 : vector<1x256xi1>
    %c6_i32_21 = arith.constant 6 : i32
    %52 = vector.broadcast %c6_i32_21 : i32 to vector<1x256xi32>
    %53 = arith.cmpi slt, %1, %52 : vector<1x256xi32>
    %c6_i32_22 = arith.constant 6 : i32
    %54 = vector.broadcast %c6_i32_22 : i32 to vector<1x256xi32>
    %55 = arith.cmpi slt, %1, %54 : vector<1x256xi32>
    %c6_i32_23 = arith.constant 6 : i32
    %56 = vector.broadcast %c6_i32_23 : i32 to vector<1x256xi32>
    %57 = arith.cmpi slt, %2, %56 : vector<1x256xi32>
    %58 = arith.andi %55, %57 : vector<1x256xi1>
    %59 = tpu.iota {dimensions = array<i32: 0>} : vector<8x256xi32>
    %c2_i32_24 = arith.constant 2 : i32
    %60 = vector.broadcast %c2_i32_24 : i32 to vector<8x256xi32>
    %61 = arith.cmpi slt, %59, %60 : vector<8x256xi32>
    %cst = arith.constant 0.000000e+00 : f32
    %62 = vector.broadcast %cst : f32 to vector<8x256xf32>
    %63 = arith.maximumf %0, %62 : vector<8x256xf32>
    %c4 = arith.constant 4 : index
    %c0_25 = arith.constant 0 : index
    %64 = vector.load %arg4[%c4, %c0_25] : memref<9x256xf32, #tpu.memory_space<vmem>>, vector<1x256xf32>
    %65 = vector.broadcast %64 : vector<1x256xf32> to vector<8x256xf32>
    %66 = arith.mulf %63, %65 : vector<8x256xf32>
    %c36_i32 = arith.constant 36 : i32
    %67 = tpu.dynamic_rotate %0 by %c36_i32 dim 1 : vector<8x256xf32>, i32 -> vector<8x256xf32>
    %cst_26 = arith.constant 0.000000e+00 : f32
    %68 = vector.shape_cast %7 : vector<1x256xi1> to vector<1x256xi1>
    %69 = vector.broadcast %68 : vector<1x256xi1> to vector<8x256xi1>
    %70 = vector.broadcast %cst_26 : f32 to vector<8x256xf32>
    %71 = arith.select %69, %67, %70 : vector<8x256xi1>, vector<8x256xf32>
    %cst_27 = arith.constant 0xFF800000 : f32
    %72 = vector.shape_cast %7 : vector<1x256xi1> to vector<1x256xi1>
    %73 = vector.broadcast %72 : vector<1x256xi1> to vector<8x256xi1>
    %74 = vector.broadcast %cst_27 : f32 to vector<8x256xf32>
    %75 = arith.select %73, %67, %74 : vector<8x256xi1>, vector<8x256xf32>
    %76 = arith.maximumf %0, %75 : vector<8x256xf32>
    %77 = arith.addf %0, %71 : vector<8x256xf32>
    %cst_28 = arith.constant 0.000000e+00 : f32
    %78 = vector.broadcast %cst_28 : f32 to vector<8x256xf32>
    %79 = arith.maximumf %71, %78 : vector<8x256xf32>
    %c0_29 = arith.constant 0 : index
    %c0_30 = arith.constant 0 : index
    %80 = vector.load %arg4[%c0_29, %c0_30] : memref<9x256xf32, #tpu.memory_space<vmem>>, vector<1x256xf32>
    %81 = vector.broadcast %80 : vector<1x256xf32> to vector<8x256xf32>
    %82 = arith.mulf %79, %81 : vector<8x256xf32>
    %83 = arith.addf %66, %82 : vector<8x256xf32>
    %c32_i32 = arith.constant 32 : i32
    %84 = tpu.dynamic_rotate %0 by %c32_i32 dim 1 : vector<8x256xf32>, i32 -> vector<8x256xf32>
    %cst_31 = arith.constant 0.000000e+00 : f32
    %85 = vector.shape_cast %9 : vector<1x256xi1> to vector<1x256xi1>
    %86 = vector.broadcast %85 : vector<1x256xi1> to vector<8x256xi1>
    %87 = vector.broadcast %cst_31 : f32 to vector<8x256xf32>
    %88 = arith.select %86, %84, %87 : vector<8x256xi1>, vector<8x256xf32>
    %cst_32 = arith.constant 0xFF800000 : f32
    %89 = vector.shape_cast %9 : vector<1x256xi1> to vector<1x256xi1>
    %90 = vector.broadcast %89 : vector<1x256xi1> to vector<8x256xi1>
    %91 = vector.broadcast %cst_32 : f32 to vector<8x256xf32>
    %92 = arith.select %90, %84, %91 : vector<8x256xi1>, vector<8x256xf32>
    %93 = arith.maximumf %76, %92 : vector<8x256xf32>
    %94 = arith.addf %77, %88 : vector<8x256xf32>
    %cst_33 = arith.constant 0.000000e+00 : f32
    %95 = vector.broadcast %cst_33 : f32 to vector<8x256xf32>
    %96 = arith.maximumf %88, %95 : vector<8x256xf32>
    %c1_34 = arith.constant 1 : index
    %c0_35 = arith.constant 0 : index
    %97 = vector.load %arg4[%c1_34, %c0_35] : memref<9x256xf32, #tpu.memory_space<vmem>>, vector<1x256xf32>
    %98 = vector.broadcast %97 : vector<1x256xf32> to vector<8x256xf32>
    %99 = arith.mulf %96, %98 : vector<8x256xf32>
    %100 = arith.addf %83, %99 : vector<8x256xf32>
    %c28_i32 = arith.constant 28 : i32
    %101 = tpu.dynamic_rotate %0 by %c28_i32 dim 1 : vector<8x256xf32>, i32 -> vector<8x256xf32>
    %cst_36 = arith.constant 0.000000e+00 : f32
    %102 = vector.shape_cast %14 : vector<1x256xi1> to vector<1x256xi1>
    %103 = vector.broadcast %102 : vector<1x256xi1> to vector<8x256xi1>
    %104 = vector.broadcast %cst_36 : f32 to vector<8x256xf32>
    %105 = arith.select %103, %101, %104 : vector<8x256xi1>, vector<8x256xf32>
    %cst_37 = arith.constant 0xFF800000 : f32
    %106 = vector.shape_cast %14 : vector<1x256xi1> to vector<1x256xi1>
    %107 = vector.broadcast %106 : vector<1x256xi1> to vector<8x256xi1>
    %108 = vector.broadcast %cst_37 : f32 to vector<8x256xf32>
    %109 = arith.select %107, %101, %108 : vector<8x256xi1>, vector<8x256xf32>
    %110 = arith.maximumf %93, %109 : vector<8x256xf32>
    %111 = arith.addf %94, %105 : vector<8x256xf32>
    %cst_38 = arith.constant 0.000000e+00 : f32
    %112 = vector.broadcast %cst_38 : f32 to vector<8x256xf32>
    %113 = arith.maximumf %105, %112 : vector<8x256xf32>
    %c2 = arith.constant 2 : index
    %c0_39 = arith.constant 0 : index
    %114 = vector.load %arg4[%c2, %c0_39] : memref<9x256xf32, #tpu.memory_space<vmem>>, vector<1x256xf32>
    %115 = vector.broadcast %114 : vector<1x256xf32> to vector<8x256xf32>
    %116 = arith.mulf %113, %115 : vector<8x256xf32>
    %117 = arith.addf %100, %116 : vector<8x256xf32>
    %c4_i32 = arith.constant 4 : i32
    %118 = tpu.dynamic_rotate %0 by %c4_i32 dim 1 : vector<8x256xf32>, i32 -> vector<8x256xf32>
    %cst_40 = arith.constant 0.000000e+00 : f32
    %119 = vector.shape_cast %16 : vector<1x256xi1> to vector<1x256xi1>
    %120 = vector.broadcast %119 : vector<1x256xi1> to vector<8x256xi1>
    %121 = vector.broadcast %cst_40 : f32 to vector<8x256xf32>
    %122 = arith.select %120, %118, %121 : vector<8x256xi1>, vector<8x256xf32>
    %cst_41 = arith.constant 0xFF800000 : f32
    %123 = vector.shape_cast %16 : vector<1x256xi1> to vector<1x256xi1>
    %124 = vector.broadcast %123 : vector<1x256xi1> to vector<8x256xi1>
    %125 = vector.broadcast %cst_41 : f32 to vector<8x256xf32>
    %126 = arith.select %124, %118, %125 : vector<8x256xi1>, vector<8x256xf32>
    %127 = arith.maximumf %110, %126 : vector<8x256xf32>
    %128 = arith.addf %111, %122 : vector<8x256xf32>
    %cst_42 = arith.constant 0.000000e+00 : f32
    %129 = vector.broadcast %cst_42 : f32 to vector<8x256xf32>
    %130 = arith.maximumf %122, %129 : vector<8x256xf32>
    %c3 = arith.constant 3 : index
    %c0_43 = arith.constant 0 : index
    %131 = vector.load %arg4[%c3, %c0_43] : memref<9x256xf32, #tpu.memory_space<vmem>>, vector<1x256xf32>
    %132 = vector.broadcast %131 : vector<1x256xf32> to vector<8x256xf32>
    %133 = arith.mulf %130, %132 : vector<8x256xf32>
    %134 = arith.addf %117, %133 : vector<8x256xf32>
    %c252_i32 = arith.constant 252 : i32
    %135 = tpu.dynamic_rotate %0 by %c252_i32 dim 1 : vector<8x256xf32>, i32 -> vector<8x256xf32>
    %cst_44 = arith.constant 0.000000e+00 : f32
    %136 = vector.shape_cast %18 : vector<1x256xi1> to vector<1x256xi1>
    %137 = vector.broadcast %136 : vector<1x256xi1> to vector<8x256xi1>
    %138 = vector.broadcast %cst_44 : f32 to vector<8x256xf32>
    %139 = arith.select %137, %135, %138 : vector<8x256xi1>, vector<8x256xf32>
    %cst_45 = arith.constant 0xFF800000 : f32
    %140 = vector.shape_cast %18 : vector<1x256xi1> to vector<1x256xi1>
    %141 = vector.broadcast %140 : vector<1x256xi1> to vector<8x256xi1>
    %142 = vector.broadcast %cst_45 : f32 to vector<8x256xf32>
    %143 = arith.select %141, %135, %142 : vector<8x256xi1>, vector<8x256xf32>
    %144 = arith.maximumf %127, %143 : vector<8x256xf32>
    %145 = arith.addf %128, %139 : vector<8x256xf32>
    %cst_46 = arith.constant 0.000000e+00 : f32
    %146 = vector.broadcast %cst_46 : f32 to vector<8x256xf32>
    %147 = arith.maximumf %139, %146 : vector<8x256xf32>
    %c5 = arith.constant 5 : index
    %c0_47 = arith.constant 0 : index
    %148 = vector.load %arg4[%c5, %c0_47] : memref<9x256xf32, #tpu.memory_space<vmem>>, vector<1x256xf32>
    %149 = vector.broadcast %148 : vector<1x256xf32> to vector<8x256xf32>
    %150 = arith.mulf %147, %149 : vector<8x256xf32>
    %151 = arith.addf %134, %150 : vector<8x256xf32>
    %c228_i32 = arith.constant 228 : i32
    %152 = tpu.dynamic_rotate %0 by %c228_i32 dim 1 : vector<8x256xf32>, i32 -> vector<8x256xf32>
    %cst_48 = arith.constant 0.000000e+00 : f32
    %153 = vector.shape_cast %23 : vector<1x256xi1> to vector<1x256xi1>
    %154 = vector.broadcast %153 : vector<1x256xi1> to vector<8x256xi1>
    %155 = vector.broadcast %cst_48 : f32 to vector<8x256xf32>
    %156 = arith.select %154, %152, %155 : vector<8x256xi1>, vector<8x256xf32>
    %cst_49 = arith.constant 0xFF800000 : f32
    %157 = vector.shape_cast %23 : vector<1x256xi1> to vector<1x256xi1>
    %158 = vector.broadcast %157 : vector<1x256xi1> to vector<8x256xi1>
    %159 = vector.broadcast %cst_49 : f32 to vector<8x256xf32>
    %160 = arith.select %158, %152, %159 : vector<8x256xi1>, vector<8x256xf32>
    %161 = arith.maximumf %144, %160 : vector<8x256xf32>
    %162 = arith.addf %145, %156 : vector<8x256xf32>
    %cst_50 = arith.constant 0.000000e+00 : f32
    %163 = vector.broadcast %cst_50 : f32 to vector<8x256xf32>
    %164 = arith.maximumf %156, %163 : vector<8x256xf32>
    %c6 = arith.constant 6 : index
    %c0_51 = arith.constant 0 : index
    %165 = vector.load %arg4[%c6, %c0_51] : memref<9x256xf32, #tpu.memory_space<vmem>>, vector<1x256xf32>
    %166 = vector.broadcast %165 : vector<1x256xf32> to vector<8x256xf32>
    %167 = arith.mulf %164, %166 : vector<8x256xf32>
    %168 = arith.addf %151, %167 : vector<8x256xf32>
    %c224_i32 = arith.constant 224 : i32
    %169 = tpu.dynamic_rotate %0 by %c224_i32 dim 1 : vector<8x256xf32>, i32 -> vector<8x256xf32>
    %cst_52 = arith.constant 0.000000e+00 : f32
    %170 = vector.shape_cast %25 : vector<1x256xi1> to vector<1x256xi1>
    %171 = vector.broadcast %170 : vector<1x256xi1> to vector<8x256xi1>
    %172 = vector.broadcast %cst_52 : f32 to vector<8x256xf32>
    %173 = arith.select %171, %169, %172 : vector<8x256xi1>, vector<8x256xf32>
    %cst_53 = arith.constant 0xFF800000 : f32
    %174 = vector.shape_cast %25 : vector<1x256xi1> to vector<1x256xi1>
    %175 = vector.broadcast %174 : vector<1x256xi1> to vector<8x256xi1>
    %176 = vector.broadcast %cst_53 : f32 to vector<8x256xf32>
    %177 = arith.select %175, %169, %176 : vector<8x256xi1>, vector<8x256xf32>
    %178 = arith.maximumf %161, %177 : vector<8x256xf32>
    %179 = arith.addf %162, %173 : vector<8x256xf32>
    %cst_54 = arith.constant 0.000000e+00 : f32
    %180 = vector.broadcast %cst_54 : f32 to vector<8x256xf32>
    %181 = arith.maximumf %173, %180 : vector<8x256xf32>
    %c7 = arith.constant 7 : index
    %c0_55 = arith.constant 0 : index
    %182 = vector.load %arg4[%c7, %c0_55] : memref<9x256xf32, #tpu.memory_space<vmem>>, vector<1x256xf32>
    %183 = vector.broadcast %182 : vector<1x256xf32> to vector<8x256xf32>
    %184 = arith.mulf %181, %183 : vector<8x256xf32>
    %185 = arith.addf %168, %184 : vector<8x256xf32>
    %c220_i32 = arith.constant 220 : i32
    %186 = tpu.dynamic_rotate %0 by %c220_i32 dim 1 : vector<8x256xf32>, i32 -> vector<8x256xf32>
    %cst_56 = arith.constant 0.000000e+00 : f32
    %187 = vector.shape_cast %30 : vector<1x256xi1> to vector<1x256xi1>
    %188 = vector.broadcast %187 : vector<1x256xi1> to vector<8x256xi1>
    %189 = vector.broadcast %cst_56 : f32 to vector<8x256xf32>
    %190 = arith.select %188, %186, %189 : vector<8x256xi1>, vector<8x256xf32>
    %cst_57 = arith.constant 0xFF800000 : f32
    %191 = vector.shape_cast %30 : vector<1x256xi1> to vector<1x256xi1>
    %192 = vector.broadcast %191 : vector<1x256xi1> to vector<8x256xi1>
    %193 = vector.broadcast %cst_57 : f32 to vector<8x256xf32>
    %194 = arith.select %192, %186, %193 : vector<8x256xi1>, vector<8x256xf32>
    %195 = arith.maximumf %178, %194 : vector<8x256xf32>
    %196 = arith.addf %179, %190 : vector<8x256xf32>
    %cst_58 = arith.constant 0.000000e+00 : f32
    %197 = vector.broadcast %cst_58 : f32 to vector<8x256xf32>
    %198 = arith.maximumf %190, %197 : vector<8x256xf32>
    %c8 = arith.constant 8 : index
    %c0_59 = arith.constant 0 : index
    %199 = vector.load %arg4[%c8, %c0_59] : memref<9x256xf32, #tpu.memory_space<vmem>>, vector<1x256xf32>
    %200 = vector.broadcast %199 : vector<1x256xf32> to vector<8x256xf32>
    %201 = arith.mulf %198, %200 : vector<8x256xf32>
    %202 = arith.addf %185, %201 : vector<8x256xf32>
    %c0_60 = arith.constant 0 : index
    %203 = memref.load %arg0[%c0_60] : memref<5xf32, #tpu.memory_space<smem>>
    %cst_61 = arith.constant 0.000000e+00 : f32
    %204 = arith.cmpf ogt, %203, %cst_61 : f32
    %cst_62 = arith.constant 1.000000e+00 : f32
    %205 = arith.cmpf ole, %203, %cst_62 : f32
    %206 = arith.andi %204, %205 : i1
    %cst_63 = arith.constant 0.000000e+00 : f32
    %207 = arith.select %206, %203, %cst_63 : f32
    %208 = vector.broadcast %207 : f32 to vector<8x256xf32>
    %209 = arith.mulf %208, %195 : vector<8x256xf32>
    %c1_64 = arith.constant 1 : index
    %210 = memref.load %arg0[%c1_64] : memref<5xf32, #tpu.memory_space<smem>>
    %cst_65 = arith.constant 0.000000e+00 : f32
    %211 = arith.cmpf ogt, %210, %cst_65 : f32
    %cst_66 = arith.constant 1.000000e+00 : f32
    %212 = arith.cmpf ole, %210, %cst_66 : f32
    %213 = arith.andi %211, %212 : i1
    %cst_67 = arith.constant 0.000000e+00 : f32
    %214 = arith.select %213, %210, %cst_67 : f32
    %c0_68 = arith.constant 0 : index
    %c0_69 = arith.constant 0 : index
    %215 = vector.load %arg3[%c0_68, %c0_69] : memref<1x256xf32, #tpu.memory_space<vmem>>, vector<1x256xf32>
    %216 = vector.broadcast %215 : vector<1x256xf32> to vector<8x256xf32>
    %217 = arith.mulf %196, %216 : vector<8x256xf32>
    %218 = vector.broadcast %214 : f32 to vector<8x256xf32>
    %219 = arith.mulf %218, %217 : vector<8x256xf32>
    %220 = arith.addf %209, %219 : vector<8x256xf32>
    %c2_70 = arith.constant 2 : index
    %221 = memref.load %arg0[%c2_70] : memref<5xf32, #tpu.memory_space<smem>>
    %cst_71 = arith.constant 0.000000e+00 : f32
    %222 = arith.cmpf ogt, %221, %cst_71 : f32
    %cst_72 = arith.constant 1.000000e+00 : f32
    %223 = arith.cmpf ole, %221, %cst_72 : f32
    %224 = arith.andi %222, %223 : i1
    %cst_73 = arith.constant 0.000000e+00 : f32
    %225 = arith.select %224, %221, %cst_73 : f32
    %226 = vector.broadcast %225 : f32 to vector<8x256xf32>
    %227 = arith.mulf %226, %0 : vector<8x256xf32>
    %228 = arith.addf %220, %227 : vector<8x256xf32>
    %c0_74 = arith.constant 0 : index
    %c0_75 = arith.constant 0 : index
    %229 = vector.load %arg10[%c0_74, %c0_75] : memref<8x256xf32, #tpu.memory_space<vmem>>, vector<8x256xf32>
    tpu.vector_store %arg10[%c0_74, %c0_75], %228 {strides = array<i32>} : memref<8x256xf32, #tpu.memory_space<vmem>>, vector<8x256xf32>,
    %c3_76 = arith.constant 3 : index
    %230 = memref.load %arg0[%c3_76] : memref<5xf32, #tpu.memory_space<smem>>
    %cst_77 = arith.constant 0.000000e+00 : f32
    %231 = arith.cmpf ogt, %230, %cst_77 : f32
    %cst_78 = arith.constant 1.000000e+00 : f32
    %232 = arith.cmpf ole, %230, %cst_78 : f32
    %233 = arith.andi %231, %232 : i1
    %234 = arith.extui %233 : i1 to i32
    %c0_i32 = arith.constant 0 : i32
    %235 = arith.cmpi ne, %234, %c0_i32 : i32
    scf.if %235 {
      %c3_83 = arith.constant 3 : index
      %c0_84 = arith.constant 0 : index
      %242 = vector.load %arg5[%c3_83, %c0_84] : memref<7x256xf32, #tpu.memory_space<vmem>>, vector<1x256xf32>
      %243 = vector.broadcast %242 : vector<1x256xf32> to vector<8x256xf32>
      %244 = arith.mulf %202, %243 : vector<8x256xf32>
      %c1_i32_85 = arith.constant 1 : i32
      %245 = tpu.dynamic_rotate %202 by %c1_i32_85 dim 1 : vector<8x256xf32>, i32 -> vector<8x256xf32>
      %c4_86 = arith.constant 4 : index
      %c0_87 = arith.constant 0 : index
      %246 = vector.load %arg5[%c4_86, %c0_87] : memref<7x256xf32, #tpu.memory_space<vmem>>, vector<1x256xf32>
      %247 = vector.broadcast %246 : vector<1x256xf32> to vector<8x256xf32>
      %248 = arith.mulf %245, %247 : vector<8x256xf32>
      %249 = arith.addf %244, %248 : vector<8x256xf32>
      %c255_i32 = arith.constant 255 : i32
      %250 = tpu.dynamic_rotate %202 by %c255_i32 dim 1 : vector<8x256xf32>, i32 -> vector<8x256xf32>
      %c2_88 = arith.constant 2 : index
      %c0_89 = arith.constant 0 : index
      %251 = vector.load %arg5[%c2_88, %c0_89] : memref<7x256xf32, #tpu.memory_space<vmem>>, vector<1x256xf32>
      %252 = vector.broadcast %251 : vector<1x256xf32> to vector<8x256xf32>
      %253 = arith.mulf %250, %252 : vector<8x256xf32>
      %254 = arith.addf %249, %253 : vector<8x256xf32>
      %c2_i32_90 = arith.constant 2 : i32
      %255 = tpu.dynamic_rotate %202 by %c2_i32_90 dim 1 : vector<8x256xf32>, i32 -> vector<8x256xf32>
      %c5_91 = arith.constant 5 : index
      %c0_92 = arith.constant 0 : index
      %256 = vector.load %arg5[%c5_91, %c0_92] : memref<7x256xf32, #tpu.memory_space<vmem>>, vector<1x256xf32>
      %257 = vector.broadcast %256 : vector<1x256xf32> to vector<8x256xf32>
      %258 = arith.mulf %255, %257 : vector<8x256xf32>
      %259 = arith.addf %254, %258 : vector<8x256xf32>
      %c254_i32 = arith.constant 254 : i32
      %260 = tpu.dynamic_rotate %202 by %c254_i32 dim 1 : vector<8x256xf32>, i32 -> vector<8x256xf32>
      %c1_93 = arith.constant 1 : index
      %c0_94 = arith.constant 0 : index
      %261 = vector.load %arg5[%c1_93, %c0_94] : memref<7x256xf32, #tpu.memory_space<vmem>>, vector<1x256xf32>
      %262 = vector.broadcast %261 : vector<1x256xf32> to vector<8x256xf32>
      %263 = arith.mulf %260, %262 : vector<8x256xf32>
      %264 = arith.addf %259, %263 : vector<8x256xf32>
      %c3_i32 = arith.constant 3 : i32
      %265 = tpu.dynamic_rotate %202 by %c3_i32 dim 1 : vector<8x256xf32>, i32 -> vector<8x256xf32>
      %c6_95 = arith.constant 6 : index
      %c0_96 = arith.constant 0 : index
      %266 = vector.load %arg5[%c6_95, %c0_96] : memref<7x256xf32, #tpu.memory_space<vmem>>, vector<1x256xf32>
      %267 = vector.broadcast %266 : vector<1x256xf32> to vector<8x256xf32>
      %268 = arith.mulf %265, %267 : vector<8x256xf32>
      %269 = arith.addf %264, %268 : vector<8x256xf32>
      %c253_i32 = arith.constant 253 : i32
      %270 = tpu.dynamic_rotate %202 by %c253_i32 dim 1 : vector<8x256xf32>, i32 -> vector<8x256xf32>
      %c0_97 = arith.constant 0 : index
      %c0_98 = arith.constant 0 : index
      %271 = vector.load %arg5[%c0_97, %c0_98] : memref<7x256xf32, #tpu.memory_space<vmem>>, vector<1x256xf32>
      %272 = vector.broadcast %271 : vector<1x256xf32> to vector<8x256xf32>
      %273 = arith.mulf %270, %272 : vector<8x256xf32>
      %274 = arith.addf %269, %273 : vector<8x256xf32>
      %cst_99 = arith.constant 0.000000e+00 : f32
      %275 = vector.broadcast %cst_99 : f32 to vector<8x256xf32>
      %276 = arith.select %61, %274, %275 : vector<8x256xi1>, vector<8x256xf32>
      %cst_100 = arith.constant dense<0.000000e+00> : vector<256xf32>
      %277 = vector.multi_reduction <add>, %276, %cst_100 [0] : vector<8x256xf32> to vector<256xf32>
      %278 = vector.shape_cast %277 : vector<256xf32> to vector<1x256xf32>
      %279 = arith.mulf %276, %276 : vector<8x256xf32>
      %cst_101 = arith.constant dense<0.000000e+00> : vector<256xf32>
      %280 = vector.multi_reduction <add>, %279, %cst_101 [0] : vector<8x256xf32> to vector<256xf32>
      %281 = vector.shape_cast %280 : vector<256xf32> to vector<1x256xf32>
      %282 = tpu.concatenate %278, %281 in 0 : vector<1x256xf32>, vector<1x256xf32> -> vector<2x256xf32>
      %c4_i32_102 = arith.constant 4 : i32
      %283 = tpu.dynamic_rotate %282 by %c4_i32_102 dim 1 : vector<2x256xf32>, i32 -> vector<2x256xf32>
      %284 = arith.addf %282, %283 : vector<2x256xf32>
      %c8_i32 = arith.constant 8 : i32
      %285 = tpu.dynamic_rotate %284 by %c8_i32 dim 1 : vector<2x256xf32>, i32 -> vector<2x256xf32>
      %286 = arith.addf %284, %285 : vector<2x256xf32>
      %c16_i32 = arith.constant 16 : i32
      %287 = tpu.dynamic_rotate %286 by %c16_i32 dim 1 : vector<2x256xf32>, i32 -> vector<2x256xf32>
      %288 = arith.addf %286, %287 : vector<2x256xf32>
      %c32_i32_103 = arith.constant 32 : i32
      %289 = tpu.dynamic_rotate %288 by %c32_i32_103 dim 1 : vector<2x256xf32>, i32 -> vector<2x256xf32>
      %290 = arith.addf %288, %289 : vector<2x256xf32>
      %c64_i32 = arith.constant 64 : i32
      %291 = tpu.dynamic_rotate %290 by %c64_i32 dim 1 : vector<2x256xf32>, i32 -> vector<2x256xf32>
      %292 = arith.addf %290, %291 : vector<2x256xf32>
      %c128_i32 = arith.constant 128 : i32
      %293 = tpu.dynamic_rotate %292 by %c128_i32 dim 1 : vector<2x256xf32>, i32 -> vector<2x256xf32>
      %294 = arith.addf %292, %293 : vector<2x256xf32>
      %295 = vector.extract_strided_slice %294 {offsets = [0, 0], sizes = [1, 256], strides = [1, 1]} : vector<2x256xf32> to vector<1x256xf32>
      %cst_104 = arith.constant 7.812500e-03 : f32
      %296 = vector.broadcast %cst_104 : f32 to vector<1x256xf32>
      %297 = arith.mulf %295, %296 : vector<1x256xf32>
      %298 = vector.extract_strided_slice %294 {offsets = [1, 0], sizes = [1, 256], strides = [1, 1]} : vector<2x256xf32> to vector<1x256xf32>
      %cst_105 = arith.constant 7.812500e-03 : f32
      %299 = vector.broadcast %cst_105 : f32 to vector<1x256xf32>
      %300 = arith.mulf %298, %299 : vector<1x256xf32>
      %301 = arith.mulf %297, %297 : vector<1x256xf32>
      %302 = arith.subf %300, %301 : vector<1x256xf32>
      %cst_106 = arith.constant 0.000000e+00 : f32
      %303 = vector.broadcast %cst_106 : f32 to vector<1x256xf32>
      %304 = arith.maximumf %302, %303 : vector<1x256xf32>
      %305 = vector.broadcast %297 : vector<1x256xf32> to vector<8x256xf32>
      %306 = arith.subf %276, %305 : vector<8x256xf32>
      %cst_107 = arith.constant 9.99999974E-6 : f32
      %307 = vector.broadcast %cst_107 : f32 to vector<1x256xf32>
      %308 = arith.addf %304, %307 : vector<1x256xf32>
      %309 = math.rsqrt %308 : vector<1x256xf32>
      %310 = vector.broadcast %309 : vector<1x256xf32> to vector<8x256xf32>
      %311 = arith.mulf %306, %310 : vector<8x256xf32>
      %cst_108 = arith.constant 0.000000e+00 : f32
      %312 = vector.broadcast %cst_108 : f32 to vector<8x256xf32>
      %313 = arith.maximumf %311, %312 : vector<8x256xf32>
      %c4_109 = arith.constant 4 : index
      %c0_110 = arith.constant 0 : index
      %314 = vector.load %arg6[%c4_109, %c0_110] : memref<9x256xf32, #tpu.memory_space<vmem>>, vector<1x256xf32>
      %315 = vector.broadcast %314 : vector<1x256xf32> to vector<8x256xf32>
      %316 = arith.mulf %313, %315 : vector<8x256xf32>
      %c36_i32_111 = arith.constant 36 : i32
      %317 = tpu.dynamic_rotate %313 by %c36_i32_111 dim 1 : vector<8x256xf32>, i32 -> vector<8x256xf32>
      %cst_112 = arith.constant 0.000000e+00 : f32
      %318 = vector.shape_cast %7 : vector<1x256xi1> to vector<1x256xi1>
      %319 = vector.broadcast %318 : vector<1x256xi1> to vector<8x256xi1>
      %320 = vector.broadcast %cst_112 : f32 to vector<8x256xf32>
      %321 = arith.select %319, %317, %320 : vector<8x256xi1>, vector<8x256xf32>
      %c0_113 = arith.constant 0 : index
      %c0_114 = arith.constant 0 : index
      %322 = vector.load %arg6[%c0_113, %c0_114] : memref<9x256xf32, #tpu.memory_space<vmem>>, vector<1x256xf32>
      %323 = vector.broadcast %322 : vector<1x256xf32> to vector<8x256xf32>
      %324 = arith.mulf %321, %323 : vector<8x256xf32>
      %325 = arith.addf %316, %324 : vector<8x256xf32>
      %c32_i32_115 = arith.constant 32 : i32
      %326 = tpu.dynamic_rotate %313 by %c32_i32_115 dim 1 : vector<8x256xf32>, i32 -> vector<8x256xf32>
      %cst_116 = arith.constant 0.000000e+00 : f32
      %327 = vector.shape_cast %9 : vector<1x256xi1> to vector<1x256xi1>
      %328 = vector.broadcast %327 : vector<1x256xi1> to vector<8x256xi1>
      %329 = vector.broadcast %cst_116 : f32 to vector<8x256xf32>
      %330 = arith.select %328, %326, %329 : vector<8x256xi1>, vector<8x256xf32>
      %c1_117 = arith.constant 1 : index
      %c0_118 = arith.constant 0 : index
      %331 = vector.load %arg6[%c1_117, %c0_118] : memref<9x256xf32, #tpu.memory_space<vmem>>, vector<1x256xf32>
      %332 = vector.broadcast %331 : vector<1x256xf32> to vector<8x256xf32>
      %333 = arith.mulf %330, %332 : vector<8x256xf32>
      %334 = arith.addf %325, %333 : vector<8x256xf32>
      %c28_i32_119 = arith.constant 28 : i32
      %335 = tpu.dynamic_rotate %313 by %c28_i32_119 dim 1 : vector<8x256xf32>, i32 -> vector<8x256xf32>
      %cst_120 = arith.constant 0.000000e+00 : f32
      %336 = vector.shape_cast %14 : vector<1x256xi1> to vector<1x256xi1>
      %337 = vector.broadcast %336 : vector<1x256xi1> to vector<8x256xi1>
      %338 = vector.broadcast %cst_120 : f32 to vector<8x256xf32>
      %339 = arith.select %337, %335, %338 : vector<8x256xi1>, vector<8x256xf32>
      %c2_121 = arith.constant 2 : index
      %c0_122 = arith.constant 0 : index
      %340 = vector.load %arg6[%c2_121, %c0_122] : memref<9x256xf32, #tpu.memory_space<vmem>>, vector<1x256xf32>
      %341 = vector.broadcast %340 : vector<1x256xf32> to vector<8x256xf32>
      %342 = arith.mulf %339, %341 : vector<8x256xf32>
      %343 = arith.addf %334, %342 : vector<8x256xf32>
      %c4_i32_123 = arith.constant 4 : i32
      %344 = tpu.dynamic_rotate %313 by %c4_i32_123 dim 1 : vector<8x256xf32>, i32 -> vector<8x256xf32>
      %cst_124 = arith.constant 0.000000e+00 : f32
      %345 = vector.shape_cast %16 : vector<1x256xi1> to vector<1x256xi1>
      %346 = vector.broadcast %345 : vector<1x256xi1> to vector<8x256xi1>
      %347 = vector.broadcast %cst_124 : f32 to vector<8x256xf32>
      %348 = arith.select %346, %344, %347 : vector<8x256xi1>, vector<8x256xf32>
      %c3_125 = arith.constant 3 : index
      %c0_126 = arith.constant 0 : index
      %349 = vector.load %arg6[%c3_125, %c0_126] : memref<9x256xf32, #tpu.memory_space<vmem>>, vector<1x256xf32>
      %350 = vector.broadcast %349 : vector<1x256xf32> to vector<8x256xf32>
      %351 = arith.mulf %348, %350 : vector<8x256xf32>
      %352 = arith.addf %343, %351 : vector<8x256xf32>
      %c252_i32_127 = arith.constant 252 : i32
      %353 = tpu.dynamic_rotate %313 by %c252_i32_127 dim 1 : vector<8x256xf32>, i32 -> vector<8x256xf32>
      %cst_128 = arith.constant 0.000000e+00 : f32
      %354 = vector.shape_cast %18 : vector<1x256xi1> to vector<1x256xi1>
      %355 = vector.broadcast %354 : vector<1x256xi1> to vector<8x256xi1>
      %356 = vector.broadcast %cst_128 : f32 to vector<8x256xf32>
      %357 = arith.select %355, %353, %356 : vector<8x256xi1>, vector<8x256xf32>
      %c5_129 = arith.constant 5 : index
      %c0_130 = arith.constant 0 : index
      %358 = vector.load %arg6[%c5_129, %c0_130] : memref<9x256xf32, #tpu.memory_space<vmem>>, vector<1x256xf32>
      %359 = vector.broadcast %358 : vector<1x256xf32> to vector<8x256xf32>
      %360 = arith.mulf %357, %359 : vector<8x256xf32>
      %361 = arith.addf %352, %360 : vector<8x256xf32>
      %c228_i32_131 = arith.constant 228 : i32
      %362 = tpu.dynamic_rotate %313 by %c228_i32_131 dim 1 : vector<8x256xf32>, i32 -> vector<8x256xf32>
      %cst_132 = arith.constant 0.000000e+00 : f32
      %363 = vector.shape_cast %23 : vector<1x256xi1> to vector<1x256xi1>
      %364 = vector.broadcast %363 : vector<1x256xi1> to vector<8x256xi1>
      %365 = vector.broadcast %cst_132 : f32 to vector<8x256xf32>
      %366 = arith.select %364, %362, %365 : vector<8x256xi1>, vector<8x256xf32>
      %c6_133 = arith.constant 6 : index
      %c0_134 = arith.constant 0 : index
      %367 = vector.load %arg6[%c6_133, %c0_134] : memref<9x256xf32, #tpu.memory_space<vmem>>, vector<1x256xf32>
      %368 = vector.broadcast %367 : vector<1x256xf32> to vector<8x256xf32>
      %369 = arith.mulf %366, %368 : vector<8x256xf32>
      %370 = arith.addf %361, %369 : vector<8x256xf32>
      %c224_i32_135 = arith.constant 224 : i32
      %371 = tpu.dynamic_rotate %313 by %c224_i32_135 dim 1 : vector<8x256xf32>, i32 -> vector<8x256xf32>
      %cst_136 = arith.constant 0.000000e+00 : f32
      %372 = vector.shape_cast %25 : vector<1x256xi1> to vector<1x256xi1>
      %373 = vector.broadcast %372 : vector<1x256xi1> to vector<8x256xi1>
      %374 = vector.broadcast %cst_136 : f32 to vector<8x256xf32>
      %375 = arith.select %373, %371, %374 : vector<8x256xi1>, vector<8x256xf32>
      %c7_137 = arith.constant 7 : index
      %c0_138 = arith.constant 0 : index
      %376 = vector.load %arg6[%c7_137, %c0_138] : memref<9x256xf32, #tpu.memory_space<vmem>>, vector<1x256xf32>
      %377 = vector.broadcast %376 : vector<1x256xf32> to vector<8x256xf32>
      %378 = arith.mulf %375, %377 : vector<8x256xf32>
      %379 = arith.addf %370, %378 : vector<8x256xf32>
      %c220_i32_139 = arith.constant 220 : i32
      %380 = tpu.dynamic_rotate %313 by %c220_i32_139 dim 1 : vector<8x256xf32>, i32 -> vector<8x256xf32>
      %cst_140 = arith.constant 0.000000e+00 : f32
      %381 = vector.shape_cast %30 : vector<1x256xi1> to vector<1x256xi1>
      %382 = vector.broadcast %381 : vector<1x256xi1> to vector<8x256xi1>
      %383 = vector.broadcast %cst_140 : f32 to vector<8x256xf32>
      %384 = arith.select %382, %380, %383 : vector<8x256xi1>, vector<8x256xf32>
      %c8_141 = arith.constant 8 : index
      %c0_142 = arith.constant 0 : index
      %385 = vector.load %arg6[%c8_141, %c0_142] : memref<9x256xf32, #tpu.memory_space<vmem>>, vector<1x256xf32>
      %386 = vector.broadcast %385 : vector<1x256xf32> to vector<8x256xf32>
      %387 = arith.mulf %384, %386 : vector<8x256xf32>
      %388 = arith.addf %379, %387 : vector<8x256xf32>
      %c3_143 = arith.constant 3 : index
      %c0_144 = arith.constant 0 : index
      %389 = vector.load %arg7[%c3_143, %c0_144] : memref<7x256xf32, #tpu.memory_space<vmem>>, vector<1x256xf32>
      %390 = vector.broadcast %389 : vector<1x256xf32> to vector<8x256xf32>
      %391 = arith.mulf %388, %390 : vector<8x256xf32>
      %c1_i32_145 = arith.constant 1 : i32
      %392 = tpu.dynamic_rotate %388 by %c1_i32_145 dim 1 : vector<8x256xf32>, i32 -> vector<8x256xf32>
      %c4_146 = arith.constant 4 : index
      %c0_147 = arith.constant 0 : index
      %393 = vector.load %arg7[%c4_146, %c0_147] : memref<7x256xf32, #tpu.memory_space<vmem>>, vector<1x256xf32>
      %394 = vector.broadcast %393 : vector<1x256xf32> to vector<8x256xf32>
      %395 = arith.mulf %392, %394 : vector<8x256xf32>
      %396 = arith.addf %391, %395 : vector<8x256xf32>
      %c255_i32_148 = arith.constant 255 : i32
      %397 = tpu.dynamic_rotate %388 by %c255_i32_148 dim 1 : vector<8x256xf32>, i32 -> vector<8x256xf32>
      %c2_149 = arith.constant 2 : index
      %c0_150 = arith.constant 0 : index
      %398 = vector.load %arg7[%c2_149, %c0_150] : memref<7x256xf32, #tpu.memory_space<vmem>>, vector<1x256xf32>
      %399 = vector.broadcast %398 : vector<1x256xf32> to vector<8x256xf32>
      %400 = arith.mulf %397, %399 : vector<8x256xf32>
      %401 = arith.addf %396, %400 : vector<8x256xf32>
      %c2_i32_151 = arith.constant 2 : i32
      %402 = tpu.dynamic_rotate %388 by %c2_i32_151 dim 1 : vector<8x256xf32>, i32 -> vector<8x256xf32>
      %c5_152 = arith.constant 5 : index
      %c0_153 = arith.constant 0 : index
      %403 = vector.load %arg7[%c5_152, %c0_153] : memref<7x256xf32, #tpu.memory_space<vmem>>, vector<1x256xf32>
      %404 = vector.broadcast %403 : vector<1x256xf32> to vector<8x256xf32>
      %405 = arith.mulf %402, %404 : vector<8x256xf32>
      %406 = arith.addf %401, %405 : vector<8x256xf32>
      %c254_i32_154 = arith.constant 254 : i32
      %407 = tpu.dynamic_rotate %388 by %c254_i32_154 dim 1 : vector<8x256xf32>, i32 -> vector<8x256xf32>
      %c1_155 = arith.constant 1 : index
      %c0_156 = arith.constant 0 : index
      %408 = vector.load %arg7[%c1_155, %c0_156] : memref<7x256xf32, #tpu.memory_space<vmem>>, vector<1x256xf32>
      %409 = vector.broadcast %408 : vector<1x256xf32> to vector<8x256xf32>
      %410 = arith.mulf %407, %409 : vector<8x256xf32>
      %411 = arith.addf %406, %410 : vector<8x256xf32>
      %c3_i32_157 = arith.constant 3 : i32
      %412 = tpu.dynamic_rotate %388 by %c3_i32_157 dim 1 : vector<8x256xf32>, i32 -> vector<8x256xf32>
      %c6_158 = arith.constant 6 : index
      %c0_159 = arith.constant 0 : index
      %413 = vector.load %arg7[%c6_158, %c0_159] : memref<7x256xf32, #tpu.memory_space<vmem>>, vector<1x256xf32>
      %414 = vector.broadcast %413 : vector<1x256xf32> to vector<8x256xf32>
      %415 = arith.mulf %412, %414 : vector<8x256xf32>
      %416 = arith.addf %411, %415 : vector<8x256xf32>
      %c253_i32_160 = arith.constant 253 : i32
      %417 = tpu.dynamic_rotate %388 by %c253_i32_160 dim 1 : vector<8x256xf32>, i32 -> vector<8x256xf32>
      %c0_161 = arith.constant 0 : index
      %c0_162 = arith.constant 0 : index
      %418 = vector.load %arg7[%c0_161, %c0_162] : memref<7x256xf32, #tpu.memory_space<vmem>>, vector<1x256xf32>
      %419 = vector.broadcast %418 : vector<1x256xf32> to vector<8x256xf32>
      %420 = arith.mulf %417, %419 : vector<8x256xf32>
      %421 = arith.addf %416, %420 : vector<8x256xf32>
      %cst_163 = arith.constant 0.000000e+00 : f32
      %422 = vector.broadcast %cst_163 : f32 to vector<8x256xf32>
      %423 = arith.select %61, %421, %422 : vector<8x256xi1>, vector<8x256xf32>
      %cst_164 = arith.constant dense<0.000000e+00> : vector<256xf32>
      %424 = vector.multi_reduction <add>, %423, %cst_164 [0] : vector<8x256xf32> to vector<256xf32>
      %425 = vector.shape_cast %424 : vector<256xf32> to vector<1x256xf32>
      %426 = arith.mulf %423, %423 : vector<8x256xf32>
      %cst_165 = arith.constant dense<0.000000e+00> : vector<256xf32>
      %427 = vector.multi_reduction <add>, %426, %cst_165 [0] : vector<8x256xf32> to vector<256xf32>
      %428 = vector.shape_cast %427 : vector<256xf32> to vector<1x256xf32>
      %429 = tpu.concatenate %425, %428 in 0 : vector<1x256xf32>, vector<1x256xf32> -> vector<2x256xf32>
      %c4_i32_166 = arith.constant 4 : i32
      %430 = tpu.dynamic_rotate %429 by %c4_i32_166 dim 1 : vector<2x256xf32>, i32 -> vector<2x256xf32>
      %431 = arith.addf %429, %430 : vector<2x256xf32>
      %c8_i32_167 = arith.constant 8 : i32
      %432 = tpu.dynamic_rotate %431 by %c8_i32_167 dim 1 : vector<2x256xf32>, i32 -> vector<2x256xf32>
      %433 = arith.addf %431, %432 : vector<2x256xf32>
      %c16_i32_168 = arith.constant 16 : i32
      %434 = tpu.dynamic_rotate %433 by %c16_i32_168 dim 1 : vector<2x256xf32>, i32 -> vector<2x256xf32>
      %435 = arith.addf %433, %434 : vector<2x256xf32>
      %c32_i32_169 = arith.constant 32 : i32
      %436 = tpu.dynamic_rotate %435 by %c32_i32_169 dim 1 : vector<2x256xf32>, i32 -> vector<2x256xf32>
      %437 = arith.addf %435, %436 : vector<2x256xf32>
      %c64_i32_170 = arith.constant 64 : i32
      %438 = tpu.dynamic_rotate %437 by %c64_i32_170 dim 1 : vector<2x256xf32>, i32 -> vector<2x256xf32>
      %439 = arith.addf %437, %438 : vector<2x256xf32>
      %c128_i32_171 = arith.constant 128 : i32
      %440 = tpu.dynamic_rotate %439 by %c128_i32_171 dim 1 : vector<2x256xf32>, i32 -> vector<2x256xf32>
      %441 = arith.addf %439, %440 : vector<2x256xf32>
      %442 = vector.extract_strided_slice %441 {offsets = [0, 0], sizes = [1, 256], strides = [1, 1]} : vector<2x256xf32> to vector<1x256xf32>
      %cst_172 = arith.constant 7.812500e-03 : f32
      %443 = vector.broadcast %cst_172 : f32 to vector<1x256xf32>
      %444 = arith.mulf %442, %443 : vector<1x256xf32>
      %445 = vector.extract_strided_slice %441 {offsets = [1, 0], sizes = [1, 256], strides = [1, 1]} : vector<2x256xf32> to vector<1x256xf32>
      %cst_173 = arith.constant 7.812500e-03 : f32
      %446 = vector.broadcast %cst_173 : f32 to vector<1x256xf32>
      %447 = arith.mulf %445, %446 : vector<1x256xf32>
      %448 = arith.mulf %444, %444 : vector<1x256xf32>
      %449 = arith.subf %447, %448 : vector<1x256xf32>
      %cst_174 = arith.constant 0.000000e+00 : f32
      %450 = vector.broadcast %cst_174 : f32 to vector<1x256xf32>
      %451 = arith.maximumf %449, %450 : vector<1x256xf32>
      %452 = vector.broadcast %444 : vector<1x256xf32> to vector<8x256xf32>
      %453 = arith.subf %423, %452 : vector<8x256xf32>
      %cst_175 = arith.constant 9.99999974E-6 : f32
      %454 = vector.broadcast %cst_175 : f32 to vector<1x256xf32>
      %455 = arith.addf %451, %454 : vector<1x256xf32>
      %456 = math.rsqrt %455 : vector<1x256xf32>
      %457 = vector.broadcast %456 : vector<1x256xf32> to vector<8x256xf32>
      %458 = arith.mulf %453, %457 : vector<8x256xf32>
      %c0_176 = arith.constant 0 : index
      %c0_177 = arith.constant 0 : index
      %459 = vector.load %arg10[%c0_176, %c0_177] : memref<8x256xf32, #tpu.memory_space<vmem>>, vector<8x256xf32>
      %c3_178 = arith.constant 3 : index
      %460 = memref.load %arg0[%c3_178] : memref<5xf32, #tpu.memory_space<smem>>
      %cst_179 = arith.constant 0.000000e+00 : f32
      %461 = arith.cmpf ogt, %460, %cst_179 : f32
      %cst_180 = arith.constant 1.000000e+00 : f32
      %462 = arith.cmpf ole, %460, %cst_180 : f32
      %463 = arith.andi %461, %462 : i1
      %cst_181 = arith.constant 0.000000e+00 : f32
      %464 = arith.select %463, %460, %cst_181 : f32
      %465 = vector.broadcast %464 : f32 to vector<8x256xf32>
      %466 = arith.mulf %465, %458 : vector<8x256xf32>
      %467 = arith.addf %459, %466 : vector<8x256xf32>
      %c0_182 = arith.constant 0 : index
      %c0_183 = arith.constant 0 : index
      %468 = vector.load %arg10[%c0_182, %c0_183] : memref<8x256xf32, #tpu.memory_space<vmem>>, vector<8x256xf32>
      tpu.vector_store %arg10[%c0_182, %c0_183], %467 {strides = array<i32>} : memref<8x256xf32, #tpu.memory_space<vmem>>, vector<8x256xf32>,
    } else {
    }
    %c4_79 = arith.constant 4 : index
    %236 = memref.load %arg0[%c4_79] : memref<5xf32, #tpu.memory_space<smem>>
    %cst_80 = arith.constant 0.000000e+00 : f32
    %237 = arith.cmpf ogt, %236, %cst_80 : f32
    %cst_81 = arith.constant 1.000000e+00 : f32
    %238 = arith.cmpf ole, %236, %cst_81 : f32
    %239 = arith.andi %237, %238 : i1
    %240 = arith.extui %239 : i1 to i32
    %c0_i32_82 = arith.constant 0 : i32
    %241 = arith.cmpi ne, %240, %c0_i32_82 : i32
    scf.if %241 {
      %c4_83 = arith.constant 4 : index
      %c0_84 = arith.constant 0 : index
      %242 = vector.load %arg8[%c4_83, %c0_84] : memref<9x256xf32, #tpu.memory_space<vmem>>, vector<1x256xf32>
      %243 = vector.broadcast %242 : vector<1x256xf32> to vector<8x256xf32>
      %244 = arith.mulf %63, %243 : vector<8x256xf32>
      %c72_i32 = arith.constant 72 : i32
      %245 = tpu.dynamic_rotate %63 by %c72_i32 dim 1 : vector<8x256xf32>, i32 -> vector<8x256xf32>
      %cst_85 = arith.constant 0.000000e+00 : f32
      %246 = vector.shape_cast %35 : vector<1x256xi1> to vector<1x256xi1>
      %247 = vector.broadcast %246 : vector<1x256xi1> to vector<8x256xi1>
      %248 = vector.broadcast %cst_85 : f32 to vector<8x256xf32>
      %249 = arith.select %247, %245, %248 : vector<8x256xi1>, vector<8x256xf32>
      %c0_86 = arith.constant 0 : index
      %c0_87 = arith.constant 0 : index
      %250 = vector.load %arg8[%c0_86, %c0_87] : memref<9x256xf32, #tpu.memory_space<vmem>>, vector<1x256xf32>
      %251 = vector.broadcast %250 : vector<1x256xf32> to vector<8x256xf32>
      %252 = arith.mulf %249, %251 : vector<8x256xf32>
      %253 = arith.addf %244, %252 : vector<8x256xf32>
      %c64_i32 = arith.constant 64 : i32
      %254 = tpu.dynamic_rotate %63 by %c64_i32 dim 1 : vector<8x256xf32>, i32 -> vector<8x256xf32>
      %cst_88 = arith.constant 0.000000e+00 : f32
      %255 = vector.shape_cast %37 : vector<1x256xi1> to vector<1x256xi1>
      %256 = vector.broadcast %255 : vector<1x256xi1> to vector<8x256xi1>
      %257 = vector.broadcast %cst_88 : f32 to vector<8x256xf32>
      %258 = arith.select %256, %254, %257 : vector<8x256xi1>, vector<8x256xf32>
      %c1_89 = arith.constant 1 : index
      %c0_90 = arith.constant 0 : index
      %259 = vector.load %arg8[%c1_89, %c0_90] : memref<9x256xf32, #tpu.memory_space<vmem>>, vector<1x256xf32>
      %260 = vector.broadcast %259 : vector<1x256xf32> to vector<8x256xf32>
      %261 = arith.mulf %258, %260 : vector<8x256xf32>
      %262 = arith.addf %253, %261 : vector<8x256xf32>
      %c56_i32 = arith.constant 56 : i32
      %263 = tpu.dynamic_rotate %63 by %c56_i32 dim 1 : vector<8x256xf32>, i32 -> vector<8x256xf32>
      %cst_91 = arith.constant 0.000000e+00 : f32
      %264 = vector.shape_cast %42 : vector<1x256xi1> to vector<1x256xi1>
      %265 = vector.broadcast %264 : vector<1x256xi1> to vector<8x256xi1>
      %266 = vector.broadcast %cst_91 : f32 to vector<8x256xf32>
      %267 = arith.select %265, %263, %266 : vector<8x256xi1>, vector<8x256xf32>
      %c2_92 = arith.constant 2 : index
      %c0_93 = arith.constant 0 : index
      %268 = vector.load %arg8[%c2_92, %c0_93] : memref<9x256xf32, #tpu.memory_space<vmem>>, vector<1x256xf32>
      %269 = vector.broadcast %268 : vector<1x256xf32> to vector<8x256xf32>
      %270 = arith.mulf %267, %269 : vector<8x256xf32>
      %271 = arith.addf %262, %270 : vector<8x256xf32>
      %c8_i32 = arith.constant 8 : i32
      %272 = tpu.dynamic_rotate %63 by %c8_i32 dim 1 : vector<8x256xf32>, i32 -> vector<8x256xf32>
      %cst_94 = arith.constant 0.000000e+00 : f32
      %273 = vector.shape_cast %44 : vector<1x256xi1> to vector<1x256xi1>
      %274 = vector.broadcast %273 : vector<1x256xi1> to vector<8x256xi1>
      %275 = vector.broadcast %cst_94 : f32 to vector<8x256xf32>
      %276 = arith.select %274, %272, %275 : vector<8x256xi1>, vector<8x256xf32>
      %c3_95 = arith.constant 3 : index
      %c0_96 = arith.constant 0 : index
      %277 = vector.load %arg8[%c3_95, %c0_96] : memref<9x256xf32, #tpu.memory_space<vmem>>, vector<1x256xf32>
      %278 = vector.broadcast %277 : vector<1x256xf32> to vector<8x256xf32>
      %279 = arith.mulf %276, %278 : vector<8x256xf32>
      %280 = arith.addf %271, %279 : vector<8x256xf32>
      %c248_i32 = arith.constant 248 : i32
      %281 = tpu.dynamic_rotate %63 by %c248_i32 dim 1 : vector<8x256xf32>, i32 -> vector<8x256xf32>
      %cst_97 = arith.constant 0.000000e+00 : f32
      %282 = vector.shape_cast %46 : vector<1x256xi1> to vector<1x256xi1>
      %283 = vector.broadcast %282 : vector<1x256xi1> to vector<8x256xi1>
      %284 = vector.broadcast %cst_97 : f32 to vector<8x256xf32>
      %285 = arith.select %283, %281, %284 : vector<8x256xi1>, vector<8x256xf32>
      %c5_98 = arith.constant 5 : index
      %c0_99 = arith.constant 0 : index
      %286 = vector.load %arg8[%c5_98, %c0_99] : memref<9x256xf32, #tpu.memory_space<vmem>>, vector<1x256xf32>
      %287 = vector.broadcast %286 : vector<1x256xf32> to vector<8x256xf32>
      %288 = arith.mulf %285, %287 : vector<8x256xf32>
      %289 = arith.addf %280, %288 : vector<8x256xf32>
      %c200_i32 = arith.constant 200 : i32
      %290 = tpu.dynamic_rotate %63 by %c200_i32 dim 1 : vector<8x256xf32>, i32 -> vector<8x256xf32>
      %cst_100 = arith.constant 0.000000e+00 : f32
      %291 = vector.shape_cast %51 : vector<1x256xi1> to vector<1x256xi1>
      %292 = vector.broadcast %291 : vector<1x256xi1> to vector<8x256xi1>
      %293 = vector.broadcast %cst_100 : f32 to vector<8x256xf32>
      %294 = arith.select %292, %290, %293 : vector<8x256xi1>, vector<8x256xf32>
      %c6_101 = arith.constant 6 : index
      %c0_102 = arith.constant 0 : index
      %295 = vector.load %arg8[%c6_101, %c0_102] : memref<9x256xf32, #tpu.memory_space<vmem>>, vector<1x256xf32>
      %296 = vector.broadcast %295 : vector<1x256xf32> to vector<8x256xf32>
      %297 = arith.mulf %294, %296 : vector<8x256xf32>
      %298 = arith.addf %289, %297 : vector<8x256xf32>
      %c192_i32 = arith.constant 192 : i32
      %299 = tpu.dynamic_rotate %63 by %c192_i32 dim 1 : vector<8x256xf32>, i32 -> vector<8x256xf32>
      %cst_103 = arith.constant 0.000000e+00 : f32
      %300 = vector.shape_cast %53 : vector<1x256xi1> to vector<1x256xi1>
      %301 = vector.broadcast %300 : vector<1x256xi1> to vector<8x256xi1>
      %302 = vector.broadcast %cst_103 : f32 to vector<8x256xf32>
      %303 = arith.select %301, %299, %302 : vector<8x256xi1>, vector<8x256xf32>
      %c7_104 = arith.constant 7 : index
      %c0_105 = arith.constant 0 : index
      %304 = vector.load %arg8[%c7_104, %c0_105] : memref<9x256xf32, #tpu.memory_space<vmem>>, vector<1x256xf32>
      %305 = vector.broadcast %304 : vector<1x256xf32> to vector<8x256xf32>
      %306 = arith.mulf %303, %305 : vector<8x256xf32>
      %307 = arith.addf %298, %306 : vector<8x256xf32>
      %c184_i32 = arith.constant 184 : i32
      %308 = tpu.dynamic_rotate %63 by %c184_i32 dim 1 : vector<8x256xf32>, i32 -> vector<8x256xf32>
      %cst_106 = arith.constant 0.000000e+00 : f32
      %309 = vector.shape_cast %58 : vector<1x256xi1> to vector<1x256xi1>
      %310 = vector.broadcast %309 : vector<1x256xi1> to vector<8x256xi1>
      %311 = vector.broadcast %cst_106 : f32 to vector<8x256xf32>
      %312 = arith.select %310, %308, %311 : vector<8x256xi1>, vector<8x256xf32>
      %c8_107 = arith.constant 8 : index
      %c0_108 = arith.constant 0 : index
      %313 = vector.load %arg8[%c8_107, %c0_108] : memref<9x256xf32, #tpu.memory_space<vmem>>, vector<1x256xf32>
      %314 = vector.broadcast %313 : vector<1x256xf32> to vector<8x256xf32>
      %315 = arith.mulf %312, %314 : vector<8x256xf32>
      %316 = arith.addf %307, %315 : vector<8x256xf32>
      %c3_109 = arith.constant 3 : index
      %c0_110 = arith.constant 0 : index
      %317 = vector.load %arg9[%c3_109, %c0_110] : memref<7x256xf32, #tpu.memory_space<vmem>>, vector<1x256xf32>
      %318 = vector.broadcast %317 : vector<1x256xf32> to vector<8x256xf32>
      %319 = arith.mulf %316, %318 : vector<8x256xf32>
      %c1_i32_111 = arith.constant 1 : i32
      %320 = tpu.dynamic_rotate %316 by %c1_i32_111 dim 1 : vector<8x256xf32>, i32 -> vector<8x256xf32>
      %c4_112 = arith.constant 4 : index
      %c0_113 = arith.constant 0 : index
      %321 = vector.load %arg9[%c4_112, %c0_113] : memref<7x256xf32, #tpu.memory_space<vmem>>, vector<1x256xf32>
      %322 = vector.broadcast %321 : vector<1x256xf32> to vector<8x256xf32>
      %323 = arith.mulf %320, %322 : vector<8x256xf32>
      %324 = arith.addf %319, %323 : vector<8x256xf32>
      %c255_i32 = arith.constant 255 : i32
      %325 = tpu.dynamic_rotate %316 by %c255_i32 dim 1 : vector<8x256xf32>, i32 -> vector<8x256xf32>
      %c2_114 = arith.constant 2 : index
      %c0_115 = arith.constant 0 : index
      %326 = vector.load %arg9[%c2_114, %c0_115] : memref<7x256xf32, #tpu.memory_space<vmem>>, vector<1x256xf32>
      %327 = vector.broadcast %326 : vector<1x256xf32> to vector<8x256xf32>
      %328 = arith.mulf %325, %327 : vector<8x256xf32>
      %329 = arith.addf %324, %328 : vector<8x256xf32>
      %c2_i32_116 = arith.constant 2 : i32
      %330 = tpu.dynamic_rotate %316 by %c2_i32_116 dim 1 : vector<8x256xf32>, i32 -> vector<8x256xf32>
      %c5_117 = arith.constant 5 : index
      %c0_118 = arith.constant 0 : index
      %331 = vector.load %arg9[%c5_117, %c0_118] : memref<7x256xf32, #tpu.memory_space<vmem>>, vector<1x256xf32>
      %332 = vector.broadcast %331 : vector<1x256xf32> to vector<8x256xf32>
      %333 = arith.mulf %330, %332 : vector<8x256xf32>
      %334 = arith.addf %329, %333 : vector<8x256xf32>
      %c254_i32 = arith.constant 254 : i32
      %335 = tpu.dynamic_rotate %316 by %c254_i32 dim 1 : vector<8x256xf32>, i32 -> vector<8x256xf32>
      %c1_119 = arith.constant 1 : index
      %c0_120 = arith.constant 0 : index
      %336 = vector.load %arg9[%c1_119, %c0_120] : memref<7x256xf32, #tpu.memory_space<vmem>>, vector<1x256xf32>
      %337 = vector.broadcast %336 : vector<1x256xf32> to vector<8x256xf32>
      %338 = arith.mulf %335, %337 : vector<8x256xf32>
      %339 = arith.addf %334, %338 : vector<8x256xf32>
      %c3_i32 = arith.constant 3 : i32
      %340 = tpu.dynamic_rotate %316 by %c3_i32 dim 1 : vector<8x256xf32>, i32 -> vector<8x256xf32>
      %c6_121 = arith.constant 6 : index
      %c0_122 = arith.constant 0 : index
      %341 = vector.load %arg9[%c6_121, %c0_122] : memref<7x256xf32, #tpu.memory_space<vmem>>, vector<1x256xf32>
      %342 = vector.broadcast %341 : vector<1x256xf32> to vector<8x256xf32>
      %343 = arith.mulf %340, %342 : vector<8x256xf32>
      %344 = arith.addf %339, %343 : vector<8x256xf32>
      %c253_i32 = arith.constant 253 : i32
      %345 = tpu.dynamic_rotate %316 by %c253_i32 dim 1 : vector<8x256xf32>, i32 -> vector<8x256xf32>
      %c0_123 = arith.constant 0 : index
      %c0_124 = arith.constant 0 : index
      %346 = vector.load %arg9[%c0_123, %c0_124] : memref<7x256xf32, #tpu.memory_space<vmem>>, vector<1x256xf32>
      %347 = vector.broadcast %346 : vector<1x256xf32> to vector<8x256xf32>
      %348 = arith.mulf %345, %347 : vector<8x256xf32>
      %349 = arith.addf %344, %348 : vector<8x256xf32>
      %cst_125 = arith.constant 0.000000e+00 : f32
      %350 = vector.broadcast %cst_125 : f32 to vector<8x256xf32>
      %351 = arith.select %61, %349, %350 : vector<8x256xi1>, vector<8x256xf32>
      %cst_126 = arith.constant dense<0.000000e+00> : vector<256xf32>
      %352 = vector.multi_reduction <add>, %351, %cst_126 [0] : vector<8x256xf32> to vector<256xf32>
      %353 = vector.shape_cast %352 : vector<256xf32> to vector<1x256xf32>
      %354 = arith.mulf %351, %351 : vector<8x256xf32>
      %cst_127 = arith.constant dense<0.000000e+00> : vector<256xf32>
      %355 = vector.multi_reduction <add>, %354, %cst_127 [0] : vector<8x256xf32> to vector<256xf32>
      %356 = vector.shape_cast %355 : vector<256xf32> to vector<1x256xf32>
      %357 = tpu.concatenate %353, %356 in 0 : vector<1x256xf32>, vector<1x256xf32> -> vector<2x256xf32>
      %c4_i32_128 = arith.constant 4 : i32
      %358 = tpu.dynamic_rotate %357 by %c4_i32_128 dim 1 : vector<2x256xf32>, i32 -> vector<2x256xf32>
      %359 = arith.addf %357, %358 : vector<2x256xf32>
      %c8_i32_129 = arith.constant 8 : i32
      %360 = tpu.dynamic_rotate %359 by %c8_i32_129 dim 1 : vector<2x256xf32>, i32 -> vector<2x256xf32>
      %361 = arith.addf %359, %360 : vector<2x256xf32>
      %c16_i32 = arith.constant 16 : i32
      %362 = tpu.dynamic_rotate %361 by %c16_i32 dim 1 : vector<2x256xf32>, i32 -> vector<2x256xf32>
      %363 = arith.addf %361, %362 : vector<2x256xf32>
      %c32_i32_130 = arith.constant 32 : i32
      %364 = tpu.dynamic_rotate %363 by %c32_i32_130 dim 1 : vector<2x256xf32>, i32 -> vector<2x256xf32>
      %365 = arith.addf %363, %364 : vector<2x256xf32>
      %c64_i32_131 = arith.constant 64 : i32
      %366 = tpu.dynamic_rotate %365 by %c64_i32_131 dim 1 : vector<2x256xf32>, i32 -> vector<2x256xf32>
      %367 = arith.addf %365, %366 : vector<2x256xf32>
      %c128_i32 = arith.constant 128 : i32
      %368 = tpu.dynamic_rotate %367 by %c128_i32 dim 1 : vector<2x256xf32>, i32 -> vector<2x256xf32>
      %369 = arith.addf %367, %368 : vector<2x256xf32>
      %370 = vector.extract_strided_slice %369 {offsets = [0, 0], sizes = [1, 256], strides = [1, 1]} : vector<2x256xf32> to vector<1x256xf32>
      %cst_132 = arith.constant 7.812500e-03 : f32
      %371 = vector.broadcast %cst_132 : f32 to vector<1x256xf32>
      %372 = arith.mulf %370, %371 : vector<1x256xf32>
      %373 = vector.extract_strided_slice %369 {offsets = [1, 0], sizes = [1, 256], strides = [1, 1]} : vector<2x256xf32> to vector<1x256xf32>
      %cst_133 = arith.constant 7.812500e-03 : f32
      %374 = vector.broadcast %cst_133 : f32 to vector<1x256xf32>
      %375 = arith.mulf %373, %374 : vector<1x256xf32>
      %376 = arith.mulf %372, %372 : vector<1x256xf32>
      %377 = arith.subf %375, %376 : vector<1x256xf32>
      %cst_134 = arith.constant 0.000000e+00 : f32
      %378 = vector.broadcast %cst_134 : f32 to vector<1x256xf32>
      %379 = arith.maximumf %377, %378 : vector<1x256xf32>
      %380 = vector.broadcast %372 : vector<1x256xf32> to vector<8x256xf32>
      %381 = arith.subf %351, %380 : vector<8x256xf32>
      %cst_135 = arith.constant 9.99999974E-6 : f32
      %382 = vector.broadcast %cst_135 : f32 to vector<1x256xf32>
      %383 = arith.addf %379, %382 : vector<1x256xf32>
      %384 = math.rsqrt %383 : vector<1x256xf32>
      %385 = vector.broadcast %384 : vector<1x256xf32> to vector<8x256xf32>
      %386 = arith.mulf %381, %385 : vector<8x256xf32>
      %c0_136 = arith.constant 0 : index
      %c0_137 = arith.constant 0 : index
      %387 = vector.load %arg10[%c0_136, %c0_137] : memref<8x256xf32, #tpu.memory_space<vmem>>, vector<8x256xf32>
      %c4_138 = arith.constant 4 : index
      %388 = memref.load %arg0[%c4_138] : memref<5xf32, #tpu.memory_space<smem>>
      %cst_139 = arith.constant 0.000000e+00 : f32
      %389 = arith.cmpf ogt, %388, %cst_139 : f32
      %cst_140 = arith.constant 1.000000e+00 : f32
      %390 = arith.cmpf ole, %388, %cst_140 : f32
      %391 = arith.andi %389, %390 : i1
      %cst_141 = arith.constant 0.000000e+00 : f32
      %392 = arith.select %391, %388, %cst_141 : f32
      %393 = vector.broadcast %392 : f32 to vector<8x256xf32>
      %394 = arith.mulf %393, %386 : vector<8x256xf32>
      %395 = arith.addf %387, %394 : vector<8x256xf32>
      %c0_142 = arith.constant 0 : index
      %c0_143 = arith.constant 0 : index
      %396 = vector.load %arg10[%c0_142, %c0_143] : memref<8x256xf32, #tpu.memory_space<vmem>>, vector<8x256xf32>
      tpu.vector_store %arg10[%c0_142, %c0_143], %395 {strides = array<i32>} : memref<8x256xf32, #tpu.memory_space<vmem>>, vector<8x256xf32>,
    } else {
    }
    return
  }
}

</mosaic_0001>

<llo_original>
// kernel: tile.35
$region0: #{tile.35}
  %s0 = inlined_call_operand.vmem [shape: f32[7,64,4], index: 0, kind: input, shape index: {}]
  %s1 = inlined_call_operand.vmem [shape: f32[7,256], index: 1, kind: output, shape index: {}]
  %v2 = vld [vmem:[%s0] sm:$0x1]
  %s3 = scalar_lea.vmem %s0, 31
  %v4 = vld [vmem:[%s3] sm:$0x2]
  %vm5 = vcmask 1041409
  %v6 = vsel %vm5, %v4, %v2
  %s7 = scalar_lea.vmem %s0, 62
  %v8 = vld [vmem:[%s7] sm:$0x4]
  %vm9 = vcmask 1042434
  %v10 = vsel %vm9, %v8, %v6
  %s11 = scalar_lea.vmem %s0, 93
  %v12 = vld [vmem:[%s11] sm:$0x8]
  %vm13 = vcmask 1043459
  %v14 = vsel %vm13, %v12, %v10
  %s15 = scalar_lea.vmem %s0, 124
  %v16 = vld [vmem:[%s15] sm:$0x10]
  %vm17 = vcmask 1044484
  %v18 = vsel %vm17, %v16, %v14
  %s19 = scalar_lea.vmem %s0, 155
  %v20 = vld [vmem:[%s19] sm:$0x20]
  %vm21 = vcmask 1045509
  %v22 = vsel %vm21, %v20, %v18
  %s23 = scalar_lea.vmem %s0, 186
  %v24 = vld [vmem:[%s23] sm:$0x40]
  %vm25 = vcmask 1046534
  %v26 = vsel %vm25, %v24, %v22
  %s27 = scalar_lea.vmem %s0, 217
  %v28 = vld [vmem:[%s27] sm:$0x80]
  %vm29 = vcmask 1047559
  %v30 = vsel %vm29, %v28, %v26
  %vm31 = vcmask 31744
  %32 = vst.msk [vmem:[%s1] ss:$8 sm:$0x3] %vm31, %v30
  %s33 = scalar_lea.vmem %s1, 4294967281
  %34 = vst.msk [vmem:[%s33] ss:$8 sm:$0xc] %vm31, %v30
  %s35 = scalar_lea.vmem %s1, 4294967266
  %36 = vst.msk [vmem:[%s35] ss:$8 sm:$0x30] %vm31, %v30
  %s37 = scalar_lea.vmem %s1, 4294967251
  %38 = vst.msk [vmem:[%s37] ss:$8 sm:$0xc0] %vm31, %v30
  %s39 = scalar_lea.vmem %s0, 256
  %v40 = vld [vmem:[%s39] sm:$0x1]
  %s41 = scalar_lea.vmem %s0, 287
  %v42 = vld [vmem:[%s41] sm:$0x2]
  %vm43 = vcmask 1041409
  %v44 = vsel %vm43, %v42, %v40
  %s45 = scalar_lea.vmem %s0, 318
  %v46 = vld [vmem:[%s45] sm:$0x4]
  %vm47 = vcmask 1042434
  %v48 = vsel %vm47, %v46, %v44
  %s49 = scalar_lea.vmem %s0, 349
  %v50 = vld [vmem:[%s49] sm:$0x8]
  %vm51 = vcmask 1043459
  %v52 = vsel %vm51, %v50, %v48
  %s53 = scalar_lea.vmem %s0, 380
  %v54 = vld [vmem:[%s53] sm:$0x10]
  %vm55 = vcmask 1044484
  %v56 = vsel %vm55, %v54, %v52
  %s57 = scalar_lea.vmem %s0, 411
  %v58 = vld [vmem:[%s57] sm:$0x20]
  %vm59 = vcmask 1045509
  %v60 = vsel %vm59, %v58, %v56
  %vm61 = vcmask 31744
  %s62 = scalar_lea.vmem %s1, 4
  %63 = vst.msk [vmem:[%s62] ss:$8 sm:$0x3] %vm61, %v60
  %s64 = scalar_lea.vmem %s1, 4294967285
  %65 = vst.msk [vmem:[%s64] ss:$8 sm:$0xc] %vm61, %v60
  %s66 = scalar_lea.vmem %s1, 4294967270
  %67 = vst.msk [vmem:[%s66] ss:$8 sm:$0x30] %vm61, %v60
  %s68 = scalar_lea.vmem %s0, 31
  %v69 = vld [vmem:[%s68] sm:$0x1]
  %s70 = scalar_lea.vmem %s0, 94
  %v71 = vld [vmem:[%s70] sm:$0x2]
  %vm72 = vcmask 1041409
  %v73 = vsel %vm72, %v71, %v69
  %s74 = scalar_lea.vmem %s0, 157
  %v75 = vld [vmem:[%s74] sm:$0x4]
  %vm76 = vcmask 1042434
  %v77 = vsel %vm76, %v75, %v73
  %s78 = scalar_lea.vmem %s0, 220
  %v79 = vld [vmem:[%s78] sm:$0x8]
  %vm80 = vcmask 1043459
  %v81 = vsel %vm80, %v79, %v77
  %s82 = scalar_lea.vmem %s0, 283
  %v83 = vld [vmem:[%s82] sm:$0x10]
  %vm84 = vcmask 1044484
  %v85 = vsel %vm84, %v83, %v81
  %s86 = scalar_lea.vmem %s0, 346
  %v87 = vld [vmem:[%s86] sm:$0x20]
  %vm88 = vcmask 1045509
  %v89 = vsel %vm88, %v87, %v85
  %s90 = scalar_lea.vmem %s0, 409
  %v91 = vld [vmem:[%s90] sm:$0x40]
  %vm92 = vcmask 1046534
  %v93 = vsel %vm92, %v91, %v89
  %s94 = scalar_lea.vmem %s0, 56
  %v95 = vld [vmem:[%s94] sm:$0x80]
  %vm96 = vcmask 1047559
  %v97 = vsel %vm96, %v95, %v93
  %98 = vrot.lane.b32.xlu0 %v97, 124
  %v99 = vpop.permute.xlu0 %98
  %vm100 = vcmask 1048544
  %101 = vst.msk [vmem:[%s1] sm:$0x7f] %vm100, %v99
  %s102 = scalar_lea.vmem %s1, 1
  %103 = vst.msk [vmem:[%s102] sm:$0x80] %vm100, %v99
  %s104 = scalar_lea.vmem %s0, 127
  %v105 = vld [vmem:[%s104] sm:$0x1]
  %s106 = scalar_lea.vmem %s0, 190
  %v107 = vld [vmem:[%s106] sm:$0x2]
  %vm108 = vcmask 1041409
  %v109 = vsel %vm108, %v107, %v105
  %s110 = scalar_lea.vmem %s0, 253
  %v111 = vld [vmem:[%s110] sm:$0x4]
  %vm112 = vcmask 1042434
  %v113 = vsel %vm112, %v111, %v109
  %s114 = scalar_lea.vmem %s0, 316
  %v115 = vld [vmem:[%s114] sm:$0x8]
  %vm116 = vcmask 1043459
  %v117 = vsel %vm116, %v115, %v113
  %s118 = scalar_lea.vmem %s0, 379
  %v119 = vld [vmem:[%s118] sm:$0x10]
  %vm120 = vcmask 1044484
  %v121 = vsel %vm120, %v119, %v117
  %s122 = scalar_lea.vmem %s0, 442
  %v123 = vld [vmem:[%s122] sm:$0x20]
  %vm124 = vcmask 1045509
  %v125 = vsel %vm124, %v123, %v121
  %126 = vrot.lane.b32.xlu0 %v125, 124
  %v127 = vpop.permute.xlu0 %126
  %vm128 = vcmask 1048544
  %s129 = scalar_lea.vmem %s1, 9
  %130 = vst.msk [vmem:[%s129] sm:$0x3f] %vm128, %v127
  %s131 = scalar_lea.vmem %s0, 30
  %v132 = vld [vmem:[%s131] sm:$0x1]
  %s133 = scalar_lea.vmem %s0, 93
  %v134 = vld [vmem:[%s133] sm:$0x2]
  %vm135 = vcmask 1041409
  %v136 = vsel %vm135, %v134, %v132
  %s137 = scalar_lea.vmem %s0, 156
  %v138 = vld [vmem:[%s137] sm:$0x4]
  %vm139 = vcmask 1042434
  %v140 = vsel %vm139, %v138, %v136
  %s141 = scalar_lea.vmem %s0, 219
  %v142 = vld [vmem:[%s141] sm:$0x8]
  %vm143 = vcmask 1043459
  %v144 = vsel %vm143, %v142, %v140
  %s145 = scalar_lea.vmem %s0, 282
  %v146 = vld [vmem:[%s145] sm:$0x10]
  %vm147 = vcmask 1044484
  %v148 = vsel %vm147, %v146, %v144
  %s149 = scalar_lea.vmem %s0, 345
  %v150 = vld [vmem:[%s149] sm:$0x20]
  %vm151 = vcmask 1045509
  %v152 = vsel %vm151, %v150, %v148
  %s153 = scalar_lea.vmem %s0, 408
  %v154 = vld [vmem:[%s153] sm:$0x40]
  %vm155 = vcmask 1046534
  %v156 = vsel %vm155, %v154, %v152
  %s157 = scalar_lea.vmem %s0, 55
  %v158 = vld [vmem:[%s157] sm:$0x80]
  %vm159 = vcmask 1047559
  %v160 = vsel %vm159, %v158, %v156
  %161 = vrot.lane.b32.xlu0 %v160, 120
  %v162 = vpop.permute.xlu0 %161
  %vm163 = vcmask 1015744
  %164 = vst.msk [vmem:[%s1] sm:$0x7f] %vm163, %v162
  %s165 = scalar_lea.vmem %s1, 1
  %166 = vst.msk [vmem:[%s165] sm:$0x80] %vm163, %v162
  %s167 = scalar_lea.vmem %s0, 126
  %v168 = vld [vmem:[%s167] sm:$0x1]
  %s169 = scalar_lea.vmem %s0, 189
  %v170 = vld [vmem:[%s169] sm:$0x2]
  %vm171 = vcmask 1041409
  %v172 = vsel %vm171, %v170, %v168
  %s173 = scalar_lea.vmem %s0, 252
  %v174 = vld [vmem:[%s173] sm:$0x4]
  %vm175 = vcmask 1042434
  %v176 = vsel %vm175, %v174, %v172
  %s177 = scalar_lea.vmem %s0, 315
  %v178 = vld [vmem:[%s177] sm:$0x8]
  %vm179 = vcmask 1043459
  %v180 = vsel %vm179, %v178, %v176
  %s181 = scalar_lea.vmem %s0, 378
  %v182 = vld [vmem:[%s181] sm:$0x10]
  %vm183 = vcmask 1044484
  %v184 = vsel %vm183, %v182, %v180
  %s185 = scalar_lea.vmem %s0, 441
  %v186 = vld [vmem:[%s185] sm:$0x20]
  %vm187 = vcmask 1045509
  %v188 = vsel %vm187, %v186, %v184
  %189 = vrot.lane.b32.xlu0 %v188, 120
  %v190 = vpop.permute.xlu0 %189
  %vm191 = vcmask 1015744
  %s192 = scalar_lea.vmem %s1, 9
  %193 = vst.msk [vmem:[%s192] sm:$0x3f] %vm191, %v190
  %s194 = scalar_lea.vmem %s0, 29
  %v195 = vld [vmem:[%s194] sm:$0x1]
  %s196 = scalar_lea.vmem %s0, 92
  %v197 = vld [vmem:[%s196] sm:$0x2]
  %vm198 = vcmask 1041409
  %v199 = vsel %vm198, %v197, %v195
  %s200 = scalar_lea.vmem %s0, 155
  %v201 = vld [vmem:[%s200] sm:$0x4]
  %vm202 = vcmask 1042434
  %v203 = vsel %vm202, %v201, %v199
  %s204 = scalar_lea.vmem %s0, 218
  %v205 = vld [vmem:[%s204] sm:$0x8]
  %vm206 = vcmask 1043459
  %v207 = vsel %vm206, %v205, %v203
  %s208 = scalar_lea.vmem %s0, 281
  %v209 = vld [vmem:[%s208] sm:$0x10]
  %vm210 = vcmask 1044484
  %v211 = vsel %vm210, %v209, %v207
  %s212 = scalar_lea.vmem %s0, 344
  %v213 = vld [vmem:[%s212] sm:$0x20]
  %vm214 = vcmask 1045509
  %v215 = vsel %vm214, %v213, %v211
  %s216 = scalar_lea.vmem %s0, 407
  %v217 = vld [vmem:[%s216] sm:$0x40]
  %vm218 = vcmask 1046534
  %v219 = vsel %vm218, %v217, %v215
  %s220 = scalar_lea.vmem %s0, 54
  %v221 = vld [vmem:[%s220] sm:$0x80]
  %vm222 = vcmask 1047559
  %v223 = vsel %vm222, %v221, %v219
  %224 = vrot.lane.b32.xlu0 %v223, 116
  %v225 = vpop.permute.xlu0 %224
  %vm226 = vcmask 982944
  %227 = vst.msk [vmem:[%s1] sm:$0x7f] %vm226, %v225
  %s228 = scalar_lea.vmem %s1, 1
  %229 = vst.msk [vmem:[%s228] sm:$0x80] %vm226, %v225
  %s230 = scalar_lea.vmem %s0, 125
  %v231 = vld [vmem:[%s230] sm:$0x1]
  %s232 = scalar_lea.vmem %s0, 188
  %v233 = vld [vmem:[%s232] sm:$0x2]
  %vm234 = vcmask 1041409
  %v235 = vsel %vm234, %v233, %v231
  %s236 = scalar_lea.vmem %s0, 251
  %v237 = vld [vmem:[%s236] sm:$0x4]
  %vm238 = vcmask 1042434
  %v239 = vsel %vm238, %v237, %v235
  %s240 = scalar_lea.vmem %s0, 314
  %v241 = vld [vmem:[%s240] sm:$0x8]
  %vm242 = vcmask 1043459
  %v243 = vsel %vm242, %v241, %v239
  %s244 = scalar_lea.vmem %s0, 377
  %v245 = vld [vmem:[%s244] sm:$0x10]
  %vm246 = vcmask 1044484
  %v247 = vsel %vm246, %v245, %v243
  %s248 = scalar_lea.vmem %s0, 440
  %v249 = vld [vmem:[%s248] sm:$0x20]
  %vm250 = vcmask 1045509
  %v251 = vsel %vm250, %v249, %v247
  %252 = vrot.lane.b32.xlu0 %v251, 116
  %v253 = vpop.permute.xlu0 %252
  %vm254 = vcmask 982944
  %s255 = scalar_lea.vmem %s1, 9
  %256 = vst.msk [vmem:[%s255] sm:$0x3f] %vm254, %v253
  %s257 = scalar_lea.vmem %s0, 28
  %v258 = vld [vmem:[%s257] sm:$0x1]
  %s259 = scalar_lea.vmem %s0, 91
  %v260 = vld [vmem:[%s259] sm:$0x2]
  %vm261 = vcmask 1041409
  %v262 = vsel %vm261, %v260, %v258
  %s263 = scalar_lea.vmem %s0, 154
  %v264 = vld [vmem:[%s263] sm:$0x4]
  %vm265 = vcmask 1042434
  %v266 = vsel %vm265, %v264, %v262
  %s267 = scalar_lea.vmem %s0, 217
  %v268 = vld [vmem:[%s267] sm:$0x8]
  %vm269 = vcmask 1043459
  %v270 = vsel %vm269, %v268, %v266
  %s271 = scalar_lea.vmem %s0, 280
  %v272 = vld [vmem:[%s271] sm:$0x10]
  %vm273 = vcmask 1044484
  %v274 = vsel %vm273, %v272, %v270
  %s275 = scalar_lea.vmem %s0, 343
  %v276 = vld [vmem:[%s275] sm:$0x20]
  %vm277 = vcmask 1045509
  %v278 = vsel %vm277, %v276, %v274
  %s279 = scalar_lea.vmem %s0, 406
  %v280 = vld [vmem:[%s279] sm:$0x40]
  %vm281 = vcmask 1046534
  %v282 = vsel %vm281, %v280, %v278
  %s283 = scalar_lea.vmem %s0, 53
  %v284 = vld [vmem:[%s283] sm:$0x80]
  %vm285 = vcmask 1047559
  %v286 = vsel %vm285, %v284, %v282
  %287 = vrot.lane.b32.xlu0 %v286, 112
  %v288 = vpop.permute.xlu0 %287
  %vm289 = vcmask 950144
  %290 = vst.msk [vmem:[%s1] sm:$0x7f] %vm289, %v288
  %s291 = scalar_lea.vmem %s1, 1
  %292 = vst.msk [vmem:[%s291] sm:$0x80] %vm289, %v288
  %s293 = scalar_lea.vmem %s0, 124
  %v294 = vld [vmem:[%s293] sm:$0x1]
  %s295 = scalar_lea.vmem %s0, 187
  %v296 = vld [vmem:[%s295] sm:$0x2]
  %vm297 = vcmask 1041409
  %v298 = vsel %vm297, %v296, %v294
  %s299 = scalar_lea.vmem %s0, 250
  %v300 = vld [vmem:[%s299] sm:$0x4]
  %vm301 = vcmask 1042434
  %v302 = vsel %vm301, %v300, %v298
  %s303 = scalar_lea.vmem %s0, 313
  %v304 = vld [vmem:[%s303] sm:$0x8]
  %vm305 = vcmask 1043459
  %v306 = vsel %vm305, %v304, %v302
  %s307 = scalar_lea.vmem %s0, 376
  %v308 = vld [vmem:[%s307] sm:$0x10]
  %vm309 = vcmask 1044484
  %v310 = vsel %vm309, %v308, %v306
  %s311 = scalar_lea.vmem %s0, 439
  %v312 = vld [vmem:[%s311] sm:$0x20]
  %vm313 = vcmask 1045509
  %v314 = vsel %vm313, %v312, %v310
  %315 = vrot.lane.b32.xlu0 %v314, 112
  %v316 = vpop.permute.xlu0 %315
  %vm317 = vcmask 950144
  %s318 = scalar_lea.vmem %s1, 9
  %319 = vst.msk [vmem:[%s318] sm:$0x3f] %vm317, %v316
  %s320 = scalar_lea.vmem %s0, 27
  %v321 = vld [vmem:[%s320] sm:$0x1]
  %s322 = scalar_lea.vmem %s0, 90
  %v323 = vld [vmem:[%s322] sm:$0x2]
  %vm324 = vcmask 1041409
  %v325 = vsel %vm324, %v323, %v321
  %s326 = scalar_lea.vmem %s0, 153
  %v327 = vld [vmem:[%s326] sm:$0x4]
  %vm328 = vcmask 1042434
  %v329 = vsel %vm328, %v327, %v325
  %s330 = scalar_lea.vmem %s0, 216
  %v331 = vld [vmem:[%s330] sm:$0x8]
  %vm332 = vcmask 1043459
  %v333 = vsel %vm332, %v331, %v329
  %s334 = scalar_lea.vmem %s0, 279
  %v335 = vld [vmem:[%s334] sm:$0x10]
  %vm336 = vcmask 1044484
  %v337 = vsel %vm336, %v335, %v333
  %s338 = scalar_lea.vmem %s0, 342
  %v339 = vld [vmem:[%s338] sm:$0x20]
  %vm340 = vcmask 1045509
  %v341 = vsel %vm340, %v339, %v337
  %s342 = scalar_lea.vmem %s0, 405
  %v343 = vld [vmem:[%s342] sm:$0x40]
  %vm344 = vcmask 1046534
  %v345 = vsel %vm344, %v343, %v341
  %s346 = scalar_lea.vmem %s0, 52
  %v347 = vld [vmem:[%s346] sm:$0x80]
  %vm348 = vcmask 1047559
  %v349 = vsel %vm348, %v347, %v345
  %350 = vrot.lane.b32.xlu0 %v349, 108
  %v351 = vpop.permute.xlu0 %350
  %vm352 = vcmask 917344
  %353 = vst.msk [vmem:[%s1] sm:$0x7f] %vm352, %v351
  %s354 = scalar_lea.vmem %s1, 1
  %355 = vst.msk [vmem:[%s354] sm:$0x80] %vm352, %v351
  %s356 = scalar_lea.vmem %s0, 123
  %v357 = vld [vmem:[%s356] sm:$0x1]
  %s358 = scalar_lea.vmem %s0, 186
  %v359 = vld [vmem:[%s358] sm:$0x2]
  %vm360 = vcmask 1041409
  %v361 = vsel %vm360, %v359, %v357
  %s362 = scalar_lea.vmem %s0, 249
  %v363 = vld [vmem:[%s362] sm:$0x4]
  %vm364 = vcmask 1042434
  %v365 = vsel %vm364, %v363, %v361
  %s366 = scalar_lea.vmem %s0, 312
  %v367 = vld [vmem:[%s366] sm:$0x8]
  %vm368 = vcmask 1043459
  %v369 = vsel %vm368, %v367, %v365
  %s370 = scalar_lea.vmem %s0, 375
  %v371 = vld [vmem:[%s370] sm:$0x10]
  %vm372 = vcmask 1044484
  %v373 = vsel %vm372, %v371, %v369
  %s374 = scalar_lea.vmem %s0, 438
  %v375 = vld [vmem:[%s374] sm:$0x20]
  %vm376 = vcmask 1045509
  %v377 = vsel %vm376, %v375, %v373
  %378 = vrot.lane.b32.xlu0 %v377, 108
  %v379 = vpop.permute.xlu0 %378
  %vm380 = vcmask 917344
  %s381 = scalar_lea.vmem %s1, 9
  %382 = vst.msk [vmem:[%s381] sm:$0x3f] %vm380, %v379
  %s383 = scalar_lea.vmem %s0, 26
  %v384 = vld [vmem:[%s383] sm:$0x1]
  %s385 = scalar_lea.vmem %s0, 89
  %v386 = vld [vmem:[%s385] sm:$0x2]
  %vm387 = vcmask 1041409
  %v388 = vsel %vm387, %v386, %v384
  %s389 = scalar_lea.vmem %s0, 152
  %v390 = vld [vmem:[%s389] sm:$0x4]
  %vm391 = vcmask 1042434
  %v392 = vsel %vm391, %v390, %v388
  %s393 = scalar_lea.vmem %s0, 215
  %v394 = vld [vmem:[%s393] sm:$0x8]
  %vm395 = vcmask 1043459
  %v396 = vsel %vm395, %v394, %v392
  %s397 = scalar_lea.vmem %s0, 278
  %v398 = vld [vmem:[%s397] sm:$0x10]
  %vm399 = vcmask 1044484
  %v400 = vsel %vm399, %v398, %v396
  %s401 = scalar_lea.vmem %s0, 341
  %v402 = vld [vmem:[%s401] sm:$0x20]
  %vm403 = vcmask 1045509
  %v404 = vsel %vm403, %v402, %v400
  %s405 = scalar_lea.vmem %s0, 404
  %v406 = vld [vmem:[%s405] sm:$0x40]
  %vm407 = vcmask 1046534
  %v408 = vsel %vm407, %v406, %v404
  %s409 = scalar_lea.vmem %s0, 51
  %v410 = vld [vmem:[%s409] sm:$0x80]
  %vm411 = vcmask 1047559
  %v412 = vsel %vm411, %v410, %v408
  %413 = vrot.lane.b32.xlu0 %v412, 104
  %v414 = vpop.permute.xlu0 %413
  %vm415 = vcmask 884544
  %416 = vst.msk [vmem:[%s1] sm:$0x7f] %vm415, %v414
  %s417 = scalar_lea.vmem %s1, 1
  %418 = vst.msk [vmem:[%s417] sm:$0x80] %vm415, %v414
  %s419 = scalar_lea.vmem %s0, 122
  %v420 = vld [vmem:[%s419] sm:$0x1]
  %s421 = scalar_lea.vmem %s0, 185
  %v422 = vld [vmem:[%s421] sm:$0x2]
  %vm423 = vcmask 1041409
  %v424 = vsel %vm423, %v422, %v420
  %s425 = scalar_lea.vmem %s0, 248
  %v426 = vld [vmem:[%s425] sm:$0x4]
  %vm427 = vcmask 1042434
  %v428 = vsel %vm427, %v426, %v424
  %s429 = scalar_lea.vmem %s0, 311
  %v430 = vld [vmem:[%s429] sm:$0x8]
  %vm431 = vcmask 1043459
  %v432 = vsel %vm431, %v430, %v428
  %s433 = scalar_lea.vmem %s0, 374
  %v434 = vld [vmem:[%s433] sm:$0x10]
  %vm435 = vcmask 1044484
  %v436 = vsel %vm435, %v434, %v432
  %s437 = scalar_lea.vmem %s0, 437
  %v438 = vld [vmem:[%s437] sm:$0x20]
  %vm439 = vcmask 1045509
  %v440 = vsel %vm439, %v438, %v436
  %441 = vrot.lane.b32.xlu0 %v440, 104
  %v442 = vpop.permute.xlu0 %441
  %vm443 = vcmask 884544
  %s444 = scalar_lea.vmem %s1, 9
  %445 = vst.msk [vmem:[%s444] sm:$0x3f] %vm443, %v442
  %s446 = scalar_lea.vmem %s0, 25
  %v447 = vld [vmem:[%s446] sm:$0x1]
  %s448 = scalar_lea.vmem %s0, 88
  %v449 = vld [vmem:[%s448] sm:$0x2]
  %vm450 = vcmask 1041409
  %v451 = vsel %vm450, %v449, %v447
  %s452 = scalar_lea.vmem %s0, 151
  %v453 = vld [vmem:[%s452] sm:$0x4]
  %vm454 = vcmask 1042434
  %v455 = vsel %vm454, %v453, %v451
  %s456 = scalar_lea.vmem %s0, 214
  %v457 = vld [vmem:[%s456] sm:$0x8]
  %vm458 = vcmask 1043459
  %v459 = vsel %vm458, %v457, %v455
  %s460 = scalar_lea.vmem %s0, 277
  %v461 = vld [vmem:[%s460] sm:$0x10]
  %vm462 = vcmask 1044484
  %v463 = vsel %vm462, %v461, %v459
  %s464 = scalar_lea.vmem %s0, 340
  %v465 = vld [vmem:[%s464] sm:$0x20]
  %vm466 = vcmask 1045509
  %v467 = vsel %vm466, %v465, %v463
  %s468 = scalar_lea.vmem %s0, 403
  %v469 = vld [vmem:[%s468] sm:$0x40]
  %vm470 = vcmask 1046534
  %v471 = vsel %vm470, %v469, %v467
  %s472 = scalar_lea.vmem %s0, 50
  %v473 = vld [vmem:[%s472] sm:$0x80]
  %vm474 = vcmask 1047559
  %v475 = vsel %vm474, %v473, %v471
  %476 = vrot.lane.b32.xlu0 %v475, 100
  %v477 = vpop.permute.xlu0 %476
  %vm478 = vcmask 851744
  %479 = vst.msk [vmem:[%s1] sm:$0x7f] %vm478, %v477
  %s480 = scalar_lea.vmem %s1, 1
  %481 = vst.msk [vmem:[%s480] sm:$0x80] %vm478, %v477
  %s482 = scalar_lea.vmem %s0, 121
  %v483 = vld [vmem:[%s482] sm:$0x1]
  %s484 = scalar_lea.vmem %s0, 184
  %v485 = vld [vmem:[%s484] sm:$0x2]
  %vm486 = vcmask 1041409
  %v487 = vsel %vm486, %v485, %v483
  %s488 = scalar_lea.vmem %s0, 247
  %v489 = vld [vmem:[%s488] sm:$0x4]
  %vm490 = vcmask 1042434
  %v491 = vsel %vm490, %v489, %v487
  %s492 = scalar_lea.vmem %s0, 310
  %v493 = vld [vmem:[%s492] sm:$0x8]
  %vm494 = vcmask 1043459
  %v495 = vsel %vm494, %v493, %v491
  %s496 = scalar_lea.vmem %s0, 373
  %v497 = vld [vmem:[%s496] sm:$0x10]
  %vm498 = vcmask 1044484
  %v499 = vsel %vm498, %v497, %v495
  %s500 = scalar_lea.vmem %s0, 436
  %v501 = vld [vmem:[%s500] sm:$0x20]
  %vm502 = vcmask 1045509
  %v503 = vsel %vm502, %v501, %v499
  %504 = vrot.lane.b32.xlu0 %v503, 100
  %v505 = vpop.permute.xlu0 %504
  %vm506 = vcmask 851744
  %s507 = scalar_lea.vmem %s1, 9
  %508 = vst.msk [vmem:[%s507] sm:$0x3f] %vm506, %v505
  %s509 = scalar_lea.vmem %s0, 24
  %v510 = vld [vmem:[%s509] sm:$0x1]
  %s511 = scalar_lea.vmem %s0, 87
  %v512 = vld [vmem:[%s511] sm:$0x2]
  %vm513 = vcmask 1041409
  %v514 = vsel %vm513, %v512, %v510
  %s515 = scalar_lea.vmem %s0, 150
  %v516 = vld [vmem:[%s515] sm:$0x4]
  %vm517 = vcmask 1042434
  %v518 = vsel %vm517, %v516, %v514
  %s519 = scalar_lea.vmem %s0, 213
  %v520 = vld [vmem:[%s519] sm:$0x8]
  %vm521 = vcmask 1043459
  %v522 = vsel %vm521, %v520, %v518
  %s523 = scalar_lea.vmem %s0, 276
  %v524 = vld [vmem:[%s523] sm:$0x10]
  %vm525 = vcmask 1044484
  %v526 = vsel %vm525, %v524, %v522
  %s527 = scalar_lea.vmem %s0, 339
  %v528 = vld [vmem:[%s527] sm:$0x20]
  %vm529 = vcmask 1045509
  %v530 = vsel %vm529, %v528, %v526
  %s531 = scalar_lea.vmem %s0, 402
  %v532 = vld [vmem:[%s531] sm:$0x40]
  %vm533 = vcmask 1046534
  %v534 = vsel %vm533, %v532, %v530
  %s535 = scalar_lea.vmem %s0, 49
  %v536 = vld [vmem:[%s535] sm:$0x80]
  %vm537 = vcmask 1047559
  %v538 = vsel %vm537, %v536, %v534
  %539 = vrot.lane.b32.xlu0 %v538, 96
  %v540 = vpop.permute.xlu0 %539
  %vm541 = vcmask 818944
  %542 = vst.msk [vmem:[%s1] sm:$0x7f] %vm541, %v540
  %s543 = scalar_lea.vmem %s1, 1
  %544 = vst.msk [vmem:[%s543] sm:$0x80] %vm541, %v540
  %s545 = scalar_lea.vmem %s0, 120
  %v546 = vld [vmem:[%s545] sm:$0x1]
  %s547 = scalar_lea.vmem %s0, 183
  %v548 = vld [vmem:[%s547] sm:$0x2]
  %vm549 = vcmask 1041409
  %v550 = vsel %vm549, %v548, %v546
  %s551 = scalar_lea.vmem %s0, 246
  %v552 = vld [vmem:[%s551] sm:$0x4]
  %vm553 = vcmask 1042434
  %v554 = vsel %vm553, %v552, %v550
  %s555 = scalar_lea.vmem %s0, 309
  %v556 = vld [vmem:[%s555] sm:$0x8]
  %vm557 = vcmask 1043459
  %v558 = vsel %vm557, %v556, %v554
  %s559 = scalar_lea.vmem %s0, 372
  %v560 = vld [vmem:[%s559] sm:$0x10]
  %vm561 = vcmask 1044484
  %v562 = vsel %vm561, %v560, %v558
  %s563 = scalar_lea.vmem %s0, 435
  %v564 = vld [vmem:[%s563] sm:$0x20]
  %vm565 = vcmask 1045509
  %v566 = vsel %vm565, %v564, %v562
  %567 = vrot.lane.b32.xlu0 %v566, 96
  %v568 = vpop.permute.xlu0 %567
  %vm569 = vcmask 818944
  %s570 = scalar_lea.vmem %s1, 9
  %571 = vst.msk [vmem:[%s570] sm:$0x3f] %vm569, %v568
  %s572 = scalar_lea.vmem %s0, 23
  %v573 = vld [vmem:[%s572] sm:$0x1]
  %s574 = scalar_lea.vmem %s0, 86
  %v575 = vld [vmem:[%s574] sm:$0x2]
  %vm576 = vcmask 1041409
  %v577 = vsel %vm576, %v575, %v573
  %s578 = scalar_lea.vmem %s0, 149
  %v579 = vld [vmem:[%s578] sm:$0x4]
  %vm580 = vcmask 1042434
  %v581 = vsel %vm580, %v579, %v577
  %s582 = scalar_lea.vmem %s0, 212
  %v583 = vld [vmem:[%s582] sm:$0x8]
  %vm584 = vcmask 1043459
  %v585 = vsel %vm584, %v583, %v581
  %s586 = scalar_lea.vmem %s0, 275
  %v587 = vld [vmem:[%s586] sm:$0x10]
  %vm588 = vcmask 1044484
  %v589 = vsel %vm588, %v587, %v585
  %s590 = scalar_lea.vmem %s0, 338
  %v591 = vld [vmem:[%s590] sm:$0x20]
  %vm592 = vcmask 1045509
  %v593 = vsel %vm592, %v591, %v589
  %s594 = scalar_lea.vmem %s0, 401
  %v595 = vld [vmem:[%s594] sm:$0x40]
  %vm596 = vcmask 1046534
  %v597 = vsel %vm596, %v595, %v593
  %s598 = scalar_lea.vmem %s0, 48
  %v599 = vld [vmem:[%s598] sm:$0x80]
  %vm600 = vcmask 1047559
  %v601 = vsel %vm600, %v599, %v597
  %602 = vrot.lane.b32.xlu0 %v601, 92
  %v603 = vpop.permute.xlu0 %602
  %vm604 = vcmask 786144
  %605 = vst.msk [vmem:[%s1] sm:$0x7f] %vm604, %v603
  %s606 = scalar_lea.vmem %s1, 1
  %607 = vst.msk [vmem:[%s606] sm:$0x80] %vm604, %v603
  %s608 = scalar_lea.vmem %s0, 119
  %v609 = vld [vmem:[%s608] sm:$0x1]
  %s610 = scalar_lea.vmem %s0, 182
  %v611 = vld [vmem:[%s610] sm:$0x2]
  %vm612 = vcmask 1041409
  %v613 = vsel %vm612, %v611, %v609
  %s614 = scalar_lea.vmem %s0, 245
  %v615 = vld [vmem:[%s614] sm:$0x4]
  %vm616 = vcmask 1042434
  %v617 = vsel %vm616, %v615, %v613
  %s618 = scalar_lea.vmem %s0, 308
  %v619 = vld [vmem:[%s618] sm:$0x8]
  %vm620 = vcmask 1043459
  %v621 = vsel %vm620, %v619, %v617
  %s622 = scalar_lea.vmem %s0, 371
  %v623 = vld [vmem:[%s622] sm:$0x10]
  %vm624 = vcmask 1044484
  %v625 = vsel %vm624, %v623, %v621
  %s626 = scalar_lea.vmem %s0, 434
  %v627 = vld [vmem:[%s626] sm:$0x20]
  %vm628 = vcmask 1045509
  %v629 = vsel %vm628, %v627, %v625
  %630 = vrot.lane.b32.xlu0 %v629, 92
  %v631 = vpop.permute.xlu0 %630
  %vm632 = vcmask 786144
  %s633 = scalar_lea.vmem %s1, 9
  %634 = vst.msk [vmem:[%s633] sm:$0x3f] %vm632, %v631
  %s635 = scalar_lea.vmem %s0, 22
  %v636 = vld [vmem:[%s635] sm:$0x1]
  %s637 = scalar_lea.vmem %s0, 85
  %v638 = vld [vmem:[%s637] sm:$0x2]
  %vm639 = vcmask 1041409
  %v640 = vsel %vm639, %v638, %v636
  %s641 = scalar_lea.vmem %s0, 148
  %v642 = vld [vmem:[%s641] sm:$0x4]
  %vm643 = vcmask 1042434
  %v644 = vsel %vm643, %v642, %v640
  %s645 = scalar_lea.vmem %s0, 211
  %v646 = vld [vmem:[%s645] sm:$0x8]
  %vm647 = vcmask 1043459
  %v648 = vsel %vm647, %v646, %v644
  %s649 = scalar_lea.vmem %s0, 274
  %v650 = vld [vmem:[%s649] sm:$0x10]
  %vm651 = vcmask 1044484
  %v652 = vsel %vm651, %v650, %v648
  %s653 = scalar_lea.vmem %s0, 337
  %v654 = vld [vmem:[%s653] sm:$0x20]
  %vm655 = vcmask 1045509
  %v656 = vsel %vm655, %v654, %v652
  %s657 = scalar_lea.vmem %s0, 400
  %v658 = vld [vmem:[%s657] sm:$0x40]
  %vm659 = vcmask 1046534
  %v660 = vsel %vm659, %v658, %v656
  %s661 = scalar_lea.vmem %s0, 47
  %v662 = vld [vmem:[%s661] sm:$0x80]
  %vm663 = vcmask 1047559
  %v664 = vsel %vm663, %v662, %v660
  %665 = vrot.lane.b32.xlu0 %v664, 88
  %v666 = vpop.permute.xlu0 %665
  %vm667 = vcmask 753344
  %668 = vst.msk [vmem:[%s1] sm:$0x7f] %vm667, %v666
  %s669 = scalar_lea.vmem %s1, 1
  %670 = vst.msk [vmem:[%s669] sm:$0x80] %vm667, %v666
  %s671 = scalar_lea.vmem %s0, 118
  %v672 = vld [vmem:[%s671] sm:$0x1]
  %s673 = scalar_lea.vmem %s0, 181
  %v674 = vld [vmem:[%s673] sm:$0x2]
  %vm675 = vcmask 1041409
  %v676 = vsel %vm675, %v674, %v672
  %s677 = scalar_lea.vmem %s0, 244
  %v678 = vld [vmem:[%s677] sm:$0x4]
  %vm679 = vcmask 1042434
  %v680 = vsel %vm679, %v678, %v676
  %s681 = scalar_lea.vmem %s0, 307
  %v682 = vld [vmem:[%s681] sm:$0x8]
  %vm683 = vcmask 1043459
  %v684 = vsel %vm683, %v682, %v680
  %s685 = scalar_lea.vmem %s0, 370
  %v686 = vld [vmem:[%s685] sm:$0x10]
  %vm687 = vcmask 1044484
  %v688 = vsel %vm687, %v686, %v684
  %s689 = scalar_lea.vmem %s0, 433
  %v690 = vld [vmem:[%s689] sm:$0x20]
  %vm691 = vcmask 1045509
  %v692 = vsel %vm691, %v690, %v688
  %693 = vrot.lane.b32.xlu0 %v692, 88
  %v694 = vpop.permute.xlu0 %693
  %vm695 = vcmask 753344
  %s696 = scalar_lea.vmem %s1, 9
  %697 = vst.msk [vmem:[%s696] sm:$0x3f] %vm695, %v694
  %s698 = scalar_lea.vmem %s0, 21
  %v699 = vld [vmem:[%s698] sm:$0x1]
  %s700 = scalar_lea.vmem %s0, 84
  %v701 = vld [vmem:[%s700] sm:$0x2]
  %vm702 = vcmask 1041409
  %v703 = vsel %vm702, %v701, %v699
  %s704 = scalar_lea.vmem %s0, 147
  %v705 = vld [vmem:[%s704] sm:$0x4]
  %vm706 = vcmask 1042434
  %v707 = vsel %vm706, %v705, %v703
  %s708 = scalar_lea.vmem %s0, 210
  %v709 = vld [vmem:[%s708] sm:$0x8]
  %vm710 = vcmask 1043459
  %v711 = vsel %vm710, %v709, %v707
  %s712 = scalar_lea.vmem %s0, 273
  %v713 = vld [vmem:[%s712] sm:$0x10]
  %vm714 = vcmask 1044484
  %v715 = vsel %vm714, %v713, %v711
  %s716 = scalar_lea.vmem %s0, 336
  %v717 = vld [vmem:[%s716] sm:$0x20]
  %vm718 = vcmask 1045509
  %v719 = vsel %vm718, %v717, %v715
  %s720 = scalar_lea.vmem %s0, 399
  %v721 = vld [vmem:[%s720] sm:$0x40]
  %vm722 = vcmask 1046534
  %v723 = vsel %vm722, %v721, %v719
  %s724 = scalar_lea.vmem %s0, 46
  %v725 = vld [vmem:[%s724] sm:$0x80]
  %vm726 = vcmask 1047559
  %v727 = vsel %vm726, %v725, %v723
  %728 = vrot.lane.b32.xlu0 %v727, 84
  %v729 = vpop.permute.xlu0 %728
  %vm730 = vcmask 720544
  %731 = vst.msk [vmem:[%s1] sm:$0x7f] %vm730, %v729
  %s732 = scalar_lea.vmem %s1, 1
  %733 = vst.msk [vmem:[%s732] sm:$0x80] %vm730, %v729
  %s734 = scalar_lea.vmem %s0, 117
  %v735 = vld [vmem:[%s734] sm:$0x1]
  %s736 = scalar_lea.vmem %s0, 180
  %v737 = vld [vmem:[%s736] sm:$0x2]
  %vm738 = vcmask 1041409
  %v739 = vsel %vm738, %v737, %v735
  %s740 = scalar_lea.vmem %s0, 243
  %v741 = vld [vmem:[%s740] sm:$0x4]
  %vm742 = vcmask 1042434
  %v743 = vsel %vm742, %v741, %v739
  %s744 = scalar_lea.vmem %s0, 306
  %v745 = vld [vmem:[%s744] sm:$0x8]
  %vm746 = vcmask 1043459
  %v747 = vsel %vm746, %v745, %v743
  %s748 = scalar_lea.vmem %s0, 369
  %v749 = vld [vmem:[%s748] sm:$0x10]
  %vm750 = vcmask 1044484
  %v751 = vsel %vm750, %v749, %v747
  %s752 = scalar_lea.vmem %s0, 432
  %v753 = vld [vmem:[%s752] sm:$0x20]
  %vm754 = vcmask 1045509
  %v755 = vsel %vm754, %v753, %v751
  %756 = vrot.lane.b32.xlu0 %v755, 84
  %v757 = vpop.permute.xlu0 %756
  %vm758 = vcmask 720544
  %s759 = scalar_lea.vmem %s1, 9
  %760 = vst.msk [vmem:[%s759] sm:$0x3f] %vm758, %v757
  %s761 = scalar_lea.vmem %s0, 20
  %v762 = vld [vmem:[%s761] sm:$0x1]
  %s763 = scalar_lea.vmem %s0, 83
  %v764 = vld [vmem:[%s763] sm:$0x2]
  %vm765 = vcmask 1041409
  %v766 = vsel %vm765, %v764, %v762
  %s767 = scalar_lea.vmem %s0, 146
  %v768 = vld [vmem:[%s767] sm:$0x4]
  %vm769 = vcmask 1042434
  %v770 = vsel %vm769, %v768, %v766
  %s771 = scalar_lea.vmem %s0, 209
  %v772 = vld [vmem:[%s771] sm:$0x8]
  %vm773 = vcmask 1043459
  %v774 = vsel %vm773, %v772, %v770
  %s775 = scalar_lea.vmem %s0, 272
  %v776 = vld [vmem:[%s775] sm:$0x10]
  %vm777 = vcmask 1044484
  %v778 = vsel %vm777, %v776, %v774
  %s779 = scalar_lea.vmem %s0, 335
  %v780 = vld [vmem:[%s779] sm:$0x20]
  %vm781 = vcmask 1045509
  %v782 = vsel %vm781, %v780, %v778
  %s783 = scalar_lea.vmem %s0, 398
  %v784 = vld [vmem:[%s783] sm:$0x40]
  %vm785 = vcmask 1046534
  %v786 = vsel %vm785, %v784, %v782
  %s787 = scalar_lea.vmem %s0, 45
  %v788 = vld [vmem:[%s787] sm:$0x80]
  %vm789 = vcmask 1047559
  %v790 = vsel %vm789, %v788, %v786
  %791 = vrot.lane.b32.xlu0 %v790, 80
  %v792 = vpop.permute.xlu0 %791
  %vm793 = vcmask 687744
  %794 = vst.msk [vmem:[%s1] sm:$0x7f] %vm793, %v792
  %s795 = scalar_lea.vmem %s1, 1
  %796 = vst.msk [vmem:[%s795] sm:$0x80] %vm793, %v792
  %s797 = scalar_lea.vmem %s0, 116
  %v798 = vld [vmem:[%s797] sm:$0x1]
  %s799 = scalar_lea.vmem %s0, 179
  %v800 = vld [vmem:[%s799] sm:$0x2]
  %vm801 = vcmask 1041409
  %v802 = vsel %vm801, %v800, %v798
  %s803 = scalar_lea.vmem %s0, 242
  %v804 = vld [vmem:[%s803] sm:$0x4]
  %vm805 = vcmask 1042434
  %v806 = vsel %vm805, %v804, %v802
  %s807 = scalar_lea.vmem %s0, 305
  %v808 = vld [vmem:[%s807] sm:$0x8]
  %vm809 = vcmask 1043459
  %v810 = vsel %vm809, %v808, %v806
  %s811 = scalar_lea.vmem %s0, 368
  %v812 = vld [vmem:[%s811] sm:$0x10]
  %vm813 = vcmask 1044484
  %v814 = vsel %vm813, %v812, %v810
  %s815 = scalar_lea.vmem %s0, 431
  %v816 = vld [vmem:[%s815] sm:$0x20]
  %vm817 = vcmask 1045509
  %v818 = vsel %vm817, %v816, %v814
  %819 = vrot.lane.b32.xlu0 %v818, 80
  %v820 = vpop.permute.xlu0 %819
  %vm821 = vcmask 687744
  %s822 = scalar_lea.vmem %s1, 9
  %823 = vst.msk [vmem:[%s822] sm:$0x3f] %vm821, %v820
  %s824 = scalar_lea.vmem %s0, 19
  %v825 = vld [vmem:[%s824] sm:$0x1]
  %s826 = scalar_lea.vmem %s0, 82
  %v827 = vld [vmem:[%s826] sm:$0x2]
  %vm828 = vcmask 1041409
  %v829 = vsel %vm828, %v827, %v825
  %s830 = scalar_lea.vmem %s0, 145
  %v831 = vld [vmem:[%s830] sm:$0x4]
  %vm832 = vcmask 1042434
  %v833 = vsel %vm832, %v831, %v829
  %s834 = scalar_lea.vmem %s0, 208
  %v835 = vld [vmem:[%s834] sm:$0x8]
  %vm836 = vcmask 1043459
  %v837 = vsel %vm836, %v835, %v833
  %s838 = scalar_lea.vmem %s0, 271
  %v839 = vld [vmem:[%s838] sm:$0x10]
  %vm840 = vcmask 1044484
  %v841 = vsel %vm840, %v839, %v837
  %s842 = scalar_lea.vmem %s0, 334
  %v843 = vld [vmem:[%s842] sm:$0x20]
  %vm844 = vcmask 1045509
  %v845 = vsel %vm844, %v843, %v841
  %s846 = scalar_lea.vmem %s0, 397
  %v847 = vld [vmem:[%s846] sm:$0x40]
  %vm848 = vcmask 1046534
  %v849 = vsel %vm848, %v847, %v845
  %s850 = scalar_lea.vmem %s0, 44
  %v851 = vld [vmem:[%s850] sm:$0x80]
  %vm852 = vcmask 1047559
  %v853 = vsel %vm852, %v851, %v849
  %854 = vrot.lane.b32.xlu0 %v853, 76
  %v855 = vpop.permute.xlu0 %854
  %vm856 = vcmask 654944
  %857 = vst.msk [vmem:[%s1] sm:$0x7f] %vm856, %v855
  %s858 = scalar_lea.vmem %s1, 1
  %859 = vst.msk [vmem:[%s858] sm:$0x80] %vm856, %v855
  %s860 = scalar_lea.vmem %s0, 115
  %v861 = vld [vmem:[%s860] sm:$0x1]
  %s862 = scalar_lea.vmem %s0, 178
  %v863 = vld [vmem:[%s862] sm:$0x2]
  %vm864 = vcmask 1041409
  %v865 = vsel %vm864, %v863, %v861
  %s866 = scalar_lea.vmem %s0, 241
  %v867 = vld [vmem:[%s866] sm:$0x4]
  %vm868 = vcmask 1042434
  %v869 = vsel %vm868, %v867, %v865
  %s870 = scalar_lea.vmem %s0, 304
  %v871 = vld [vmem:[%s870] sm:$0x8]
  %vm872 = vcmask 1043459
  %v873 = vsel %vm872, %v871, %v869
  %s874 = scalar_lea.vmem %s0, 367
  %v875 = vld [vmem:[%s874] sm:$0x10]
  %vm876 = vcmask 1044484
  %v877 = vsel %vm876, %v875, %v873
  %s878 = scalar_lea.vmem %s0, 430
  %v879 = vld [vmem:[%s878] sm:$0x20]
  %vm880 = vcmask 1045509
  %v881 = vsel %vm880, %v879, %v877
  %882 = vrot.lane.b32.xlu0 %v881, 76
  %v883 = vpop.permute.xlu0 %882
  %vm884 = vcmask 654944
  %s885 = scalar_lea.vmem %s1, 9
  %886 = vst.msk [vmem:[%s885] sm:$0x3f] %vm884, %v883
  %s887 = scalar_lea.vmem %s0, 18
  %v888 = vld [vmem:[%s887] sm:$0x1]
  %s889 = scalar_lea.vmem %s0, 81
  %v890 = vld [vmem:[%s889] sm:$0x2]
  %vm891 = vcmask 1041409
  %v892 = vsel %vm891, %v890, %v888
  %s893 = scalar_lea.vmem %s0, 144
  %v894 = vld [vmem:[%s893] sm:$0x4]
  %vm895 = vcmask 1042434
  %v896 = vsel %vm895, %v894, %v892
  %s897 = scalar_lea.vmem %s0, 207
  %v898 = vld [vmem:[%s897] sm:$0x8]
  %vm899 = vcmask 1043459
  %v900 = vsel %vm899, %v898, %v896
  %s901 = scalar_lea.vmem %s0, 270
  %v902 = vld [vmem:[%s901] sm:$0x10]
  %vm903 = vcmask 1044484
  %v904 = vsel %vm903, %v902, %v900
  %s905 = scalar_lea.vmem %s0, 333
  %v906 = vld [vmem:[%s905] sm:$0x20]
  %vm907 = vcmask 1045509
  %v908 = vsel %vm907, %v906, %v904
  %s909 = scalar_lea.vmem %s0, 396
  %v910 = vld [vmem:[%s909] sm:$0x40]
  %vm911 = vcmask 1046534
  %v912 = vsel %vm911, %v910, %v908
  %s913 = scalar_lea.vmem %s0, 43
  %v914 = vld [vmem:[%s913] sm:$0x80]
  %vm915 = vcmask 1047559
  %v916 = vsel %vm915, %v914, %v912
  %917 = vrot.lane.b32.xlu0 %v916, 72
  %v918 = vpop.permute.xlu0 %917
  %vm919 = vcmask 622144
  %920 = vst.msk [vmem:[%s1] sm:$0x7f] %vm919, %v918
  %s921 = scalar_lea.vmem %s1, 1
  %922 = vst.msk [vmem:[%s921] sm:$0x80] %vm919, %v918
  %s923 = scalar_lea.vmem %s0, 114
  %v924 = vld [vmem:[%s923] sm:$0x1]
  %s925 = scalar_lea.vmem %s0, 177
  %v926 = vld [vmem:[%s925] sm:$0x2]
  %vm927 = vcmask 1041409
  %v928 = vsel %vm927, %v926, %v924
  %s929 = scalar_lea.vmem %s0, 240
  %v930 = vld [vmem:[%s929] sm:$0x4]
  %vm931 = vcmask 1042434
  %v932 = vsel %vm931, %v930, %v928
  %s933 = scalar_lea.vmem %s0, 303
  %v934 = vld [vmem:[%s933] sm:$0x8]
  %vm935 = vcmask 1043459
  %v936 = vsel %vm935, %v934, %v932
  %s937 = scalar_lea.vmem %s0, 366
  %v938 = vld [vmem:[%s937] sm:$0x10]
  %vm939 = vcmask 1044484
  %v940 = vsel %vm939, %v938, %v936
  %s941 = scalar_lea.vmem %s0, 429
  %v942 = vld [vmem:[%s941] sm:$0x20]
  %vm943 = vcmask 1045509
  %v944 = vsel %vm943, %v942, %v940
  %945 = vrot.lane.b32.xlu0 %v944, 72
  %v946 = vpop.permute.xlu0 %945
  %vm947 = vcmask 622144
  %s948 = scalar_lea.vmem %s1, 9
  %949 = vst.msk [vmem:[%s948] sm:$0x3f] %vm947, %v946
  %s950 = scalar_lea.vmem %s0, 17
  %v951 = vld [vmem:[%s950] sm:$0x1]
  %s952 = scalar_lea.vmem %s0, 80
  %v953 = vld [vmem:[%s952] sm:$0x2]
  %vm954 = vcmask 1041409
  %v955 = vsel %vm954, %v953, %v951
  %s956 = scalar_lea.vmem %s0, 143
  %v957 = vld [vmem:[%s956] sm:$0x4]
  %vm958 = vcmask 1042434
  %v959 = vsel %vm958, %v957, %v955
  %s960 = scalar_lea.vmem %s0, 206
  %v961 = vld [vmem:[%s960] sm:$0x8]
  %vm962 = vcmask 1043459
  %v963 = vsel %vm962, %v961, %v959
  %s964 = scalar_lea.vmem %s0, 269
  %v965 = vld [vmem:[%s964] sm:$0x10]
  %vm966 = vcmask 1044484
  %v967 = vsel %vm966, %v965, %v963
  %s968 = scalar_lea.vmem %s0, 332
  %v969 = vld [vmem:[%s968] sm:$0x20]
  %vm970 = vcmask 1045509
  %v971 = vsel %vm970, %v969, %v967
  %s972 = scalar_lea.vmem %s0, 395
  %v973 = vld [vmem:[%s972] sm:$0x40]
  %vm974 = vcmask 1046534
  %v975 = vsel %vm974, %v973, %v971
  %s976 = scalar_lea.vmem %s0, 42
  %v977 = vld [vmem:[%s976] sm:$0x80]
  %vm978 = vcmask 1047559
  %v979 = vsel %vm978, %v977, %v975
  %980 = vrot.lane.b32.xlu0 %v979, 68
  %v981 = vpop.permute.xlu0 %980
  %vm982 = vcmask 589344
  %983 = vst.msk [vmem:[%s1] sm:$0x7f] %vm982, %v981
  %s984 = scalar_lea.vmem %s1, 1
  %985 = vst.msk [vmem:[%s984] sm:$0x80] %vm982, %v981
  %s986 = scalar_lea.vmem %s0, 113
  %v987 = vld [vmem:[%s986] sm:$0x1]
  %s988 = scalar_lea.vmem %s0, 176
  %v989 = vld [vmem:[%s988] sm:$0x2]
  %vm990 = vcmask 1041409
  %v991 = vsel %vm990, %v989, %v987
  %s992 = scalar_lea.vmem %s0, 239
  %v993 = vld [vmem:[%s992] sm:$0x4]
  %vm994 = vcmask 1042434
  %v995 = vsel %vm994, %v993, %v991
  %s996 = scalar_lea.vmem %s0, 302
  %v997 = vld [vmem:[%s996] sm:$0x8]
  %vm998 = vcmask 1043459
  %v999 = vsel %vm998, %v997, %v995
  %s1000 = scalar_lea.vmem %s0, 365
  %v1001 = vld [vmem:[%s1000] sm:$0x10]
  %vm1002 = vcmask 1044484
  %v1003 = vsel %vm1002, %v1001, %v999
  %s1004 = scalar_lea.vmem %s0, 428
  %v1005 = vld [vmem:[%s1004] sm:$0x20]
  %vm1006 = vcmask 1045509
  %v1007 = vsel %vm1006, %v1005, %v1003
  %1008 = vrot.lane.b32.xlu0 %v1007, 68
  %v1009 = vpop.permute.xlu0 %1008
  %vm1010 = vcmask 589344
  %s1011 = scalar_lea.vmem %s1, 9
  %1012 = vst.msk [vmem:[%s1011] sm:$0x3f] %vm1010, %v1009
  %s1013 = scalar_lea.vmem %s0, 16
  %v1014 = vld [vmem:[%s1013] sm:$0x1]
  %s1015 = scalar_lea.vmem %s0, 79
  %v1016 = vld [vmem:[%s1015] sm:$0x2]
  %vm1017 = vcmask 1041409
  %v1018 = vsel %vm1017, %v1016, %v1014
  %s1019 = scalar_lea.vmem %s0, 142
  %v1020 = vld [vmem:[%s1019] sm:$0x4]
  %vm1021 = vcmask 1042434
  %v1022 = vsel %vm1021, %v1020, %v1018
  %s1023 = scalar_lea.vmem %s0, 205
  %v1024 = vld [vmem:[%s1023] sm:$0x8]
  %vm1025 = vcmask 1043459
  %v1026 = vsel %vm1025, %v1024, %v1022
  %s1027 = scalar_lea.vmem %s0, 268
  %v1028 = vld [vmem:[%s1027] sm:$0x10]
  %vm1029 = vcmask 1044484
  %v1030 = vsel %vm1029, %v1028, %v1026
  %s1031 = scalar_lea.vmem %s0, 331
  %v1032 = vld [vmem:[%s1031] sm:$0x20]
  %vm1033 = vcmask 1045509
  %v1034 = vsel %vm1033, %v1032, %v1030
  %s1035 = scalar_lea.vmem %s0, 394
  %v1036 = vld [vmem:[%s1035] sm:$0x40]
  %vm1037 = vcmask 1046534
  %v1038 = vsel %vm1037, %v1036, %v1034
  %s1039 = scalar_lea.vmem %s0, 41
  %v1040 = vld [vmem:[%s1039] sm:$0x80]
  %vm1041 = vcmask 1047559
  %v1042 = vsel %vm1041, %v1040, %v1038
  %1043 = vrot.lane.b32.xlu0 %v1042, 64
  %v1044 = vpop.permute.xlu0 %1043
  %vm1045 = vcmask 556544
  %1046 = vst.msk [vmem:[%s1] sm:$0x7f] %vm1045, %v1044
  %s1047 = scalar_lea.vmem %s1, 1
  %1048 = vst.msk [vmem:[%s1047] sm:$0x80] %vm1045, %v1044
  %s1049 = scalar_lea.vmem %s0, 112
  %v1050 = vld [vmem:[%s1049] sm:$0x1]
  %s1051 = scalar_lea.vmem %s0, 175
  %v1052 = vld [vmem:[%s1051] sm:$0x2]
  %vm1053 = vcmask 1041409
  %v1054 = vsel %vm1053, %v1052, %v1050
  %s1055 = scalar_lea.vmem %s0, 238
  %v1056 = vld [vmem:[%s1055] sm:$0x4]
  %vm1057 = vcmask 1042434
  %v1058 = vsel %vm1057, %v1056, %v1054
  %s1059 = scalar_lea.vmem %s0, 301
  %v1060 = vld [vmem:[%s1059] sm:$0x8]
  %vm1061 = vcmask 1043459
  %v1062 = vsel %vm1061, %v1060, %v1058
  %s1063 = scalar_lea.vmem %s0, 364
  %v1064 = vld [vmem:[%s1063] sm:$0x10]
  %vm1065 = vcmask 1044484
  %v1066 = vsel %vm1065, %v1064, %v1062
  %s1067 = scalar_lea.vmem %s0, 427
  %v1068 = vld [vmem:[%s1067] sm:$0x20]
  %vm1069 = vcmask 1045509
  %v1070 = vsel %vm1069, %v1068, %v1066
  %1071 = vrot.lane.b32.xlu0 %v1070, 64
  %v1072 = vpop.permute.xlu0 %1071
  %vm1073 = vcmask 556544
  %s1074 = scalar_lea.vmem %s1, 9
  %1075 = vst.msk [vmem:[%s1074] sm:$0x3f] %vm1073, %v1072
  %s1076 = scalar_lea.vmem %s0, 15
  %v1077 = vld [vmem:[%s1076] sm:$0x1]
  %s1078 = scalar_lea.vmem %s0, 78
  %v1079 = vld [vmem:[%s1078] sm:$0x2]
  %vm1080 = vcmask 1041409
  %v1081 = vsel %vm1080, %v1079, %v1077
  %s1082 = scalar_lea.vmem %s0, 141
  %v1083 = vld [vmem:[%s1082] sm:$0x4]
  %vm1084 = vcmask 1042434
  %v1085 = vsel %vm1084, %v1083, %v1081
  %s1086 = scalar_lea.vmem %s0, 204
  %v1087 = vld [vmem:[%s1086] sm:$0x8]
  %vm1088 = vcmask 1043459
  %v1089 = vsel %vm1088, %v1087, %v1085
  %s1090 = scalar_lea.vmem %s0, 267
  %v1091 = vld [vmem:[%s1090] sm:$0x10]
  %vm1092 = vcmask 1044484
  %v1093 = vsel %vm1092, %v1091, %v1089
  %s1094 = scalar_lea.vmem %s0, 330
  %v1095 = vld [vmem:[%s1094] sm:$0x20]
  %vm1096 = vcmask 1045509
  %v1097 = vsel %vm1096, %v1095, %v1093
  %s1098 = scalar_lea.vmem %s0, 393
  %v1099 = vld [vmem:[%s1098] sm:$0x40]
  %vm1100 = vcmask 1046534
  %v1101 = vsel %vm1100, %v1099, %v1097
  %s1102 = scalar_lea.vmem %s0, 40
  %v1103 = vld [vmem:[%s1102] sm:$0x80]
  %vm1104 = vcmask 1047559
  %v1105 = vsel %vm1104, %v1103, %v1101
  %1106 = vrot.lane.b32.xlu0 %v1105, 60
  %v1107 = vpop.permute.xlu0 %1106
  %vm1108 = vcmask 523744
  %1109 = vst.msk [vmem:[%s1] sm:$0x7f] %vm1108, %v1107
  %s1110 = scalar_lea.vmem %s1, 1
  %1111 = vst.msk [vmem:[%s1110] sm:$0x80] %vm1108, %v1107
  %s1112 = scalar_lea.vmem %s0, 111
  %v1113 = vld [vmem:[%s1112] sm:$0x1]
  %s1114 = scalar_lea.vmem %s0, 174
  %v1115 = vld [vmem:[%s1114] sm:$0x2]
  %vm1116 = vcmask 1041409
  %v1117 = vsel %vm1116, %v1115, %v1113
  %s1118 = scalar_lea.vmem %s0, 237
  %v1119 = vld [vmem:[%s1118] sm:$0x4]
  %vm1120 = vcmask 1042434
  %v1121 = vsel %vm1120, %v1119, %v1117
  %s1122 = scalar_lea.vmem %s0, 300
  %v1123 = vld [vmem:[%s1122] sm:$0x8]
  %vm1124 = vcmask 1043459
  %v1125 = vsel %vm1124, %v1123, %v1121
  %s1126 = scalar_lea.vmem %s0, 363
  %v1127 = vld [vmem:[%s1126] sm:$0x10]
  %vm1128 = vcmask 1044484
  %v1129 = vsel %vm1128, %v1127, %v1125
  %s1130 = scalar_lea.vmem %s0, 426
  %v1131 = vld [vmem:[%s1130] sm:$0x20]
  %vm1132 = vcmask 1045509
  %v1133 = vsel %vm1132, %v1131, %v1129
  %1134 = vrot.lane.b32.xlu0 %v1133, 60
  %v1135 = vpop.permute.xlu0 %1134
  %vm1136 = vcmask 523744
  %s1137 = scalar_lea.vmem %s1, 9
  %1138 = vst.msk [vmem:[%s1137] sm:$0x3f] %vm1136, %v1135
  %s1139 = scalar_lea.vmem %s0, 14
  %v1140 = vld [vmem:[%s1139] sm:$0x1]
  %s1141 = scalar_lea.vmem %s0, 77
  %v1142 = vld [vmem:[%s1141] sm:$0x2]
  %vm1143 = vcmask 1041409
  %v1144 = vsel %vm1143, %v1142, %v1140
  %s1145 = scalar_lea.vmem %s0, 140
  %v1146 = vld [vmem:[%s1145] sm:$0x4]
  %vm1147 = vcmask 1042434
  %v1148 = vsel %vm1147, %v1146, %v1144
  %s1149 = scalar_lea.vmem %s0, 203
  %v1150 = vld [vmem:[%s1149] sm:$0x8]
  %vm1151 = vcmask 1043459
  %v1152 = vsel %vm1151, %v1150, %v1148
  %s1153 = scalar_lea.vmem %s0, 266
  %v1154 = vld [vmem:[%s1153] sm:$0x10]
  %vm1155 = vcmask 1044484
  %v1156 = vsel %vm1155, %v1154, %v1152
  %s1157 = scalar_lea.vmem %s0, 329
  %v1158 = vld [vmem:[%s1157] sm:$0x20]
  %vm1159 = vcmask 1045509
  %v1160 = vsel %vm1159, %v1158, %v1156
  %s1161 = scalar_lea.vmem %s0, 392
  %v1162 = vld [vmem:[%s1161] sm:$0x40]
  %vm1163 = vcmask 1046534
  %v1164 = vsel %vm1163, %v1162, %v1160
  %s1165 = scalar_lea.vmem %s0, 39
  %v1166 = vld [vmem:[%s1165] sm:$0x80]
  %vm1167 = vcmask 1047559
  %v1168 = vsel %vm1167, %v1166, %v1164
  %1169 = vrot.lane.b32.xlu0 %v1168, 56
  %v1170 = vpop.permute.xlu0 %1169
  %vm1171 = vcmask 490944
  %1172 = vst.msk [vmem:[%s1] sm:$0x7f] %vm1171, %v1170
  %s1173 = scalar_lea.vmem %s1, 1
  %1174 = vst.msk [vmem:[%s1173] sm:$0x80] %vm1171, %v1170
  %s1175 = scalar_lea.vmem %s0, 110
  %v1176 = vld [vmem:[%s1175] sm:$0x1]
  %s1177 = scalar_lea.vmem %s0, 173
  %v1178 = vld [vmem:[%s1177] sm:$0x2]
  %vm1179 = vcmask 1041409
  %v1180 = vsel %vm1179, %v1178, %v1176
  %s1181 = scalar_lea.vmem %s0, 236
  %v1182 = vld [vmem:[%s1181] sm:$0x4]
  %vm1183 = vcmask 1042434
  %v1184 = vsel %vm1183, %v1182, %v1180
  %s1185 = scalar_lea.vmem %s0, 299
  %v1186 = vld [vmem:[%s1185] sm:$0x8]
  %vm1187 = vcmask 1043459
  %v1188 = vsel %vm1187, %v1186, %v1184
  %s1189 = scalar_lea.vmem %s0, 362
  %v1190 = vld [vmem:[%s1189] sm:$0x10]
  %vm1191 = vcmask 1044484
  %v1192 = vsel %vm1191, %v1190, %v1188
  %s1193 = scalar_lea.vmem %s0, 425
  %v1194 = vld [vmem:[%s1193] sm:$0x20]
  %vm1195 = vcmask 1045509
  %v1196 = vsel %vm1195, %v1194, %v1192
  %1197 = vrot.lane.b32.xlu0 %v1196, 56
  %v1198 = vpop.permute.xlu0 %1197
  %vm1199 = vcmask 490944
  %s1200 = scalar_lea.vmem %s1, 9
  %1201 = vst.msk [vmem:[%s1200] sm:$0x3f] %vm1199, %v1198
  %s1202 = scalar_lea.vmem %s0, 13
  %v1203 = vld [vmem:[%s1202] sm:$0x1]
  %s1204 = scalar_lea.vmem %s0, 76
  %v1205 = vld [vmem:[%s1204] sm:$0x2]
  %vm1206 = vcmask 1041409
  %v1207 = vsel %vm1206, %v1205, %v1203
  %s1208 = scalar_lea.vmem %s0, 139
  %v1209 = vld [vmem:[%s1208] sm:$0x4]
  %vm1210 = vcmask 1042434
  %v1211 = vsel %vm1210, %v1209, %v1207
  %s1212 = scalar_lea.vmem %s0, 202
  %v1213 = vld [vmem:[%s1212] sm:$0x8]
  %vm1214 = vcmask 1043459
  %v1215 = vsel %vm1214, %v1213, %v1211
  %s1216 = scalar_lea.vmem %s0, 265
  %v1217 = vld [vmem:[%s1216] sm:$0x10]
  %vm1218 = vcmask 1044484
  %v1219 = vsel %vm1218, %v1217, %v1215
  %s1220 = scalar_lea.vmem %s0, 328
  %v1221 = vld [vmem:[%s1220] sm:$0x20]
  %vm1222 = vcmask 1045509
  %v1223 = vsel %vm1222, %v1221, %v1219
  %s1224 = scalar_lea.vmem %s0, 391
  %v1225 = vld [vmem:[%s1224] sm:$0x40]
  %vm1226 = vcmask 1046534
  %v1227 = vsel %vm1226, %v1225, %v1223
  %s1228 = scalar_lea.vmem %s0, 38
  %v1229 = vld [vmem:[%s1228] sm:$0x80]
  %vm1230 = vcmask 1047559
  %v1231 = vsel %vm1230, %v1229, %v1227
  %1232 = vrot.lane.b32.xlu0 %v1231, 52
  %v1233 = vpop.permute.xlu0 %1232
  %vm1234 = vcmask 458144
  %1235 = vst.msk [vmem:[%s1] sm:$0x7f] %vm1234, %v1233
  %s1236 = scalar_lea.vmem %s1, 1
  %1237 = vst.msk [vmem:[%s1236] sm:$0x80] %vm1234, %v1233
  %s1238 = scalar_lea.vmem %s0, 109
  %v1239 = vld [vmem:[%s1238] sm:$0x1]
  %s1240 = scalar_lea.vmem %s0, 172
  %v1241 = vld [vmem:[%s1240] sm:$0x2]
  %vm1242 = vcmask 1041409
  %v1243 = vsel %vm1242, %v1241, %v1239
  %s1244 = scalar_lea.vmem %s0, 235
  %v1245 = vld [vmem:[%s1244] sm:$0x4]
  %vm1246 = vcmask 1042434
  %v1247 = vsel %vm1246, %v1245, %v1243
  %s1248 = scalar_lea.vmem %s0, 298
  %v1249 = vld [vmem:[%s1248] sm:$0x8]
  %vm1250 = vcmask 1043459
  %v1251 = vsel %vm1250, %v1249, %v1247
  %s1252 = scalar_lea.vmem %s0, 361
  %v1253 = vld [vmem:[%s1252] sm:$0x10]
  %vm1254 = vcmask 1044484
  %v1255 = vsel %vm1254, %v1253, %v1251
  %s1256 = scalar_lea.vmem %s0, 424
  %v1257 = vld [vmem:[%s1256] sm:$0x20]
  %vm1258 = vcmask 1045509
  %v1259 = vsel %vm1258, %v1257, %v1255
  %1260 = vrot.lane.b32.xlu0 %v1259, 52
  %v1261 = vpop.permute.xlu0 %1260
  %vm1262 = vcmask 458144
  %s1263 = scalar_lea.vmem %s1, 9
  %1264 = vst.msk [vmem:[%s1263] sm:$0x3f] %vm1262, %v1261
  %s1265 = scalar_lea.vmem %s0, 12
  %v1266 = vld [vmem:[%s1265] sm:$0x1]
  %s1267 = scalar_lea.vmem %s0, 75
  %v1268 = vld [vmem:[%s1267] sm:$0x2]
  %vm1269 = vcmask 1041409
  %v1270 = vsel %vm1269, %v1268, %v1266
  %s1271 = scalar_lea.vmem %s0, 138
  %v1272 = vld [vmem:[%s1271] sm:$0x4]
  %vm1273 = vcmask 1042434
  %v1274 = vsel %vm1273, %v1272, %v1270
  %s1275 = scalar_lea.vmem %s0, 201
  %v1276 = vld [vmem:[%s1275] sm:$0x8]
  %vm1277 = vcmask 1043459
  %v1278 = vsel %vm1277, %v1276, %v1274
  %s1279 = scalar_lea.vmem %s0, 264
  %v1280 = vld [vmem:[%s1279] sm:$0x10]
  %vm1281 = vcmask 1044484
  %v1282 = vsel %vm1281, %v1280, %v1278
  %s1283 = scalar_lea.vmem %s0, 327
  %v1284 = vld [vmem:[%s1283] sm:$0x20]
  %vm1285 = vcmask 1045509
  %v1286 = vsel %vm1285, %v1284, %v1282
  %s1287 = scalar_lea.vmem %s0, 390
  %v1288 = vld [vmem:[%s1287] sm:$0x40]
  %vm1289 = vcmask 1046534
  %v1290 = vsel %vm1289, %v1288, %v1286
  %s1291 = scalar_lea.vmem %s0, 37
  %v1292 = vld [vmem:[%s1291] sm:$0x80]
  %vm1293 = vcmask 1047559
  %v1294 = vsel %vm1293, %v1292, %v1290
  %1295 = vrot.lane.b32.xlu0 %v1294, 48
  %v1296 = vpop.permute.xlu0 %1295
  %vm1297 = vcmask 425344
  %1298 = vst.msk [vmem:[%s1] sm:$0x7f] %vm1297, %v1296
  %s1299 = scalar_lea.vmem %s1, 1
  %1300 = vst.msk [vmem:[%s1299] sm:$0x80] %vm1297, %v1296
  %s1301 = scalar_lea.vmem %s0, 108
  %v1302 = vld [vmem:[%s1301] sm:$0x1]
  %s1303 = scalar_lea.vmem %s0, 171
  %v1304 = vld [vmem:[%s1303] sm:$0x2]
  %vm1305 = vcmask 1041409
  %v1306 = vsel %vm1305, %v1304, %v1302
  %s1307 = scalar_lea.vmem %s0, 234
  %v1308 = vld [vmem:[%s1307] sm:$0x4]
  %vm1309 = vcmask 1042434
  %v1310 = vsel %vm1309, %v1308, %v1306
  %s1311 = scalar_lea.vmem %s0, 297
  %v1312 = vld [vmem:[%s1311] sm:$0x8]
  %vm1313 = vcmask 1043459
  %v1314 = vsel %vm1313, %v1312, %v1310
  %s1315 = scalar_lea.vmem %s0, 360
  %v1316 = vld [vmem:[%s1315] sm:$0x10]
  %vm1317 = vcmask 1044484
  %v1318 = vsel %vm1317, %v1316, %v1314
  %s1319 = scalar_lea.vmem %s0, 423
  %v1320 = vld [vmem:[%s1319] sm:$0x20]
  %vm1321 = vcmask 1045509
  %v1322 = vsel %vm1321, %v1320, %v1318
  %1323 = vrot.lane.b32.xlu0 %v1322, 48
  %v1324 = vpop.permute.xlu0 %1323
  %vm1325 = vcmask 425344
  %s1326 = scalar_lea.vmem %s1, 9
  %1327 = vst.msk [vmem:[%s1326] sm:$0x3f] %vm1325, %v1324
  %s1328 = scalar_lea.vmem %s0, 11
  %v1329 = vld [vmem:[%s1328] sm:$0x1]
  %s1330 = scalar_lea.vmem %s0, 74
  %v1331 = vld [vmem:[%s1330] sm:$0x2]
  %vm1332 = vcmask 1041409
  %v1333 = vsel %vm1332, %v1331, %v1329
  %s1334 = scalar_lea.vmem %s0, 137
  %v1335 = vld [vmem:[%s1334] sm:$0x4]
  %vm1336 = vcmask 1042434
  %v1337 = vsel %vm1336, %v1335, %v1333
  %s1338 = scalar_lea.vmem %s0, 200
  %v1339 = vld [vmem:[%s1338] sm:$0x8]
  %vm1340 = vcmask 1043459
  %v1341 = vsel %vm1340, %v1339, %v1337
  %s1342 = scalar_lea.vmem %s0, 263
  %v1343 = vld [vmem:[%s1342] sm:$0x10]
  %vm1344 = vcmask 1044484
  %v1345 = vsel %vm1344, %v1343, %v1341
  %s1346 = scalar_lea.vmem %s0, 326
  %v1347 = vld [vmem:[%s1346] sm:$0x20]
  %vm1348 = vcmask 1045509
  %v1349 = vsel %vm1348, %v1347, %v1345
  %s1350 = scalar_lea.vmem %s0, 389
  %v1351 = vld [vmem:[%s1350] sm:$0x40]
  %vm1352 = vcmask 1046534
  %v1353 = vsel %vm1352, %v1351, %v1349
  %s1354 = scalar_lea.vmem %s0, 36
  %v1355 = vld [vmem:[%s1354] sm:$0x80]
  %vm1356 = vcmask 1047559
  %v1357 = vsel %vm1356, %v1355, %v1353
  %1358 = vrot.lane.b32.xlu0 %v1357, 44
  %v1359 = vpop.permute.xlu0 %1358
  %vm1360 = vcmask 392544
  %1361 = vst.msk [vmem:[%s1] sm:$0x7f] %vm1360, %v1359
  %s1362 = scalar_lea.vmem %s1, 1
  %1363 = vst.msk [vmem:[%s1362] sm:$0x80] %vm1360, %v1359
  %s1364 = scalar_lea.vmem %s0, 107
  %v1365 = vld [vmem:[%s1364] sm:$0x1]
  %s1366 = scalar_lea.vmem %s0, 170
  %v1367 = vld [vmem:[%s1366] sm:$0x2]
  %vm1368 = vcmask 1041409
  %v1369 = vsel %vm1368, %v1367, %v1365
  %s1370 = scalar_lea.vmem %s0, 233
  %v1371 = vld [vmem:[%s1370] sm:$0x4]
  %vm1372 = vcmask 1042434
  %v1373 = vsel %vm1372, %v1371, %v1369
  %s1374 = scalar_lea.vmem %s0, 296
  %v1375 = vld [vmem:[%s1374] sm:$0x8]
  %vm1376 = vcmask 1043459
  %v1377 = vsel %vm1376, %v1375, %v1373
  %s1378 = scalar_lea.vmem %s0, 359
  %v1379 = vld [vmem:[%s1378] sm:$0x10]
  %vm1380 = vcmask 1044484
  %v1381 = vsel %vm1380, %v1379, %v1377
  %s1382 = scalar_lea.vmem %s0, 422
  %v1383 = vld [vmem:[%s1382] sm:$0x20]
  %vm1384 = vcmask 1045509
  %v1385 = vsel %vm1384, %v1383, %v1381
  %1386 = vrot.lane.b32.xlu0 %v1385, 44
  %v1387 = vpop.permute.xlu0 %1386
  %vm1388 = vcmask 392544
  %s1389 = scalar_lea.vmem %s1, 9
  %1390 = vst.msk [vmem:[%s1389] sm:$0x3f] %vm1388, %v1387
  %s1391 = scalar_lea.vmem %s0, 10
  %v1392 = vld [vmem:[%s1391] sm:$0x1]
  %s1393 = scalar_lea.vmem %s0, 73
  %v1394 = vld [vmem:[%s1393] sm:$0x2]
  %vm1395 = vcmask 1041409
  %v1396 = vsel %vm1395, %v1394, %v1392
  %s1397 = scalar_lea.vmem %s0, 136
  %v1398 = vld [vmem:[%s1397] sm:$0x4]
  %vm1399 = vcmask 1042434
  %v1400 = vsel %vm1399, %v1398, %v1396
  %s1401 = scalar_lea.vmem %s0, 199
  %v1402 = vld [vmem:[%s1401] sm:$0x8]
  %vm1403 = vcmask 1043459
  %v1404 = vsel %vm1403, %v1402, %v1400
  %s1405 = scalar_lea.vmem %s0, 262
  %v1406 = vld [vmem:[%s1405] sm:$0x10]
  %vm1407 = vcmask 1044484
  %v1408 = vsel %vm1407, %v1406, %v1404
  %s1409 = scalar_lea.vmem %s0, 325
  %v1410 = vld [vmem:[%s1409] sm:$0x20]
  %vm1411 = vcmask 1045509
  %v1412 = vsel %vm1411, %v1410, %v1408
  %s1413 = scalar_lea.vmem %s0, 388
  %v1414 = vld [vmem:[%s1413] sm:$0x40]
  %vm1415 = vcmask 1046534
  %v1416 = vsel %vm1415, %v1414, %v1412
  %s1417 = scalar_lea.vmem %s0, 35
  %v1418 = vld [vmem:[%s1417] sm:$0x80]
  %vm1419 = vcmask 1047559
  %v1420 = vsel %vm1419, %v1418, %v1416
  %1421 = vrot.lane.b32.xlu0 %v1420, 40
  %v1422 = vpop.permute.xlu0 %1421
  %vm1423 = vcmask 359744
  %1424 = vst.msk [vmem:[%s1] sm:$0x7f] %vm1423, %v1422
  %s1425 = scalar_lea.vmem %s1, 1
  %1426 = vst.msk [vmem:[%s1425] sm:$0x80] %vm1423, %v1422
  %s1427 = scalar_lea.vmem %s0, 106
  %v1428 = vld [vmem:[%s1427] sm:$0x1]
  %s1429 = scalar_lea.vmem %s0, 169
  %v1430 = vld [vmem:[%s1429] sm:$0x2]
  %vm1431 = vcmask 1041409
  %v1432 = vsel %vm1431, %v1430, %v1428
  %s1433 = scalar_lea.vmem %s0, 232
  %v1434 = vld [vmem:[%s1433] sm:$0x4]
  %vm1435 = vcmask 1042434
  %v1436 = vsel %vm1435, %v1434, %v1432
  %s1437 = scalar_lea.vmem %s0, 295
  %v1438 = vld [vmem:[%s1437] sm:$0x8]
  %vm1439 = vcmask 1043459
  %v1440 = vsel %vm1439, %v1438, %v1436
  %s1441 = scalar_lea.vmem %s0, 358
  %v1442 = vld [vmem:[%s1441] sm:$0x10]
  %vm1443 = vcmask 1044484
  %v1444 = vsel %vm1443, %v1442, %v1440
  %s1445 = scalar_lea.vmem %s0, 421
  %v1446 = vld [vmem:[%s1445] sm:$0x20]
  %vm1447 = vcmask 1045509
  %v1448 = vsel %vm1447, %v1446, %v1444
  %1449 = vrot.lane.b32.xlu0 %v1448, 40
  %v1450 = vpop.permute.xlu0 %1449
  %vm1451 = vcmask 359744
  %s1452 = scalar_lea.vmem %s1, 9
  %1453 = vst.msk [vmem:[%s1452] sm:$0x3f] %vm1451, %v1450
  %s1454 = scalar_lea.vmem %s0, 9
  %v1455 = vld [vmem:[%s1454] sm:$0x1]
  %s1456 = scalar_lea.vmem %s0, 72
  %v1457 = vld [vmem:[%s1456] sm:$0x2]
  %vm1458 = vcmask 1041409
  %v1459 = vsel %vm1458, %v1457, %v1455
  %s1460 = scalar_lea.vmem %s0, 135
  %v1461 = vld [vmem:[%s1460] sm:$0x4]
  %vm1462 = vcmask 1042434
  %v1463 = vsel %vm1462, %v1461, %v1459
  %s1464 = scalar_lea.vmem %s0, 198
  %v1465 = vld [vmem:[%s1464] sm:$0x8]
  %vm1466 = vcmask 1043459
  %v1467 = vsel %vm1466, %v1465, %v1463
  %s1468 = scalar_lea.vmem %s0, 261
  %v1469 = vld [vmem:[%s1468] sm:$0x10]
  %vm1470 = vcmask 1044484
  %v1471 = vsel %vm1470, %v1469, %v1467
  %s1472 = scalar_lea.vmem %s0, 324
  %v1473 = vld [vmem:[%s1472] sm:$0x20]
  %vm1474 = vcmask 1045509
  %v1475 = vsel %vm1474, %v1473, %v1471
  %s1476 = scalar_lea.vmem %s0, 387
  %v1477 = vld [vmem:[%s1476] sm:$0x40]
  %vm1478 = vcmask 1046534
  %v1479 = vsel %vm1478, %v1477, %v1475
  %s1480 = scalar_lea.vmem %s0, 34
  %v1481 = vld [vmem:[%s1480] sm:$0x80]
  %vm1482 = vcmask 1047559
  %v1483 = vsel %vm1482, %v1481, %v1479
  %1484 = vrot.lane.b32.xlu0 %v1483, 36
  %v1485 = vpop.permute.xlu0 %1484
  %vm1486 = vcmask 326944
  %1487 = vst.msk [vmem:[%s1] sm:$0x7f] %vm1486, %v1485
  %s1488 = scalar_lea.vmem %s1, 1
  %1489 = vst.msk [vmem:[%s1488] sm:$0x80] %vm1486, %v1485
  %s1490 = scalar_lea.vmem %s0, 105
  %v1491 = vld [vmem:[%s1490] sm:$0x1]
  %s1492 = scalar_lea.vmem %s0, 168
  %v1493 = vld [vmem:[%s1492] sm:$0x2]
  %vm1494 = vcmask 1041409
  %v1495 = vsel %vm1494, %v1493, %v1491
  %s1496 = scalar_lea.vmem %s0, 231
  %v1497 = vld [vmem:[%s1496] sm:$0x4]
  %vm1498 = vcmask 1042434
  %v1499 = vsel %vm1498, %v1497, %v1495
  %s1500 = scalar_lea.vmem %s0, 294
  %v1501 = vld [vmem:[%s1500] sm:$0x8]
  %vm1502 = vcmask 1043459
  %v1503 = vsel %vm1502, %v1501, %v1499
  %s1504 = scalar_lea.vmem %s0, 357
  %v1505 = vld [vmem:[%s1504] sm:$0x10]
  %vm1506 = vcmask 1044484
  %v1507 = vsel %vm1506, %v1505, %v1503
  %s1508 = scalar_lea.vmem %s0, 420
  %v1509 = vld [vmem:[%s1508] sm:$0x20]
  %vm1510 = vcmask 1045509
  %v1511 = vsel %vm1510, %v1509, %v1507
  %1512 = vrot.lane.b32.xlu0 %v1511, 36
  %v1513 = vpop.permute.xlu0 %1512
  %vm1514 = vcmask 326944
  %s1515 = scalar_lea.vmem %s1, 9
  %1516 = vst.msk [vmem:[%s1515] sm:$0x3f] %vm1514, %v1513
  %s1517 = scalar_lea.vmem %s0, 8
  %v1518 = vld [vmem:[%s1517] sm:$0x1]
  %s1519 = scalar_lea.vmem %s0, 71
  %v1520 = vld [vmem:[%s1519] sm:$0x2]
  %vm1521 = vcmask 1041409
  %v1522 = vsel %vm1521, %v1520, %v1518
  %s1523 = scalar_lea.vmem %s0, 134
  %v1524 = vld [vmem:[%s1523] sm:$0x4]
  %vm1525 = vcmask 1042434
  %v1526 = vsel %vm1525, %v1524, %v1522
  %s1527 = scalar_lea.vmem %s0, 197
  %v1528 = vld [vmem:[%s1527] sm:$0x8]
  %vm1529 = vcmask 1043459
  %v1530 = vsel %vm1529, %v1528, %v1526
  %s1531 = scalar_lea.vmem %s0, 260
  %v1532 = vld [vmem:[%s1531] sm:$0x10]
  %vm1533 = vcmask 1044484
  %v1534 = vsel %vm1533, %v1532, %v1530
  %s1535 = scalar_lea.vmem %s0, 323
  %v1536 = vld [vmem:[%s1535] sm:$0x20]
  %vm1537 = vcmask 1045509
  %v1538 = vsel %vm1537, %v1536, %v1534
  %s1539 = scalar_lea.vmem %s0, 386
  %v1540 = vld [vmem:[%s1539] sm:$0x40]
  %vm1541 = vcmask 1046534
  %v1542 = vsel %vm1541, %v1540, %v1538
  %s1543 = scalar_lea.vmem %s0, 33
  %v1544 = vld [vmem:[%s1543] sm:$0x80]
  %vm1545 = vcmask 1047559
  %v1546 = vsel %vm1545, %v1544, %v1542
  %1547 = vrot.lane.b32.xlu0 %v1546, 32
  %v1548 = vpop.permute.xlu0 %1547
  %vm1549 = vcmask 294144
  %1550 = vst.msk [vmem:[%s1] sm:$0x7f] %vm1549, %v1548
  %s1551 = scalar_lea.vmem %s1, 1
  %1552 = vst.msk [vmem:[%s1551] sm:$0x80] %vm1549, %v1548
  %s1553 = scalar_lea.vmem %s0, 104
  %v1554 = vld [vmem:[%s1553] sm:$0x1]
  %s1555 = scalar_lea.vmem %s0, 167
  %v1556 = vld [vmem:[%s1555] sm:$0x2]
  %vm1557 = vcmask 1041409
  %v1558 = vsel %vm1557, %v1556, %v1554
  %s1559 = scalar_lea.vmem %s0, 230
  %v1560 = vld [vmem:[%s1559] sm:$0x4]
  %vm1561 = vcmask 1042434
  %v1562 = vsel %vm1561, %v1560, %v1558
  %s1563 = scalar_lea.vmem %s0, 293
  %v1564 = vld [vmem:[%s1563] sm:$0x8]
  %vm1565 = vcmask 1043459
  %v1566 = vsel %vm1565, %v1564, %v1562
  %s1567 = scalar_lea.vmem %s0, 356
  %v1568 = vld [vmem:[%s1567] sm:$0x10]
  %vm1569 = vcmask 1044484
  %v1570 = vsel %vm1569, %v1568, %v1566
  %s1571 = scalar_lea.vmem %s0, 419
  %v1572 = vld [vmem:[%s1571] sm:$0x20]
  %vm1573 = vcmask 1045509
  %v1574 = vsel %vm1573, %v1572, %v1570
  %1575 = vrot.lane.b32.xlu0 %v1574, 32
  %v1576 = vpop.permute.xlu0 %1575
  %vm1577 = vcmask 294144
  %s1578 = scalar_lea.vmem %s1, 9
  %1579 = vst.msk [vmem:[%s1578] sm:$0x3f] %vm1577, %v1576
  %s1580 = scalar_lea.vmem %s0, 7
  %v1581 = vld [vmem:[%s1580] sm:$0x1]
  %s1582 = scalar_lea.vmem %s0, 70
  %v1583 = vld [vmem:[%s1582] sm:$0x2]
  %vm1584 = vcmask 1041409
  %v1585 = vsel %vm1584, %v1583, %v1581
  %s1586 = scalar_lea.vmem %s0, 133
  %v1587 = vld [vmem:[%s1586] sm:$0x4]
  %vm1588 = vcmask 1042434
  %v1589 = vsel %vm1588, %v1587, %v1585
  %s1590 = scalar_lea.vmem %s0, 196
  %v1591 = vld [vmem:[%s1590] sm:$0x8]
  %vm1592 = vcmask 1043459
  %v1593 = vsel %vm1592, %v1591, %v1589
  %s1594 = scalar_lea.vmem %s0, 259
  %v1595 = vld [vmem:[%s1594] sm:$0x10]
  %vm1596 = vcmask 1044484
  %v1597 = vsel %vm1596, %v1595, %v1593
  %s1598 = scalar_lea.vmem %s0, 322
  %v1599 = vld [vmem:[%s1598] sm:$0x20]
  %vm1600 = vcmask 1045509
  %v1601 = vsel %vm1600, %v1599, %v1597
  %s1602 = scalar_lea.vmem %s0, 385
  %v1603 = vld [vmem:[%s1602] sm:$0x40]
  %vm1604 = vcmask 1046534
  %v1605 = vsel %vm1604, %v1603, %v1601
  %s1606 = scalar_lea.vmem %s0, 32
  %v1607 = vld [vmem:[%s1606] sm:$0x80]
  %vm1608 = vcmask 1047559
  %v1609 = vsel %vm1608, %v1607, %v1605
  %1610 = vrot.lane.b32.xlu0 %v1609, 28
  %v1611 = vpop.permute.xlu0 %1610
  %vm1612 = vcmask 261344
  %1613 = vst.msk [vmem:[%s1] sm:$0x7f] %vm1612, %v1611
  %s1614 = scalar_lea.vmem %s1, 1
  %1615 = vst.msk [vmem:[%s1614] sm:$0x80] %vm1612, %v1611
  %s1616 = scalar_lea.vmem %s0, 103
  %v1617 = vld [vmem:[%s1616] sm:$0x1]
  %s1618 = scalar_lea.vmem %s0, 166
  %v1619 = vld [vmem:[%s1618] sm:$0x2]
  %vm1620 = vcmask 1041409
  %v1621 = vsel %vm1620, %v1619, %v1617
  %s1622 = scalar_lea.vmem %s0, 229
  %v1623 = vld [vmem:[%s1622] sm:$0x4]
  %vm1624 = vcmask 1042434
  %v1625 = vsel %vm1624, %v1623, %v1621
  %s1626 = scalar_lea.vmem %s0, 292
  %v1627 = vld [vmem:[%s1626] sm:$0x8]
  %vm1628 = vcmask 1043459
  %v1629 = vsel %vm1628, %v1627, %v1625
  %s1630 = scalar_lea.vmem %s0, 355
  %v1631 = vld [vmem:[%s1630] sm:$0x10]
  %vm1632 = vcmask 1044484
  %v1633 = vsel %vm1632, %v1631, %v1629
  %s1634 = scalar_lea.vmem %s0, 418
  %v1635 = vld [vmem:[%s1634] sm:$0x20]
  %vm1636 = vcmask 1045509
  %v1637 = vsel %vm1636, %v1635, %v1633
  %1638 = vrot.lane.b32.xlu0 %v1637, 28
  %v1639 = vpop.permute.xlu0 %1638
  %vm1640 = vcmask 261344
  %s1641 = scalar_lea.vmem %s1, 9
  %1642 = vst.msk [vmem:[%s1641] sm:$0x3f] %vm1640, %v1639
  %s1643 = scalar_lea.vmem %s0, 6
  %v1644 = vld [vmem:[%s1643] sm:$0x1]
  %s1645 = scalar_lea.vmem %s0, 69
  %v1646 = vld [vmem:[%s1645] sm:$0x2]
  %vm1647 = vcmask 1041409
  %v1648 = vsel %vm1647, %v1646, %v1644
  %s1649 = scalar_lea.vmem %s0, 132
  %v1650 = vld [vmem:[%s1649] sm:$0x4]
  %vm1651 = vcmask 1042434
  %v1652 = vsel %vm1651, %v1650, %v1648
  %s1653 = scalar_lea.vmem %s0, 195
  %v1654 = vld [vmem:[%s1653] sm:$0x8]
  %vm1655 = vcmask 1043459
  %v1656 = vsel %vm1655, %v1654, %v1652
  %s1657 = scalar_lea.vmem %s0, 258
  %v1658 = vld [vmem:[%s1657] sm:$0x10]
  %vm1659 = vcmask 1044484
  %v1660 = vsel %vm1659, %v1658, %v1656
  %s1661 = scalar_lea.vmem %s0, 321
  %v1662 = vld [vmem:[%s1661] sm:$0x20]
  %vm1663 = vcmask 1045509
  %v1664 = vsel %vm1663, %v1662, %v1660
  %s1665 = scalar_lea.vmem %s0, 384
  %v1666 = vld [vmem:[%s1665] sm:$0x40]
  %vm1667 = vcmask 1046534
  %v1668 = vsel %vm1667, %v1666, %v1664
  %s1669 = scalar_lea.vmem %s0, 31
  %v1670 = vld [vmem:[%s1669] sm:$0x80]
  %vm1671 = vcmask 1047559
  %v1672 = vsel %vm1671, %v1670, %v1668
  %1673 = vrot.lane.b32.xlu0 %v1672, 24
  %v1674 = vpop.permute.xlu0 %1673
  %vm1675 = vcmask 228544
  %1676 = vst.msk [vmem:[%s1] sm:$0x7f] %vm1675, %v1674
  %s1677 = scalar_lea.vmem %s1, 1
  %1678 = vst.msk [vmem:[%s1677] sm:$0x80] %vm1675, %v1674
  %s1679 = scalar_lea.vmem %s0, 102
  %v1680 = vld [vmem:[%s1679] sm:$0x1]
  %s1681 = scalar_lea.vmem %s0, 165
  %v1682 = vld [vmem:[%s1681] sm:$0x2]
  %vm1683 = vcmask 1041409
  %v1684 = vsel %vm1683, %v1682, %v1680
  %s1685 = scalar_lea.vmem %s0, 228
  %v1686 = vld [vmem:[%s1685] sm:$0x4]
  %vm1687 = vcmask 1042434
  %v1688 = vsel %vm1687, %v1686, %v1684
  %s1689 = scalar_lea.vmem %s0, 291
  %v1690 = vld [vmem:[%s1689] sm:$0x8]
  %vm1691 = vcmask 1043459
  %v1692 = vsel %vm1691, %v1690, %v1688
  %s1693 = scalar_lea.vmem %s0, 354
  %v1694 = vld [vmem:[%s1693] sm:$0x10]
  %vm1695 = vcmask 1044484
  %v1696 = vsel %vm1695, %v1694, %v1692
  %s1697 = scalar_lea.vmem %s0, 417
  %v1698 = vld [vmem:[%s1697] sm:$0x20]
  %vm1699 = vcmask 1045509
  %v1700 = vsel %vm1699, %v1698, %v1696
  %1701 = vrot.lane.b32.xlu0 %v1700, 24
  %v1702 = vpop.permute.xlu0 %1701
  %vm1703 = vcmask 228544
  %s1704 = scalar_lea.vmem %s1, 9
  %1705 = vst.msk [vmem:[%s1704] sm:$0x3f] %vm1703, %v1702
  %s1706 = scalar_lea.vmem %s0, 5
  %v1707 = vld [vmem:[%s1706] sm:$0x1]
  %s1708 = scalar_lea.vmem %s0, 68
  %v1709 = vld [vmem:[%s1708] sm:$0x2]
  %vm1710 = vcmask 1041409
  %v1711 = vsel %vm1710, %v1709, %v1707
  %s1712 = scalar_lea.vmem %s0, 131
  %v1713 = vld [vmem:[%s1712] sm:$0x4]
  %vm1714 = vcmask 1042434
  %v1715 = vsel %vm1714, %v1713, %v1711
  %s1716 = scalar_lea.vmem %s0, 194
  %v1717 = vld [vmem:[%s1716] sm:$0x8]
  %vm1718 = vcmask 1043459
  %v1719 = vsel %vm1718, %v1717, %v1715
  %s1720 = scalar_lea.vmem %s0, 257
  %v1721 = vld [vmem:[%s1720] sm:$0x10]
  %vm1722 = vcmask 1044484
  %v1723 = vsel %vm1722, %v1721, %v1719
  %s1724 = scalar_lea.vmem %s0, 320
  %v1725 = vld [vmem:[%s1724] sm:$0x20]
  %vm1726 = vcmask 1045509
  %v1727 = vsel %vm1726, %v1725, %v1723
  %s1728 = scalar_lea.vmem %s0, 383
  %v1729 = vld [vmem:[%s1728] sm:$0x40]
  %vm1730 = vcmask 1046534
  %v1731 = vsel %vm1730, %v1729, %v1727
  %s1732 = scalar_lea.vmem %s0, 30
  %v1733 = vld [vmem:[%s1732] sm:$0x80]
  %vm1734 = vcmask 1047559
  %v1735 = vsel %vm1734, %v1733, %v1731
  %1736 = vrot.lane.b32.xlu0 %v1735, 20
  %v1737 = vpop.permute.xlu0 %1736
  %vm1738 = vcmask 195744
  %1739 = vst.msk [vmem:[%s1] sm:$0x7f] %vm1738, %v1737
  %s1740 = scalar_lea.vmem %s1, 1
  %1741 = vst.msk [vmem:[%s1740] sm:$0x80] %vm1738, %v1737
  %s1742 = scalar_lea.vmem %s0, 101
  %v1743 = vld [vmem:[%s1742] sm:$0x1]
  %s1744 = scalar_lea.vmem %s0, 164
  %v1745 = vld [vmem:[%s1744] sm:$0x2]
  %vm1746 = vcmask 1041409
  %v1747 = vsel %vm1746, %v1745, %v1743
  %s1748 = scalar_lea.vmem %s0, 227
  %v1749 = vld [vmem:[%s1748] sm:$0x4]
  %vm1750 = vcmask 1042434
  %v1751 = vsel %vm1750, %v1749, %v1747
  %s1752 = scalar_lea.vmem %s0, 290
  %v1753 = vld [vmem:[%s1752] sm:$0x8]
  %vm1754 = vcmask 1043459
  %v1755 = vsel %vm1754, %v1753, %v1751
  %s1756 = scalar_lea.vmem %s0, 353
  %v1757 = vld [vmem:[%s1756] sm:$0x10]
  %vm1758 = vcmask 1044484
  %v1759 = vsel %vm1758, %v1757, %v1755
  %s1760 = scalar_lea.vmem %s0, 416
  %v1761 = vld [vmem:[%s1760] sm:$0x20]
  %vm1762 = vcmask 1045509
  %v1763 = vsel %vm1762, %v1761, %v1759
  %1764 = vrot.lane.b32.xlu0 %v1763, 20
  %v1765 = vpop.permute.xlu0 %1764
  %vm1766 = vcmask 195744
  %s1767 = scalar_lea.vmem %s1, 9
  %1768 = vst.msk [vmem:[%s1767] sm:$0x3f] %vm1766, %v1765
  %s1769 = scalar_lea.vmem %s0, 4
  %v1770 = vld [vmem:[%s1769] sm:$0x1]
  %s1771 = scalar_lea.vmem %s0, 67
  %v1772 = vld [vmem:[%s1771] sm:$0x2]
  %vm1773 = vcmask 1041409
  %v1774 = vsel %vm1773, %v1772, %v1770
  %s1775 = scalar_lea.vmem %s0, 130
  %v1776 = vld [vmem:[%s1775] sm:$0x4]
  %vm1777 = vcmask 1042434
  %v1778 = vsel %vm1777, %v1776, %v1774
  %s1779 = scalar_lea.vmem %s0, 193
  %v1780 = vld [vmem:[%s1779] sm:$0x8]
  %vm1781 = vcmask 1043459
  %v1782 = vsel %vm1781, %v1780, %v1778
  %s1783 = scalar_lea.vmem %s0, 256
  %v1784 = vld [vmem:[%s1783] sm:$0x10]
  %vm1785 = vcmask 1044484
  %v1786 = vsel %vm1785, %v1784, %v1782
  %s1787 = scalar_lea.vmem %s0, 319
  %v1788 = vld [vmem:[%s1787] sm:$0x20]
  %vm1789 = vcmask 1045509
  %v1790 = vsel %vm1789, %v1788, %v1786
  %s1791 = scalar_lea.vmem %s0, 382
  %v1792 = vld [vmem:[%s1791] sm:$0x40]
  %vm1793 = vcmask 1046534
  %v1794 = vsel %vm1793, %v1792, %v1790
  %s1795 = scalar_lea.vmem %s0, 29
  %v1796 = vld [vmem:[%s1795] sm:$0x80]
  %vm1797 = vcmask 1047559
  %v1798 = vsel %vm1797, %v1796, %v1794
  %1799 = vrot.lane.b32.xlu0 %v1798, 16
  %v1800 = vpop.permute.xlu0 %1799
  %vm1801 = vcmask 162944
  %1802 = vst.msk [vmem:[%s1] sm:$0x7f] %vm1801, %v1800
  %s1803 = scalar_lea.vmem %s1, 1
  %1804 = vst.msk [vmem:[%s1803] sm:$0x80] %vm1801, %v1800
  %s1805 = scalar_lea.vmem %s0, 100
  %v1806 = vld [vmem:[%s1805] sm:$0x1]
  %s1807 = scalar_lea.vmem %s0, 163
  %v1808 = vld [vmem:[%s1807] sm:$0x2]
  %vm1809 = vcmask 1041409
  %v1810 = vsel %vm1809, %v1808, %v1806
  %s1811 = scalar_lea.vmem %s0, 226
  %v1812 = vld [vmem:[%s1811] sm:$0x4]
  %vm1813 = vcmask 1042434
  %v1814 = vsel %vm1813, %v1812, %v1810
  %s1815 = scalar_lea.vmem %s0, 289
  %v1816 = vld [vmem:[%s1815] sm:$0x8]
  %vm1817 = vcmask 1043459
  %v1818 = vsel %vm1817, %v1816, %v1814
  %s1819 = scalar_lea.vmem %s0, 352
  %v1820 = vld [vmem:[%s1819] sm:$0x10]
  %vm1821 = vcmask 1044484
  %v1822 = vsel %vm1821, %v1820, %v1818
  %s1823 = scalar_lea.vmem %s0, 415
  %v1824 = vld [vmem:[%s1823] sm:$0x20]
  %vm1825 = vcmask 1045509
  %v1826 = vsel %vm1825, %v1824, %v1822
  %1827 = vrot.lane.b32.xlu0 %v1826, 16
  %v1828 = vpop.permute.xlu0 %1827
  %vm1829 = vcmask 162944
  %s1830 = scalar_lea.vmem %s1, 9
  %1831 = vst.msk [vmem:[%s1830] sm:$0x3f] %vm1829, %v1828
  %s1832 = scalar_lea.vmem %s0, 3
  %v1833 = vld [vmem:[%s1832] sm:$0x1]
  %s1834 = scalar_lea.vmem %s0, 66
  %v1835 = vld [vmem:[%s1834] sm:$0x2]
  %vm1836 = vcmask 1041409
  %v1837 = vsel %vm1836, %v1835, %v1833
  %s1838 = scalar_lea.vmem %s0, 129
  %v1839 = vld [vmem:[%s1838] sm:$0x4]
  %vm1840 = vcmask 1042434
  %v1841 = vsel %vm1840, %v1839, %v1837
  %s1842 = scalar_lea.vmem %s0, 192
  %v1843 = vld [vmem:[%s1842] sm:$0x8]
  %vm1844 = vcmask 1043459
  %v1845 = vsel %vm1844, %v1843, %v1841
  %s1846 = scalar_lea.vmem %s0, 255
  %v1847 = vld [vmem:[%s1846] sm:$0x10]
  %vm1848 = vcmask 1044484
  %v1849 = vsel %vm1848, %v1847, %v1845
  %s1850 = scalar_lea.vmem %s0, 318
  %v1851 = vld [vmem:[%s1850] sm:$0x20]
  %vm1852 = vcmask 1045509
  %v1853 = vsel %vm1852, %v1851, %v1849
  %s1854 = scalar_lea.vmem %s0, 381
  %v1855 = vld [vmem:[%s1854] sm:$0x40]
  %vm1856 = vcmask 1046534
  %v1857 = vsel %vm1856, %v1855, %v1853
  %s1858 = scalar_lea.vmem %s0, 28
  %v1859 = vld [vmem:[%s1858] sm:$0x80]
  %vm1860 = vcmask 1047559
  %v1861 = vsel %vm1860, %v1859, %v1857
  %1862 = vrot.lane.b32.xlu0 %v1861, 12
  %v1863 = vpop.permute.xlu0 %1862
  %vm1864 = vcmask 130144
  %1865 = vst.msk [vmem:[%s1] sm:$0x7f] %vm1864, %v1863
  %s1866 = scalar_lea.vmem %s1, 1
  %1867 = vst.msk [vmem:[%s1866] sm:$0x80] %vm1864, %v1863
  %s1868 = scalar_lea.vmem %s0, 99
  %v1869 = vld [vmem:[%s1868] sm:$0x1]
  %s1870 = scalar_lea.vmem %s0, 162
  %v1871 = vld [vmem:[%s1870] sm:$0x2]
  %vm1872 = vcmask 1041409
  %v1873 = vsel %vm1872, %v1871, %v1869
  %s1874 = scalar_lea.vmem %s0, 225
  %v1875 = vld [vmem:[%s1874] sm:$0x4]
  %vm1876 = vcmask 1042434
  %v1877 = vsel %vm1876, %v1875, %v1873
  %s1878 = scalar_lea.vmem %s0, 288
  %v1879 = vld [vmem:[%s1878] sm:$0x8]
  %vm1880 = vcmask 1043459
  %v1881 = vsel %vm1880, %v1879, %v1877
  %s1882 = scalar_lea.vmem %s0, 351
  %v1883 = vld [vmem:[%s1882] sm:$0x10]
  %vm1884 = vcmask 1044484
  %v1885 = vsel %vm1884, %v1883, %v1881
  %s1886 = scalar_lea.vmem %s0, 414
  %v1887 = vld [vmem:[%s1886] sm:$0x20]
  %vm1888 = vcmask 1045509
  %v1889 = vsel %vm1888, %v1887, %v1885
  %1890 = vrot.lane.b32.xlu0 %v1889, 12
  %v1891 = vpop.permute.xlu0 %1890
  %vm1892 = vcmask 130144
  %s1893 = scalar_lea.vmem %s1, 9
  %1894 = vst.msk [vmem:[%s1893] sm:$0x3f] %vm1892, %v1891
  %s1895 = scalar_lea.vmem %s0, 2
  %v1896 = vld [vmem:[%s1895] sm:$0x1]
  %s1897 = scalar_lea.vmem %s0, 65
  %v1898 = vld [vmem:[%s1897] sm:$0x2]
  %vm1899 = vcmask 1041409
  %v1900 = vsel %vm1899, %v1898, %v1896
  %s1901 = scalar_lea.vmem %s0, 128
  %v1902 = vld [vmem:[%s1901] sm:$0x4]
  %vm1903 = vcmask 1042434
  %v1904 = vsel %vm1903, %v1902, %v1900
  %s1905 = scalar_lea.vmem %s0, 191
  %v1906 = vld [vmem:[%s1905] sm:$0x8]
  %vm1907 = vcmask 1043459
  %v1908 = vsel %vm1907, %v1906, %v1904
  %s1909 = scalar_lea.vmem %s0, 254
  %v1910 = vld [vmem:[%s1909] sm:$0x10]
  %vm1911 = vcmask 1044484
  %v1912 = vsel %vm1911, %v1910, %v1908
  %s1913 = scalar_lea.vmem %s0, 317
  %v1914 = vld [vmem:[%s1913] sm:$0x20]
  %vm1915 = vcmask 1045509
  %v1916 = vsel %vm1915, %v1914, %v1912
  %s1917 = scalar_lea.vmem %s0, 380
  %v1918 = vld [vmem:[%s1917] sm:$0x40]
  %vm1919 = vcmask 1046534
  %v1920 = vsel %vm1919, %v1918, %v1916
  %s1921 = scalar_lea.vmem %s0, 27
  %v1922 = vld [vmem:[%s1921] sm:$0x80]
  %vm1923 = vcmask 1047559
  %v1924 = vsel %vm1923, %v1922, %v1920
  %1925 = vrot.lane.b32.xlu0 %v1924, 8
  %v1926 = vpop.permute.xlu0 %1925
  %vm1927 = vcmask 97344
  %1928 = vst.msk [vmem:[%s1] sm:$0x7f] %vm1927, %v1926
  %s1929 = scalar_lea.vmem %s1, 1
  %1930 = vst.msk [vmem:[%s1929] sm:$0x80] %vm1927, %v1926
  %s1931 = scalar_lea.vmem %s0, 98
  %v1932 = vld [vmem:[%s1931] sm:$0x1]
  %s1933 = scalar_lea.vmem %s0, 161
  %v1934 = vld [vmem:[%s1933] sm:$0x2]
  %vm1935 = vcmask 1041409
  %v1936 = vsel %vm1935, %v1934, %v1932
  %s1937 = scalar_lea.vmem %s0, 224
  %v1938 = vld [vmem:[%s1937] sm:$0x4]
  %vm1939 = vcmask 1042434
  %v1940 = vsel %vm1939, %v1938, %v1936
  %s1941 = scalar_lea.vmem %s0, 287
  %v1942 = vld [vmem:[%s1941] sm:$0x8]
  %vm1943 = vcmask 1043459
  %v1944 = vsel %vm1943, %v1942, %v1940
  %s1945 = scalar_lea.vmem %s0, 350
  %v1946 = vld [vmem:[%s1945] sm:$0x10]
  %vm1947 = vcmask 1044484
  %v1948 = vsel %vm1947, %v1946, %v1944
  %s1949 = scalar_lea.vmem %s0, 413
  %v1950 = vld [vmem:[%s1949] sm:$0x20]
  %vm1951 = vcmask 1045509
  %v1952 = vsel %vm1951, %v1950, %v1948
  %1953 = vrot.lane.b32.xlu0 %v1952, 8
  %v1954 = vpop.permute.xlu0 %1953
  %vm1955 = vcmask 97344
  %s1956 = scalar_lea.vmem %s1, 9
  %1957 = vst.msk [vmem:[%s1956] sm:$0x3f] %vm1955, %v1954
  %s1958 = scalar_lea.vmem %s0, 1
  %v1959 = vld [vmem:[%s1958] sm:$0x1]
  %s1960 = scalar_lea.vmem %s0, 64
  %v1961 = vld [vmem:[%s1960] sm:$0x2]
  %vm1962 = vcmask 1041409
  %v1963 = vsel %vm1962, %v1961, %v1959
  %s1964 = scalar_lea.vmem %s0, 127
  %v1965 = vld [vmem:[%s1964] sm:$0x4]
  %vm1966 = vcmask 1042434
  %v1967 = vsel %vm1966, %v1965, %v1963
  %s1968 = scalar_lea.vmem %s0, 190
  %v1969 = vld [vmem:[%s1968] sm:$0x8]
  %vm1970 = vcmask 1043459
  %v1971 = vsel %vm1970, %v1969, %v1967
  %s1972 = scalar_lea.vmem %s0, 253
  %v1973 = vld [vmem:[%s1972] sm:$0x10]
  %vm1974 = vcmask 1044484
  %v1975 = vsel %vm1974, %v1973, %v1971
  %s1976 = scalar_lea.vmem %s0, 316
  %v1977 = vld [vmem:[%s1976] sm:$0x20]
  %vm1978 = vcmask 1045509
  %v1979 = vsel %vm1978, %v1977, %v1975
  %s1980 = scalar_lea.vmem %s0, 379
  %v1981 = vld [vmem:[%s1980] sm:$0x40]
  %vm1982 = vcmask 1046534
  %v1983 = vsel %vm1982, %v1981, %v1979
  %s1984 = scalar_lea.vmem %s0, 26
  %v1985 = vld [vmem:[%s1984] sm:$0x80]
  %vm1986 = vcmask 1047559
  %v1987 = vsel %vm1986, %v1985, %v1983
  %1988 = vrot.lane.b32.xlu0 %v1987, 4
  %v1989 = vpop.permute.xlu0 %1988
  %vm1990 = vcmask 64544
  %1991 = vst.msk [vmem:[%s1] sm:$0x7f] %vm1990, %v1989
  %s1992 = scalar_lea.vmem %s1, 1
  %1993 = vst.msk [vmem:[%s1992] sm:$0x80] %vm1990, %v1989
  %s1994 = scalar_lea.vmem %s0, 97
  %v1995 = vld [vmem:[%s1994] sm:$0x1]
  %s1996 = scalar_lea.vmem %s0, 160
  %v1997 = vld [vmem:[%s1996] sm:$0x2]
  %vm1998 = vcmask 1041409
  %v1999 = vsel %vm1998, %v1997, %v1995
  %s2000 = scalar_lea.vmem %s0, 223
  %v2001 = vld [vmem:[%s2000] sm:$0x4]
  %vm2002 = vcmask 1042434
  %v2003 = vsel %vm2002, %v2001, %v1999
  %s2004 = scalar_lea.vmem %s0, 286
  %v2005 = vld [vmem:[%s2004] sm:$0x8]
  %vm2006 = vcmask 1043459
  %v2007 = vsel %vm2006, %v2005, %v2003
  %s2008 = scalar_lea.vmem %s0, 349
  %v2009 = vld [vmem:[%s2008] sm:$0x10]
  %vm2010 = vcmask 1044484
  %v2011 = vsel %vm2010, %v2009, %v2007
  %s2012 = scalar_lea.vmem %s0, 412
  %v2013 = vld [vmem:[%s2012] sm:$0x20]
  %vm2014 = vcmask 1045509
  %v2015 = vsel %vm2014, %v2013, %v2011
  %2016 = vrot.lane.b32.xlu0 %v2015, 4
  %v2017 = vpop.permute.xlu0 %2016
  %vm2018 = vcmask 64544
  %s2019 = scalar_lea.vmem %s1, 9
  %2020 = vst.msk [vmem:[%s2019] sm:$0x3f] %vm2018, %v2017

// kernel: mixed_op_pcdarts_forward.1
$region0: #{mixed_op_pcdarts_forward.1}
  #allocation0 [shape = 'u32[]', space=smem, size = 0x4, offset = 0x4, fixed_abs, tag = 'smem constant byte address 0x4 - core index']
  #allocation1 [shape = 'u32[72,128]{1,0:T(1,128)}', space=vmem, size = 0x9000, scoped, tag = 'internal scratch']
  %s0 = inlined_call_operand.vmem [shape: f32[5], index: 0, kind: input, shape index: {}]
  %s1 = inlined_call_operand.vmem [shape: f32[8,256], index: 1, kind: input, shape index: {}]
  %s2 = inlined_call_operand.vmem [shape: s32[2,256], index: 2, kind: input, shape index: {}]
  %s3 = inlined_call_operand.vmem [shape: f32[1,256], index: 3, kind: input, shape index: {}]
  %s4 = inlined_call_operand.vmem [shape: f32[9,256], index: 4, kind: input, shape index: {}]
  %s5 = inlined_call_operand.vmem [shape: f32[7,256], index: 5, kind: input, shape index: {}]
  %s6 = inlined_call_operand.vmem [shape: f32[9,256], index: 6, kind: input, shape index: {}]
  %s7 = inlined_call_operand.vmem [shape: f32[7,256], index: 7, kind: input, shape index: {}]
  %s8 = inlined_call_operand.vmem [shape: f32[9,256], index: 8, kind: input, shape index: {}]
  %s9 = inlined_call_operand.vmem [shape: f32[7,256], index: 9, kind: input, shape index: {}]
  %s10 = inlined_call_operand.vmem [shape: f32[8,256], index: 10, kind: output, shape index: {}]
  %s11 = sld [smem:[#allocation0]]
  $region62: #{mixed_op_pcdarts_forward.1} parent=0
    _
  %s13 = ssub.s32 1, %s11
  %s14 = scalar_select 0, %s13, %s11
  $region1: #{mixed_op_pcdarts_forward.1} parent=0
    #allocation2 [shape = 'u8[512]{0}', space=smem, size = 0x200, scoped, tag = 'input window, operand 0, single buffered']
    #allocation3 [shape = 's32[1]{0}', space=sflag, size = 0x4, scoped, tag = 'scoped memory for mixed_op_pcdarts_forward.1']
    %15 = vsyncpa [#allocation3], 0
    // Predicated region
    $region2: #{mixed_op_pcdarts_forward.1} parent=1 // pred_check
      _
    $region3: #{mixed_op_pcdarts_forward.1} parent=1 // pred_check_branch
      %17 = sbr.rel (0) target = $region5
    $region4: #{mixed_op_pcdarts_forward.1} parent=1 // pred_region
      %19 = vsyncadd [#allocation3], 0
      %s21 = sshll.u32 %s0, 4
      %s22 = int_to_ptr.vmem [resolvable:$true] %s21
      %24 = dma.vmem_to_smem %s22, 16, [#allocation2], [#allocation3]
    $region5: #{mixed_op_pcdarts_forward.1} parent=1 // pred_fallthru
      _
    // Predicated region
    $region6: #{mixed_op_pcdarts_forward.1} parent=1 // pred_check
      _
    $region7: #{mixed_op_pcdarts_forward.1} parent=1 // pred_check_branch
      %26 = sbr.rel (0) target = $region9
    $region8: #{mixed_op_pcdarts_forward.1} parent=1 // pred_region
      _
    $region9: #{mixed_op_pcdarts_forward.1} parent=1 // pred_fallthru
      _
    // Predicated region
    $region10: #{mixed_op_pcdarts_forward.1} parent=1 // pred_check
      _
    $region11: #{mixed_op_pcdarts_forward.1} parent=1 // pred_check_branch
      %28 = sbr.rel (0) target = $region13
    $region12: #{mixed_op_pcdarts_forward.1} parent=1 // pred_region
      _
    $region13: #{mixed_op_pcdarts_forward.1} parent=1 // pred_fallthru
      _
    // Predicated region
    $region14: #{mixed_op_pcdarts_forward.1} parent=1 // pred_check
      _
    $region15: #{mixed_op_pcdarts_forward.1} parent=1 // pred_check_branch
      %30 = sbr.rel (0) target = $region17
    $region16: #{mixed_op_pcdarts_forward.1} parent=1 // pred_region
      _
    $region17: #{mixed_op_pcdarts_forward.1} parent=1 // pred_fallthru
      _
    // Predicated region
    $region18: #{mixed_op_pcdarts_forward.1} parent=1 // pred_check
      _
    $region19: #{mixed_op_pcdarts_forward.1} parent=1 // pred_check_branch
      %32 = sbr.rel (0) target = $region21
    $region20: #{mixed_op_pcdarts_forward.1} parent=1 // pred_region
      _
    $region21: #{mixed_op_pcdarts_forward.1} parent=1 // pred_fallthru
      _
    // Predicated region
    $region22: #{mixed_op_pcdarts_forward.1} parent=1 // pred_check
      _
    $region23: #{mixed_op_pcdarts_forward.1} parent=1 // pred_check_branch
      %34 = sbr.rel (0) target = $region25
    $region24: #{mixed_op_pcdarts_forward.1} parent=1 // pred_region
      _
    $region25: #{mixed_op_pcdarts_forward.1} parent=1 // pred_fallthru
      _
    // Predicated region
    $region26: #{mixed_op_pcdarts_forward.1} parent=1 // pred_check
      _
    $region27: #{mixed_op_pcdarts_forward.1} parent=1 // pred_check_branch
      %36 = sbr.rel (0) target = $region29
    $region28: #{mixed_op_pcdarts_forward.1} parent=1 // pred_region
      _
    $region29: #{mixed_op_pcdarts_forward.1} parent=1 // pred_fallthru
      _
    // Predicated region
    $region30: #{mixed_op_pcdarts_forward.1} parent=1 // pred_check
      _
    $region31: #{mixed_op_pcdarts_forward.1} parent=1 // pred_check_branch
      %38 = sbr.rel (0) target = $region33
    $region32: #{mixed_op_pcdarts_forward.1} parent=1 // pred_region
      _
    $region33: #{mixed_op_pcdarts_forward.1} parent=1 // pred_fallthru
      _
    // Predicated region
    $region34: #{mixed_op_pcdarts_forward.1} parent=1 // pred_check
      _
    $region35: #{mixed_op_pcdarts_forward.1} parent=1 // pred_check_branch
      %40 = sbr.rel (0) target = $region37
    $region36: #{mixed_op_pcdarts_forward.1} parent=1 // pred_region
      _
    $region37: #{mixed_op_pcdarts_forward.1} parent=1 // pred_fallthru
      _
    // Predicated region
    $region38: #{mixed_op_pcdarts_forward.1} parent=1 // pred_check
      _
    $region39: #{mixed_op_pcdarts_forward.1} parent=1 // pred_check_branch
      %42 = sbr.rel (0) target = $region41
    $region40: #{mixed_op_pcdarts_forward.1} parent=1 // pred_region
      _
    $region41: #{mixed_op_pcdarts_forward.1} parent=1 // pred_fallthru
      _
    // Predicated region
    $region42: #{mixed_op_pcdarts_forward.1} parent=1 // pred_check
      _
    $region43: #{mixed_op_pcdarts_forward.1} parent=1 // pred_check_branch
      %44 = sbr.rel (0) target = $region45
    $region44: #{mixed_op_pcdarts_forward.1} parent=1 // pred_region
      %46 = dma.done [#allocation3], 16
    $region45: #{mixed_op_pcdarts_forward.1} parent=1 // pred_fallthru
      _
    %47 = sfence
    %v48 = vld [vmem:[%s1] sm:$0xff]
    %v49 = vld [vmem:[%s1 + $0x8] sm:$0xff]
    %v50 = vld [vmem:[%s2] ss:$2 sm:$0x3]
    %s51 = scalar_lea.vmem %s2, 1
    %v52 = vld [vmem:[%s51] ss:$2 sm:$0x3]
    %vm53 = vcmp.ge.s32.totalorder %v50, 1
    %vm54 = vcmp.ge.s32.totalorder %v52, 1
    %vm55 = vmand %vm53, %vm54
    %vm56 = vcmp.lt.s32.totalorder %v52, 7
    %vm57 = vmand %vm53, %vm56
    %vm58 = vcmp.lt.s32.totalorder %v50, 7
    %vm59 = vmand %vm58, %vm54
    %vm60 = vmand %vm58, %vm56
    %vm61 = vcmp.ge.s32.totalorder %v50, 2
    %vm62 = vcmp.ge.s32.totalorder %v52, 2
    %vm63 = vmand %vm61, %vm62
    %vm64 = vcmp.lt.s32.totalorder %v52, 6
    %vm65 = vmand %vm61, %vm64
    %vm66 = vcmp.lt.s32.totalorder %v50, 6
    %vm67 = vmand %vm66, %vm62
    %vm68 = vmand %vm66, %vm64
    %v69 = vlaneseq
    %v70 = vshrl.u32 %v69, 7
    %vm71 = vcmp.lt.s32.totalorder %v70, 2
    %v72 = vmax.f32 %v48, 0.0
    %v73 = vmax.f32 %v49, 0.0
    %s74 = scalar_lea.vmem %s4, 4
    %v75 = vld [vmem:[%s74] ss:$8 sm:$0x3]
    %v77 = vperm.slane %v75, 0
    %v78 = vperm.slane %v75, 1
    %v81 = vmul.f32 %v72, %v77
    %v82 = vmul.f32 %v73, %v78
    %83 = vrot.lane.b32.xlu0 %v48, 36
    %v84 = vpop.permute.xlu0 %83
    %85 = vrot.lane.b32.xlu0 %v49, 36
    %v86 = vpop.permute.xlu0 %85
    %v87 = vlaneseq
    %v88 = vand.u32 %v87, 127
    %vm89 = vcmp.lt.s32.totalorder %v88, 36
    %v90 = vsel %vm89, %v84, %v86
    %v91 = vsel %vm89, %v86, %v84
    %v92 = vsel %vm55, 1, 0
    %v93 = vperm.slane %v92, 0
    %v94 = vperm.slane %v92, 1
    %vm95 = vcmp.eq.s32.totalorder %v93, 1
    %vm96 = vcmp.eq.s32.totalorder %v94, 1
    %v97 = vsel %vm95, %v91, 0.0
    %v98 = vsel %vm96, %v90, 0.0
    %v99 = vsel %vm95, %v91, -inf
    %v100 = vsel %vm96, %v90, -inf
    %v101 = vmax.f32 %v48, %v99
    %v102 = vmax.f32 %v49, %v100
    %v103 = vadd.f32 %v48, %v97
    %v104 = vadd.f32 %v49, %v98
    %v105 = vmax.f32 %v97, 0.0
    %v106 = vmax.f32 %v98, 0.0
    %v107 = vld [vmem:[%s4] ss:$8 sm:$0x3]
    %v109 = vperm.slane %v107, 0
    %v110 = vperm.slane %v107, 1
    %v113 = vmul.f32 %v105, %v109
    %v114 = vmul.f32 %v106, %v110
    %v115 = vadd.f32 %v81, %v113
    %v116 = vadd.f32 %v82, %v114
    %117 = vrot.lane.b32.xlu0 %v48, 32
    %v118 = vpop.permute.xlu0 %117
    %119 = vrot.lane.b32.xlu0 %v49, 32
    %v120 = vpop.permute.xlu0 %119
    %vm121 = vcmp.lt.s32.totalorder %v88, 32
    %v122 = vsel %vm121, %v118, %v120
    %v123 = vsel %vm121, %v120, %v118
    %v124 = vsel %vm53, 1, 0
    %v125 = vperm.slane %v124, 0
    %v126 = vperm.slane %v124, 1
    %vm127 = vcmp.eq.s32.totalorder %v125, 1
    %vm128 = vcmp.eq.s32.totalorder %v126, 1
    %v129 = vsel %vm127, %v123, 0.0
    %v130 = vsel %vm128, %v122, 0.0
    %v131 = vsel %vm127, %v123, -inf
    %v132 = vsel %vm128, %v122, -inf
    %v133 = vmax.f32 %v101, %v131
    %v134 = vmax.f32 %v102, %v132
    %v135 = vadd.f32 %v103, %v129
    %v136 = vadd.f32 %v104, %v130
    %v137 = vmax.f32 %v129, 0.0
    %v138 = vmax.f32 %v130, 0.0
    %s139 = scalar_lea.vmem %s4, 1
    %v140 = vld [vmem:[%s139] ss:$8 sm:$0x3]
    %v142 = vperm.slane %v140, 0
    %v143 = vperm.slane %v140, 1
    %v146 = vmul.f32 %v137, %v142
    %v147 = vmul.f32 %v138, %v143
    %v148 = vadd.f32 %v115, %v146
    %v149 = vadd.f32 %v116, %v147
    %150 = vrot.lane.b32.xlu0 %v48, 28
    %v151 = vpop.permute.xlu0 %150
    %152 = vrot.lane.b32.xlu0 %v49, 28
    %v153 = vpop.permute.xlu0 %152
    %vm154 = vcmp.lt.s32.totalorder %v88, 28
    %v155 = vsel %vm154, %v151, %v153
    %v156 = vsel %vm154, %v153, %v151
    %v157 = vsel %vm57, 1, 0
    %v158 = vperm.slane %v157, 0
    %v159 = vperm.slane %v157, 1
    %vm160 = vcmp.eq.s32.totalorder %v158, 1
    %vm161 = vcmp.eq.s32.totalorder %v159, 1
    %v162 = vsel %vm160, %v156, 0.0
    %v163 = vsel %vm161, %v155, 0.0
    %v164 = vsel %vm160, %v156, -inf
    %v165 = vsel %vm161, %v155, -inf
    %v166 = vmax.f32 %v133, %v164
    %v167 = vmax.f32 %v134, %v165
    %v168 = vadd.f32 %v135, %v162
    %v169 = vadd.f32 %v136, %v163
    %v170 = vmax.f32 %v162, 0.0
    %v171 = vmax.f32 %v163, 0.0
    %s172 = scalar_lea.vmem %s4, 2
    %v173 = vld [vmem:[%s172] ss:$8 sm:$0x3]
    %v175 = vperm.slane %v173, 0
    %v176 = vperm.slane %v173, 1
    %v179 = vmul.f32 %v170, %v175
    %v180 = vmul.f32 %v171, %v176
    %v181 = vadd.f32 %v148, %v179
    %v182 = vadd.f32 %v149, %v180
    %183 = vrot.lane.b32.xlu0 %v48, 4
    %v184 = vpop.permute.xlu0 %183
    %185 = vrot.lane.b32.xlu0 %v49, 4
    %v186 = vpop.permute.xlu0 %185
    %vm187 = vcmp.lt.s32.totalorder %v88, 4
    %v188 = vsel %vm187, %v184, %v186
    %v189 = vsel %vm187, %v186, %v184
    %v190 = vsel %vm54, 1, 0
    %v191 = vperm.slane %v190, 0
    %v192 = vperm.slane %v190, 1
    %vm193 = vcmp.eq.s32.totalorder %v191, 1
    %vm194 = vcmp.eq.s32.totalorder %v192, 1
    %v195 = vsel %vm193, %v189, 0.0
    %v196 = vsel %vm194, %v188, 0.0
    %v197 = vsel %vm193, %v189, -inf
    %v198 = vsel %vm194, %v188, -inf
    %v199 = vmax.f32 %v166, %v197
    %v200 = vmax.f32 %v167, %v198
    %v201 = vadd.f32 %v168, %v195
    %v202 = vadd.f32 %v169, %v196
    %v203 = vmax.f32 %v195, 0.0
    %v204 = vmax.f32 %v196, 0.0
    %s205 = scalar_lea.vmem %s4, 3
    %v206 = vld [vmem:[%s205] ss:$8 sm:$0x3]
    %v208 = vperm.slane %v206, 0
    %v209 = vperm.slane %v206, 1
    %v212 = vmul.f32 %v203, %v208
    %v213 = vmul.f32 %v204, %v209
    %v214 = vadd.f32 %v181, %v212
    %v215 = vadd.f32 %v182, %v213
    %216 = vrot.lane.b32.xlu0 %v48, 124
    %v217 = vpop.permute.xlu0 %216
    %218 = vrot.lane.b32.xlu0 %v49, 124
    %v219 = vpop.permute.xlu0 %218
    %vm220 = vcmp.lt.s32.totalorder %v88, 124
    %v221 = vsel %vm220, %v217, %v219
    %v222 = vsel %vm220, %v219, %v217
    %v223 = vsel %vm56, 1, 0
    %v224 = vperm.slane %v223, 0
    %v225 = vperm.slane %v223, 1
    %vm226 = vcmp.eq.s32.totalorder %v224, 1
    %vm227 = vcmp.eq.s32.totalorder %v225, 1
    %v228 = vsel %vm226, %v221, 0.0
    %v229 = vsel %vm227, %v222, 0.0
    %v230 = vsel %vm226, %v221, -inf
    %v231 = vsel %vm227, %v222, -inf
    %v232 = vmax.f32 %v199, %v230
    %v233 = vmax.f32 %v200, %v231
    %v234 = vadd.f32 %v201, %v228
    %v235 = vadd.f32 %v202, %v229
    %v236 = vmax.f32 %v228, 0.0
    %v237 = vmax.f32 %v229, 0.0
    %s238 = scalar_lea.vmem %s4, 5
    %v239 = vld [vmem:[%s238] ss:$8 sm:$0x3]
    %v241 = vperm.slane %v239, 0
    %v242 = vperm.slane %v239, 1
    %v245 = vmul.f32 %v236, %v241
    %v246 = vmul.f32 %v237, %v242
    %v247 = vadd.f32 %v214, %v245
    %v248 = vadd.f32 %v215, %v246
    %249 = vrot.lane.b32.xlu0 %v48, 100
    %v250 = vpop.permute.xlu0 %249
    %251 = vrot.lane.b32.xlu0 %v49, 100
    %v252 = vpop.permute.xlu0 %251
    %vm253 = vcmp.lt.s32.totalorder %v88, 100
    %v254 = vsel %vm253, %v250, %v252
    %v255 = vsel %vm253, %v252, %v250
    %v256 = vsel %vm59, 1, 0
    %v257 = vperm.slane %v256, 0
    %v258 = vperm.slane %v256, 1
    %vm259 = vcmp.eq.s32.totalorder %v257, 1
    %vm260 = vcmp.eq.s32.totalorder %v258, 1
    %v261 = vsel %vm259, %v254, 0.0
    %v262 = vsel %vm260, %v255, 0.0
    %v263 = vsel %vm259, %v254, -inf
    %v264 = vsel %vm260, %v255, -inf
    %v265 = vmax.f32 %v232, %v263
    %v266 = vmax.f32 %v233, %v264
    %v267 = vadd.f32 %v234, %v261
    %v268 = vadd.f32 %v235, %v262
    %v269 = vmax.f32 %v261, 0.0
    %v270 = vmax.f32 %v262, 0.0
    %s271 = scalar_lea.vmem %s4, 6
    %v272 = vld [vmem:[%s271] ss:$8 sm:$0x3]
    %v274 = vperm.slane %v272, 0
    %v275 = vperm.slane %v272, 1
    %v278 = vmul.f32 %v269, %v274
    %v279 = vmul.f32 %v270, %v275
    %v280 = vadd.f32 %v247, %v278
    %v281 = vadd.f32 %v248, %v279
    %282 = vrot.lane.b32.xlu0 %v48, 96
    %v283 = vpop.permute.xlu0 %282
    %284 = vrot.lane.b32.xlu0 %v49, 96
    %v285 = vpop.permute.xlu0 %284
    %vm286 = vcmp.lt.s32.totalorder %v88, 96
    %v287 = vsel %vm286, %v283, %v285
    %v288 = vsel %vm286, %v285, %v283
    %v289 = vsel %vm58, 1, 0
    %v290 = vperm.slane %v289, 0
    %v291 = vperm.slane %v289, 1
    %vm292 = vcmp.eq.s32.totalorder %v290, 1
    %vm293 = vcmp.eq.s32.totalorder %v291, 1
    %v294 = vsel %vm292, %v287, 0.0
    %v295 = vsel %vm293, %v288, 0.0
    %v296 = vsel %vm292, %v287, -inf
    %v297 = vsel %vm293, %v288, -inf
    %v298 = vmax.f32 %v265, %v296
    %v299 = vmax.f32 %v266, %v297
    %v300 = vadd.f32 %v267, %v294
    %v301 = vadd.f32 %v268, %v295
    %v302 = vmax.f32 %v294, 0.0
    %v303 = vmax.f32 %v295, 0.0
    %s304 = scalar_lea.vmem %s4, 7
    %v305 = vld [vmem:[%s304] ss:$8 sm:$0x3]
    %v307 = vperm.slane %v305, 0
    %v308 = vperm.slane %v305, 1
    %v311 = vmul.f32 %v302, %v307
    %v312 = vmul.f32 %v303, %v308
    %v313 = vadd.f32 %v280, %v311
    %v314 = vadd.f32 %v281, %v312
    %315 = vrot.lane.b32.xlu0 %v48, 92
    %v316 = vpop.permute.xlu0 %315
    %317 = vrot.lane.b32.xlu0 %v49, 92
    %v318 = vpop.permute.xlu0 %317
    %vm319 = vcmp.lt.s32.totalorder %v88, 92
    %v320 = vsel %vm319, %v316, %v318
    %v321 = vsel %vm319, %v318, %v316
    %v322 = vsel %vm60, 1, 0
    %v323 = vperm.slane %v322, 0
    %v324 = vperm.slane %v322, 1
    %vm325 = vcmp.eq.s32.totalorder %v323, 1
    %vm326 = vcmp.eq.s32.totalorder %v324, 1
    %v327 = vsel %vm325, %v320, 0.0
    %v328 = vsel %vm326, %v321, 0.0
    %v329 = vsel %vm325, %v320, -inf
    %v330 = vsel %vm326, %v321, -inf
    %v331 = vmax.f32 %v298, %v329
    %v332 = vmax.f32 %v299, %v330
    %v333 = vadd.f32 %v300, %v327
    %v334 = vadd.f32 %v301, %v328
    %v335 = vmax.f32 %v327, 0.0
    %v336 = vmax.f32 %v328, 0.0
    %s337 = scalar_lea.vmem %s4, 16
    %v338 = vld [vmem:[%s337] ss:$8 sm:$0x3]
    %v340 = vperm.slane %v338, 0
    %v341 = vperm.slane %v338, 1
    %v344 = vmul.f32 %v335, %v340
    %v345 = vmul.f32 %v336, %v341
    %v346 = vadd.f32 %v313, %v344
    %v347 = vadd.f32 %v314, %v345
    %s348 = sld [smem:[#allocation2]]
    %p349 = scmp.gt.f32.partialorder %s348, 0.0
    %p350 = scmp.le.f32.partialorder %s348, 1.0
    %p351 = pnand %p349, %p350
    %p352 = pneg %p351
    %s353 = scalar_select %p352, %s348, 0.0
    %v354 = vstv %s353
    %v355 = vmul.f32 %v354, %v331
    %v356 = vmul.f32 %v354, %v332
    %s357 = sld [smem:[#allocation2 + $0x1]]
    %p358 = scmp.gt.f32.partialorder %s357, 0.0
    %p359 = scmp.le.f32.partialorder %s357, 1.0
    %p360 = pnand %p358, %p359
    %p361 = pneg %p360
    %s362 = scalar_select %p361, %s357, 0.0
    %v363 = vld [vmem:[%s3] sm:$0x3]
    %v365 = vperm.slane %v363, 0
    %v366 = vperm.slane %v363, 1
    %v369 = vmul.f32 %v333, %v365
    %v370 = vmul.f32 %v334, %v366
    %v371 = vstv %s362
    %v372 = vmul.f32 %v371, %v369
    %v373 = vmul.f32 %v371, %v370
    %v374 = vadd.f32 %v355, %v372
    %v375 = vadd.f32 %v356, %v373
    %s376 = sld [smem:[#allocation2 + $0x2]]
    %p377 = scmp.gt.f32.partialorder %s376, 0.0
    %p378 = scmp.le.f32.partialorder %s376, 1.0
    %p379 = pnand %p377, %p378
    %p380 = pneg %p379
    %s381 = scalar_select %p380, %s376, 0.0
    %v382 = vstv %s381
    %v383 = vmul.f32 %v382, %v48
    %v384 = vmul.f32 %v382, %v49
    %v385 = vadd.f32 %v374, %v383
    %v386 = vadd.f32 %v375, %v384
    %387 = vst [vmem:[%s10] sm:$0xff] %v385
    %388 = vst [vmem:[%s10 + $0x8] sm:$0xff] %v386
    %s389 = sld [smem:[#allocation2 + $0x3]]
    %p390 = scmp.gt.f32.partialorder %s389, 0.0
    %p391 = scmp.le.f32.partialorder %s389, 1.0
    %p392 = pnand %p390, %p391
    %p393 = pneg %p392
    // Predicated region
    $region46: #{mixed_op_pcdarts_forward.1} parent=1 // pred_check
      _
    $region47: #{mixed_op_pcdarts_forward.1} parent=1 // pred_check_branch
      %395 = sbr.rel (%p392) target = $region49
    $region48: #{mixed_op_pcdarts_forward.1} parent=1 // pred_region
      %s396 = scalar_lea.vmem %s5, 3
      %v397 = vld [vmem:[%s396] ss:$8 sm:$0x3]
      %v399 = vperm.slane %v397, 0
      %v400 = vperm.slane %v397, 1
      %v403 = vmul.f32 %v346, %v399
      %v404 = vmul.f32 %v347, %v400
      %405 = vrot.lane.b32.xlu0 %v346, 1
      %v406 = vpop.permute.xlu0 %405
      %407 = vrot.lane.b32.xlu0 %v347, 1
      %v408 = vpop.permute.xlu0 %407
      %vm409 = vcmp.lt.s32.totalorder %v88, 1
      %v410 = vsel %vm409, %v406, %v408
      %v411 = vsel %vm409, %v408, %v406
      %s412 = scalar_lea.vmem %s5, 4
      %v413 = vld [vmem:[%s412] ss:$8 sm:$0x3]
      %v415 = vperm.slane %v413, 0
      %v416 = vperm.slane %v413, 1
      %v419 = vmul.f32 %v411, %v415
      %v420 = vmul.f32 %v410, %v416
      %v421 = vadd.f32 %v403, %v419
      %v422 = vadd.f32 %v404, %v420
      %423 = vrot.lane.b32.xlu0 %v346, 127
      %v424 = vpop.permute.xlu0 %423
      %425 = vrot.lane.b32.xlu0 %v347, 127
      %v426 = vpop.permute.xlu0 %425
      %vm427 = vcmp.lt.s32.totalorder %v88, 127
      %v428 = vsel %vm427, %v424, %v426
      %v429 = vsel %vm427, %v426, %v424
      %s430 = scalar_lea.vmem %s5, 2
      %v431 = vld [vmem:[%s430] ss:$8 sm:$0x3]
      %v433 = vperm.slane %v431, 0
      %v434 = vperm.slane %v431, 1
      %v437 = vmul.f32 %v428, %v433
      %v438 = vmul.f32 %v429, %v434
      %v439 = vadd.f32 %v421, %v437
      %v440 = vadd.f32 %v422, %v438
      %441 = vrot.lane.b32.xlu0 %v346, 2
      %v442 = vpop.permute.xlu0 %441
      %443 = vrot.lane.b32.xlu0 %v347, 2
      %v444 = vpop.permute.xlu0 %443
      %vm445 = vcmp.lt.s32.totalorder %v88, 2
      %v446 = vsel %vm445, %v442, %v444
      %v447 = vsel %vm445, %v444, %v442
      %s448 = scalar_lea.vmem %s5, 5
      %v449 = vld [vmem:[%s448] ss:$8 sm:$0x3]
      %v451 = vperm.slane %v449, 0
      %v452 = vperm.slane %v449, 1
      %v455 = vmul.f32 %v447, %v451
      %v456 = vmul.f32 %v446, %v452
      %v457 = vadd.f32 %v439, %v455
      %v458 = vadd.f32 %v440, %v456
      %459 = vrot.lane.b32.xlu0 %v346, 126
      %v460 = vpop.permute.xlu0 %459
      %461 = vrot.lane.b32.xlu0 %v347, 126
      %v462 = vpop.permute.xlu0 %461
      %vm463 = vcmp.lt.s32.totalorder %v88, 126
      %v464 = vsel %vm463, %v460, %v462
      %v465 = vsel %vm463, %v462, %v460
      %s466 = scalar_lea.vmem %s5, 1
      %v467 = vld [vmem:[%s466] ss:$8 sm:$0x3]
      %v469 = vperm.slane %v467, 0
      %v470 = vperm.slane %v467, 1
      %v473 = vmul.f32 %v464, %v469
      %v474 = vmul.f32 %v465, %v470
      %v475 = vadd.f32 %v457, %v473
      %v476 = vadd.f32 %v458, %v474
      %477 = vrot.lane.b32.xlu0 %v346, 3
      %v478 = vpop.permute.xlu0 %477
      %479 = vrot.lane.b32.xlu0 %v347, 3
      %v480 = vpop.permute.xlu0 %479
      %vm481 = vcmp.lt.s32.totalorder %v88, 3
      %v482 = vsel %vm481, %v478, %v480
      %v483 = vsel %vm481, %v480, %v478
      %s484 = scalar_lea.vmem %s5, 6
      %v485 = vld [vmem:[%s484] ss:$8 sm:$0x3]
      %v487 = vperm.slane %v485, 0
      %v488 = vperm.slane %v485, 1
      %v491 = vmul.f32 %v483, %v487
      %v492 = vmul.f32 %v482, %v488
      %v493 = vadd.f32 %v475, %v491
      %v494 = vadd.f32 %v476, %v492
      %495 = vrot.lane.b32.xlu0 %v346, 125
      %v496 = vpop.permute.xlu0 %495
      %497 = vrot.lane.b32.xlu0 %v347, 125
      %v498 = vpop.permute.xlu0 %497
      %vm499 = vcmp.lt.s32.totalorder %v88, 125
      %v500 = vsel %vm499, %v496, %v498
      %v501 = vsel %vm499, %v498, %v496
      %v502 = vld [vmem:[%s5] ss:$8 sm:$0x3]
      %v504 = vperm.slane %v502, 0
      %v505 = vperm.slane %v502, 1
      %v508 = vmul.f32 %v500, %v504
      %v509 = vmul.f32 %v501, %v505
      %v510 = vadd.f32 %v493, %v508
      %v511 = vadd.f32 %v494, %v509
      %v512 = vsel %vm71, %v510, 0.0
      %v513 = vsel %vm71, %v511, 0.0
      %v514 = vrot.slane %v512, 4
      %v515 = vadd.f32 %v512, %v514
      %v516 = vrot.slane %v515, 2
      %v517 = vadd.f32 %v515, %v516
      %v518 = vrot.slane %v517, 1
      %v519 = vadd.f32 %v517, %v518
      %v520 = vrot.slane %v513, 4
      %v521 = vadd.f32 %v513, %v520
      %v522 = vrot.slane %v521, 2
      %v523 = vadd.f32 %v521, %v522
      %v524 = vrot.slane %v523, 1
      %v525 = vadd.f32 %v523, %v524
      %v526 = vmul.f32 %v512, %v512
      %v527 = vmul.f32 %v513, %v513
      %v528 = vrot.slane %v526, 4
      %v529 = vadd.f32 %v526, %v528
      %v530 = vrot.slane %v529, 2
      %v531 = vadd.f32 %v529, %v530
      %v532 = vrot.slane %v531, 1
      %v533 = vadd.f32 %v531, %v532
      %v534 = vrot.slane %v527, 4
      %v535 = vadd.f32 %v527, %v534
      %v536 = vrot.slane %v535, 2
      %v537 = vadd.f32 %v535, %v536
      %v538 = vrot.slane %v537, 1
      %v539 = vadd.f32 %v537, %v538
      %vm540 = vcmask 1040384
      %v541 = vsel %vm540, %v519, %v533
      %v542 = vsel %vm540, %v525, %v539
      %543 = vrot.lane.b32.xlu0 %v541, 4
      %v544 = vpop.permute.xlu0 %543
      %545 = vrot.lane.b32.xlu0 %v542, 4
      %v546 = vpop.permute.xlu0 %545
      %v547 = vsel %vm187, %v544, %v546
      %v548 = vsel %vm187, %v546, %v544
      %v549 = vadd.f32 %v541, %v548
      %v550 = vadd.f32 %v542, %v547
      %551 = vrot.lane.b32.xlu0 %v549, 8
      %v552 = vpop.permute.xlu0 %551
      %553 = vrot.lane.b32.xlu0 %v550, 8
      %v554 = vpop.permute.xlu0 %553
      %vm555 = vcmp.lt.s32.totalorder %v88, 8
      %v556 = vsel %vm555, %v552, %v554
      %v557 = vsel %vm555, %v554, %v552
      %v558 = vadd.f32 %v549, %v557
      %v559 = vadd.f32 %v550, %v556
      %560 = vrot.lane.b32.xlu0 %v558, 16
      %v561 = vpop.permute.xlu0 %560
      %562 = vrot.lane.b32.xlu0 %v559, 16
      %v563 = vpop.permute.xlu0 %562
      %vm564 = vcmp.lt.s32.totalorder %v88, 16
      %v565 = vsel %vm564, %v561, %v563
      %v566 = vsel %vm564, %v563, %v561
      %v567 = vadd.f32 %v558, %v566
      %v568 = vadd.f32 %v559, %v565
      %569 = vrot.lane.b32.xlu0 %v567, 32
      %v570 = vpop.permute.xlu0 %569
      %571 = vrot.lane.b32.xlu0 %v568, 32
      %v572 = vpop.permute.xlu0 %571
      %v573 = vsel %vm121, %v570, %v572
      %v574 = vsel %vm121, %v572, %v570
      %v575 = vadd.f32 %v567, %v574
      %v576 = vadd.f32 %v568, %v573
      %577 = vrot.lane.b32.xlu0 %v575, 64
      %v578 = vpop.permute.xlu0 %577
      %579 = vrot.lane.b32.xlu0 %v576, 64
      %v580 = vpop.permute.xlu0 %579
      %vm581 = vcmp.lt.s32.totalorder %v88, 64
      %v582 = vsel %vm581, %v578, %v580
      %v583 = vsel %vm581, %v580, %v578
      %v584 = vadd.f32 %v575, %v583
      %v585 = vadd.f32 %v576, %v582
      %v586 = vadd.f32 %v584, %v585
      %v587 = vmul.f32 %v586, 0.0078125
      %v588 = vmul.f32 %v587, %v587
      %v590 = vrot.slane %v588, 7
      %v592 = vsub.f32 %v587, %v590
      %v593 = vmax.f32 %v592, 0.0
      %v594 = vperm.slane %v587, 0
      %v595 = vsub.f32 %v512, %v594
      %v596 = vsub.f32 %v513, %v594
      %v597 = vadd.f32 %v593, 1e-05
      %v598 = vrsqrt.pop %v597
      %v599 = vmul.f32 %v598, %v597
      %v600 = vmul.f32 %v599, %v598
      %v601 = vmul.f32 0.5, %v600
      %v602 = vsub.f32 1.5, %v601
      %v603 = vmul.f32 %v598, %v602
      %vm604 = vweird.f32 %v597
      %vm605 = vweird.f32 %v598
      %vm606 = vmor %vm604, %vm605
      %v607 = vsel %vm606, %v598, %v603
      %v608 = vperm.slane %v607, 1
      %v609 = vmul.f32 %v595, %v608
      %v610 = vmul.f32 %v596, %v608
      %v611 = vmax.f32 %v609, 0.0
      %v612 = vmax.f32 %v610, 0.0
      %s613 = scalar_lea.vmem %s6, 4
      %v614 = vld [vmem:[%s613] ss:$8 sm:$0x3]
      %v616 = vperm.slane %v614, 0
      %v617 = vperm.slane %v614, 1
      %v620 = vmul.f32 %v611, %v616
      %v621 = vmul.f32 %v612, %v617
      %622 = vrot.lane.b32.xlu0 %v611, 36
      %v623 = vpop.permute.xlu0 %622
      %624 = vrot.lane.b32.xlu0 %v612, 36
      %v625 = vpop.permute.xlu0 %624
      %v626 = vsel %vm89, %v623, %v625
      %v627 = vsel %vm89, %v625, %v623
      %v628 = vsel %vm95, %v627, 0.0
      %v629 = vsel %vm96, %v626, 0.0
      %v630 = vld [vmem:[%s6] ss:$8 sm:$0x3]
      %v632 = vperm.slane %v630, 0
      %v633 = vperm.slane %v630, 1
      %v636 = vmul.f32 %v628, %v632
      %v637 = vmul.f32 %v629, %v633
      %v638 = vadd.f32 %v620, %v636
      %v639 = vadd.f32 %v621, %v637
      %640 = vrot.lane.b32.xlu0 %v611, 32
      %v641 = vpop.permute.xlu0 %640
      %642 = vrot.lane.b32.xlu0 %v612, 32
      %v643 = vpop.permute.xlu0 %642
      %v644 = vsel %vm121, %v641, %v643
      %v645 = vsel %vm121, %v643, %v641
      %v646 = vsel %vm127, %v645, 0.0
      %v647 = vsel %vm128, %v644, 0.0
      %s648 = scalar_lea.vmem %s6, 1
      %v649 = vld [vmem:[%s648] ss:$8 sm:$0x3]
      %v651 = vperm.slane %v649, 0
      %v652 = vperm.slane %v649, 1
      %v655 = vmul.f32 %v646, %v651
      %v656 = vmul.f32 %v647, %v652
      %v657 = vadd.f32 %v638, %v655
      %v658 = vadd.f32 %v639, %v656
      %659 = vrot.lane.b32.xlu0 %v611, 28
      %v660 = vpop.permute.xlu0 %659
      %661 = vrot.lane.b32.xlu0 %v612, 28
      %v662 = vpop.permute.xlu0 %661
      %v663 = vsel %vm154, %v660, %v662
      %v664 = vsel %vm154, %v662, %v660
      %v665 = vsel %vm160, %v664, 0.0
      %v666 = vsel %vm161, %v663, 0.0
      %s667 = scalar_lea.vmem %s6, 2
      %v668 = vld [vmem:[%s667] ss:$8 sm:$0x3]
      %v670 = vperm.slane %v668, 0
      %v671 = vperm.slane %v668, 1
      %v674 = vmul.f32 %v665, %v670
      %v675 = vmul.f32 %v666, %v671
      %v676 = vadd.f32 %v657, %v674
      %v677 = vadd.f32 %v658, %v675
      %678 = vrot.lane.b32.xlu0 %v611, 4
      %v679 = vpop.permute.xlu0 %678
      %680 = vrot.lane.b32.xlu0 %v612, 4
      %v681 = vpop.permute.xlu0 %680
      %v682 = vsel %vm187, %v679, %v681
      %v683 = vsel %vm187, %v681, %v679
      %v684 = vsel %vm193, %v683, 0.0
      %v685 = vsel %vm194, %v682, 0.0
      %s686 = scalar_lea.vmem %s6, 3
      %v687 = vld [vmem:[%s686] ss:$8 sm:$0x3]
      %v689 = vperm.slane %v687, 0
      %v690 = vperm.slane %v687, 1
      %v693 = vmul.f32 %v684, %v689
      %v694 = vmul.f32 %v685, %v690
      %v695 = vadd.f32 %v676, %v693
      %v696 = vadd.f32 %v677, %v694
      %697 = vrot.lane.b32.xlu0 %v611, 124
      %v698 = vpop.permute.xlu0 %697
      %699 = vrot.lane.b32.xlu0 %v612, 124
      %v700 = vpop.permute.xlu0 %699
      %v701 = vsel %vm220, %v698, %v700
      %v702 = vsel %vm220, %v700, %v698
      %v703 = vsel %vm226, %v701, 0.0
      %v704 = vsel %vm227, %v702, 0.0
      %s705 = scalar_lea.vmem %s6, 5
      %v706 = vld [vmem:[%s705] ss:$8 sm:$0x3]
      %v708 = vperm.slane %v706, 0
      %v709 = vperm.slane %v706, 1
      %v712 = vmul.f32 %v703, %v708
      %v713 = vmul.f32 %v704, %v709
      %v714 = vadd.f32 %v695, %v712
      %v715 = vadd.f32 %v696, %v713
      %716 = vrot.lane.b32.xlu0 %v611, 100
      %v717 = vpop.permute.xlu0 %716
      %718 = vrot.lane.b32.xlu0 %v612, 100
      %v719 = vpop.permute.xlu0 %718
      %v720 = vsel %vm253, %v717, %v719
      %v721 = vsel %vm253, %v719, %v717
      %v722 = vsel %vm259, %v720, 0.0
      %v723 = vsel %vm260, %v721, 0.0
      %s724 = scalar_lea.vmem %s6, 6
      %v725 = vld [vmem:[%s724] ss:$8 sm:$0x3]
      %v727 = vperm.slane %v725, 0
      %v728 = vperm.slane %v725, 1
      %v731 = vmul.f32 %v722, %v727
      %v732 = vmul.f32 %v723, %v728
      %v733 = vadd.f32 %v714, %v731
      %v734 = vadd.f32 %v715, %v732
      %735 = vrot.lane.b32.xlu0 %v611, 96
      %v736 = vpop.permute.xlu0 %735
      %737 = vrot.lane.b32.xlu0 %v612, 96
      %v738 = vpop.permute.xlu0 %737
      %v739 = vsel %vm286, %v736, %v738
      %v740 = vsel %vm286, %v738, %v736
      %v741 = vsel %vm292, %v739, 0.0
      %v742 = vsel %vm293, %v740, 0.0
      %s743 = scalar_lea.vmem %s6, 7
      %v744 = vld [vmem:[%s743] ss:$8 sm:$0x3]
      %v746 = vperm.slane %v744, 0
      %v747 = vperm.slane %v744, 1
      %v750 = vmul.f32 %v741, %v746
      %v751 = vmul.f32 %v742, %v747
      %v752 = vadd.f32 %v733, %v750
      %v753 = vadd.f32 %v734, %v751
      %754 = vrot.lane.b32.xlu0 %v611, 92
      %v755 = vpop.permute.xlu0 %754
      %756 = vrot.lane.b32.xlu0 %v612, 92
      %v757 = vpop.permute.xlu0 %756
      %v758 = vsel %vm319, %v755, %v757
      %v759 = vsel %vm319, %v757, %v755
      %v760 = vsel %vm325, %v758, 0.0
      %v761 = vsel %vm326, %v759, 0.0
      %s762 = scalar_lea.vmem %s6, 16
      %v763 = vld [vmem:[%s762] ss:$8 sm:$0x3]
      %v765 = vperm.slane %v763, 0
      %v766 = vperm.slane %v763, 1
      %v769 = vmul.f32 %v760, %v765
      %v770 = vmul.f32 %v761, %v766
      %v771 = vadd.f32 %v752, %v769
      %v772 = vadd.f32 %v753, %v770
      %s773 = scalar_lea.vmem %s7, 3
      %v774 = vld [vmem:[%s773] ss:$8 sm:$0x3]
      %v776 = vperm.slane %v774, 0
      %v777 = vperm.slane %v774, 1
      %v780 = vmul.f32 %v771, %v776
      %v781 = vmul.f32 %v772, %v777
      %782 = vrot.lane.b32.xlu0 %v771, 1
      %v783 = vpop.permute.xlu0 %782
      %784 = vrot.lane.b32.xlu0 %v772, 1
      %v785 = vpop.permute.xlu0 %784
      %v786 = vsel %vm409, %v783, %v785
      %v787 = vsel %vm409, %v785, %v783
      %s788 = scalar_lea.vmem %s7, 4
      %v789 = vld [vmem:[%s788] ss:$8 sm:$0x3]
      %v791 = vperm.slane %v789, 0
      %v792 = vperm.slane %v789, 1
      %v795 = vmul.f32 %v787, %v791
      %v796 = vmul.f32 %v786, %v792
      %v797 = vadd.f32 %v780, %v795
      %v798 = vadd.f32 %v781, %v796
      %799 = vrot.lane.b32.xlu0 %v771, 127
      %v800 = vpop.permute.xlu0 %799
      %801 = vrot.lane.b32.xlu0 %v772, 127
      %v802 = vpop.permute.xlu0 %801
      %v803 = vsel %vm427, %v800, %v802
      %v804 = vsel %vm427, %v802, %v800
      %s805 = scalar_lea.vmem %s7, 2
      %v806 = vld [vmem:[%s805] ss:$8 sm:$0x3]
      %v808 = vperm.slane %v806, 0
      %v809 = vperm.slane %v806, 1
      %v812 = vmul.f32 %v803, %v808
      %v813 = vmul.f32 %v804, %v809
      %v814 = vadd.f32 %v797, %v812
      %v815 = vadd.f32 %v798, %v813
      %816 = vrot.lane.b32.xlu0 %v771, 2
      %v817 = vpop.permute.xlu0 %816
      %818 = vrot.lane.b32.xlu0 %v772, 2
      %v819 = vpop.permute.xlu0 %818
      %v820 = vsel %vm445, %v817, %v819
      %v821 = vsel %vm445, %v819, %v817
      %s822 = scalar_lea.vmem %s7, 5
      %v823 = vld [vmem:[%s822] ss:$8 sm:$0x3]
      %v825 = vperm.slane %v823, 0
      %v826 = vperm.slane %v823, 1
      %v829 = vmul.f32 %v821, %v825
      %v830 = vmul.f32 %v820, %v826
      %v831 = vadd.f32 %v814, %v829
      %v832 = vadd.f32 %v815, %v830
      %833 = vrot.lane.b32.xlu0 %v771, 126
      %v834 = vpop.permute.xlu0 %833
      %835 = vrot.lane.b32.xlu0 %v772, 126
      %v836 = vpop.permute.xlu0 %835
      %v837 = vsel %vm463, %v834, %v836
      %v838 = vsel %vm463, %v836, %v834
      %s839 = scalar_lea.vmem %s7, 1
      %v840 = vld [vmem:[%s839] ss:$8 sm:$0x3]
      %v842 = vperm.slane %v840, 0
      %v843 = vperm.slane %v840, 1
      %v846 = vmul.f32 %v837, %v842
      %v847 = vmul.f32 %v838, %v843
      %v848 = vadd.f32 %v831, %v846
      %v849 = vadd.f32 %v832, %v847
      %850 = vrot.lane.b32.xlu0 %v771, 3
      %v851 = vpop.permute.xlu0 %850
      %852 = vrot.lane.b32.xlu0 %v772, 3
      %v853 = vpop.permute.xlu0 %852
      %v854 = vsel %vm481, %v851, %v853
      %v855 = vsel %vm481, %v853, %v851
      %s856 = scalar_lea.vmem %s7, 6
      %v857 = vld [vmem:[%s856] ss:$8 sm:$0x3]
      %v859 = vperm.slane %v857, 0
      %v860 = vperm.slane %v857, 1
      %v863 = vmul.f32 %v855, %v859
      %v864 = vmul.f32 %v854, %v860
      %v865 = vadd.f32 %v848, %v863
      %v866 = vadd.f32 %v849, %v864
      %867 = vrot.lane.b32.xlu0 %v771, 125
      %v868 = vpop.permute.xlu0 %867
      %869 = vrot.lane.b32.xlu0 %v772, 125
      %v870 = vpop.permute.xlu0 %869
      %v871 = vsel %vm499, %v868, %v870
      %v872 = vsel %vm499, %v870, %v868
      %v873 = vld [vmem:[%s7] ss:$8 sm:$0x3]
      %v875 = vperm.slane %v873, 0
      %v876 = vperm.slane %v873, 1
      %v879 = vmul.f32 %v871, %v875
      %v880 = vmul.f32 %v872, %v876
      %v881 = vadd.f32 %v865, %v879
      %v882 = vadd.f32 %v866, %v880
      %v883 = vsel %vm71, %v881, 0.0
      %v884 = vsel %vm71, %v882, 0.0
      %v885 = vrot.slane %v883, 4
      %v886 = vadd.f32 %v883, %v885
      %v887 = vrot.slane %v886, 2
      %v888 = vadd.f32 %v886, %v887
      %v889 = vrot.slane %v888, 1
      %v890 = vadd.f32 %v888, %v889
      %v891 = vrot.slane %v884, 4
      %v892 = vadd.f32 %v884, %v891
      %v893 = vrot.slane %v892, 2
      %v894 = vadd.f32 %v892, %v893
      %v895 = vrot.slane %v894, 1
      %v896 = vadd.f32 %v894, %v895
      %v897 = vmul.f32 %v883, %v883
      %v898 = vmul.f32 %v884, %v884
      %v899 = vrot.slane %v897, 4
      %v900 = vadd.f32 %v897, %v899
      %v901 = vrot.slane %v900, 2
      %v902 = vadd.f32 %v900, %v901
      %v903 = vrot.slane %v902, 1
      %v904 = vadd.f32 %v902, %v903
      %v905 = vrot.slane %v898, 4
      %v906 = vadd.f32 %v898, %v905
      %v907 = vrot.slane %v906, 2
      %v908 = vadd.f32 %v906, %v907
      %v909 = vrot.slane %v908, 1
      %v910 = vadd.f32 %v908, %v909
      %v911 = vsel %vm540, %v890, %v904
      %v912 = vsel %vm540, %v896, %v910
      %913 = vrot.lane.b32.xlu0 %v911, 4
      %v914 = vpop.permute.xlu0 %913
      %915 = vrot.lane.b32.xlu0 %v912, 4
      %v916 = vpop.permute.xlu0 %915
      %v917 = vsel %vm187, %v914, %v916
      %v918 = vsel %vm187, %v916, %v914
      %v919 = vadd.f32 %v911, %v918
      %v920 = vadd.f32 %v912, %v917
      %921 = vrot.lane.b32.xlu0 %v919, 8
      %v922 = vpop.permute.xlu0 %921
      %923 = vrot.lane.b32.xlu0 %v920, 8
      %v924 = vpop.permute.xlu0 %923
      %v925 = vsel %vm555, %v922, %v924
      %v926 = vsel %vm555, %v924, %v922
      %v927 = vadd.f32 %v919, %v926
      %v928 = vadd.f32 %v920, %v925
      %929 = vrot.lane.b32.xlu0 %v927, 16
      %v930 = vpop.permute.xlu0 %929
      %931 = vrot.lane.b32.xlu0 %v928, 16
      %v932 = vpop.permute.xlu0 %931
      %v933 = vsel %vm564, %v930, %v932
      %v934 = vsel %vm564, %v932, %v930
      %v935 = vadd.f32 %v927, %v934
      %v936 = vadd.f32 %v928, %v933
      %937 = vrot.lane.b32.xlu0 %v935, 32
      %v938 = vpop.permute.xlu0 %937
      %939 = vrot.lane.b32.xlu0 %v936, 32
      %v940 = vpop.permute.xlu0 %939
      %v941 = vsel %vm121, %v938, %v940
      %v942 = vsel %vm121, %v940, %v938
      %v943 = vadd.f32 %v935, %v942
      %v944 = vadd.f32 %v936, %v941
      %945 = vrot.lane.b32.xlu0 %v943, 64
      %v946 = vpop.permute.xlu0 %945
      %947 = vrot.lane.b32.xlu0 %v944, 64
      %v948 = vpop.permute.xlu0 %947
      %v949 = vsel %vm581, %v946, %v948
      %v950 = vsel %vm581, %v948, %v946
      %v951 = vadd.f32 %v943, %v950
      %v952 = vadd.f32 %v944, %v949
      %v953 = vadd.f32 %v951, %v952
      %v954 = vmul.f32 %v953, 0.0078125
      %v955 = vmul.f32 %v954, %v954
      %v957 = vrot.slane %v955, 7
      %v959 = vsub.f32 %v954, %v957
      %v960 = vmax.f32 %v959, 0.0
      %v961 = vperm.slane %v954, 0
      %v962 = vsub.f32 %v883, %v961
      %v963 = vsub.f32 %v884, %v961
      %v964 = vadd.f32 %v960, 1e-05
      %v965 = vrsqrt.pop %v964
      %v966 = vmul.f32 %v965, %v964
      %v967 = vmul.f32 %v966, %v965
      %v968 = vmul.f32 0.5, %v967
      %v969 = vsub.f32 1.5, %v968
      %v970 = vmul.f32 %v965, %v969
      %vm971 = vweird.f32 %v964
      %vm972 = vweird.f32 %v965
      %vm973 = vmor %vm971, %vm972
      %v974 = vsel %vm973, %v965, %v970
      %v975 = vperm.slane %v974, 1
      %v976 = vmul.f32 %v962, %v975
      %v977 = vmul.f32 %v963, %v975
      %v978 = vld [vmem:[%s10] sm:$0xff]
      %v979 = vld [vmem:[%s10 + $0x8] sm:$0xff]
      %s980 = sld [smem:[#allocation2 + $0x3]]
      %p981 = scmp.gt.f32.partialorder %s980, 0.0
      %p982 = scmp.le.f32.partialorder %s980, 1.0
      %p983 = pnand %p981, %p982
      %p984 = pneg %p983
      %s985 = scalar_select %p984, %s980, 0.0
      %v986 = vstv %s985
      %v987 = vmul.f32 %v986, %v976
      %v988 = vmul.f32 %v986, %v977
      %v989 = vadd.f32 %v978, %v987
      %v990 = vadd.f32 %v979, %v988
      %991 = vst [vmem:[%s10] sm:$0xff] %v989
      %992 = vst [vmem:[%s10 + $0x8] sm:$0xff] %v990
    $region49: #{mixed_op_pcdarts_forward.1} parent=1 // pred_fallthru
      _
    %s993 = sld [smem:[#allocation2 + $0x4]]
    %p994 = scmp.gt.f32.partialorder %s993, 0.0
    %p995 = scmp.le.f32.partialorder %s993, 1.0
    %p996 = pnand %p994, %p995
    %p997 = pneg %p996
    // Predicated region
    $region50: #{mixed_op_pcdarts_forward.1} parent=1 // pred_check
      _
    $region51: #{mixed_op_pcdarts_forward.1} parent=1 // pred_check_branch
      %999 = sbr.rel (%p996) target = $region53
    $region52: #{mixed_op_pcdarts_forward.1} parent=1 // pred_region
      %s1000 = scalar_lea.vmem %s8, 4
      %v1001 = vld [vmem:[%s1000] ss:$8 sm:$0x3]
      %v1003 = vperm.slane %v1001, 0
      %v1004 = vperm.slane %v1001, 1
      %v1007 = vmul.f32 %v72, %v1003
      %v1008 = vmul.f32 %v73, %v1004
      %1009 = vrot.lane.b32.xlu0 %v72, 72
      %v1010 = vpop.permute.xlu0 %1009
      %1011 = vrot.lane.b32.xlu0 %v73, 72
      %v1012 = vpop.permute.xlu0 %1011
      %vm1013 = vcmp.lt.s32.totalorder %v88, 72
      %v1014 = vsel %vm1013, %v1010, %v1012
      %v1015 = vsel %vm1013, %v1012, %v1010
      %v1016 = vsel %vm63, 1, 0
      %v1017 = vperm.slane %v1016, 0
      %v1018 = vperm.slane %v1016, 1
      %vm1019 = vcmp.eq.s32.totalorder %v1017, 1
      %vm1020 = vcmp.eq.s32.totalorder %v1018, 1
      %v1021 = vsel %vm1019, %v1015, 0.0
      %v1022 = vsel %vm1020, %v1014, 0.0
      %v1023 = vld [vmem:[%s8] ss:$8 sm:$0x3]
      %v1025 = vperm.slane %v1023, 0
      %v1026 = vperm.slane %v1023, 1
      %v1029 = vmul.f32 %v1021, %v1025
      %v1030 = vmul.f32 %v1022, %v1026
      %v1031 = vadd.f32 %v1007, %v1029
      %v1032 = vadd.f32 %v1008, %v1030
      %1033 = vrot.lane.b32.xlu0 %v72, 64
      %v1034 = vpop.permute.xlu0 %1033
      %1035 = vrot.lane.b32.xlu0 %v73, 64
      %v1036 = vpop.permute.xlu0 %1035
      %vm1037 = vcmp.lt.s32.totalorder %v88, 64
      %v1038 = vsel %vm1037, %v1034, %v1036
      %v1039 = vsel %vm1037, %v1036, %v1034
      %v1040 = vsel %vm61, 1, 0
      %v1041 = vperm.slane %v1040, 0
      %v1042 = vperm.slane %v1040, 1
      %vm1043 = vcmp.eq.s32.totalorder %v1041, 1
      %vm1044 = vcmp.eq.s32.totalorder %v1042, 1
      %v1045 = vsel %vm1043, %v1039, 0.0
      %v1046 = vsel %vm1044, %v1038, 0.0
      %s1047 = scalar_lea.vmem %s8, 1
      %v1048 = vld [vmem:[%s1047] ss:$8 sm:$0x3]
      %v1050 = vperm.slane %v1048, 0
      %v1051 = vperm.slane %v1048, 1
      %v1054 = vmul.f32 %v1045, %v1050
      %v1055 = vmul.f32 %v1046, %v1051
      %v1056 = vadd.f32 %v1031, %v1054
      %v1057 = vadd.f32 %v1032, %v1055
      %1058 = vrot.lane.b32.xlu0 %v72, 56
      %v1059 = vpop.permute.xlu0 %1058
      %1060 = vrot.lane.b32.xlu0 %v73, 56
      %v1061 = vpop.permute.xlu0 %1060
      %vm1062 = vcmp.lt.s32.totalorder %v88, 56
      %v1063 = vsel %vm1062, %v1059, %v1061
      %v1064 = vsel %vm1062, %v1061, %v1059
      %v1065 = vsel %vm65, 1, 0
      %v1066 = vperm.slane %v1065, 0
      %v1067 = vperm.slane %v1065, 1
      %vm1068 = vcmp.eq.s32.totalorder %v1066, 1
      %vm1069 = vcmp.eq.s32.totalorder %v1067, 1
      %v1070 = vsel %vm1068, %v1064, 0.0
      %v1071 = vsel %vm1069, %v1063, 0.0
      %s1072 = scalar_lea.vmem %s8, 2
      %v1073 = vld [vmem:[%s1072] ss:$8 sm:$0x3]
      %v1075 = vperm.slane %v1073, 0
      %v1076 = vperm.slane %v1073, 1
      %v1079 = vmul.f32 %v1070, %v1075
      %v1080 = vmul.f32 %v1071, %v1076
      %v1081 = vadd.f32 %v1056, %v1079
      %v1082 = vadd.f32 %v1057, %v1080
      %1083 = vrot.lane.b32.xlu0 %v72, 8
      %v1084 = vpop.permute.xlu0 %1083
      %1085 = vrot.lane.b32.xlu0 %v73, 8
      %v1086 = vpop.permute.xlu0 %1085
      %vm1087 = vcmp.lt.s32.totalorder %v88, 8
      %v1088 = vsel %vm1087, %v1084, %v1086
      %v1089 = vsel %vm1087, %v1086, %v1084
      %v1090 = vsel %vm62, 1, 0
      %v1091 = vperm.slane %v1090, 0
      %v1092 = vperm.slane %v1090, 1
      %vm1093 = vcmp.eq.s32.totalorder %v1091, 1
      %vm1094 = vcmp.eq.s32.totalorder %v1092, 1
      %v1095 = vsel %vm1093, %v1089, 0.0
      %v1096 = vsel %vm1094, %v1088, 0.0
      %s1097 = scalar_lea.vmem %s8, 3
      %v1098 = vld [vmem:[%s1097] ss:$8 sm:$0x3]
      %v1100 = vperm.slane %v1098, 0
      %v1101 = vperm.slane %v1098, 1
      %v1104 = vmul.f32 %v1095, %v1100
      %v1105 = vmul.f32 %v1096, %v1101
      %v1106 = vadd.f32 %v1081, %v1104
      %v1107 = vadd.f32 %v1082, %v1105
      %1108 = vrot.lane.b32.xlu0 %v72, 120
      %v1109 = vpop.permute.xlu0 %1108
      %1110 = vrot.lane.b32.xlu0 %v73, 120
      %v1111 = vpop.permute.xlu0 %1110
      %vm1112 = vcmp.lt.s32.totalorder %v88, 120
      %v1113 = vsel %vm1112, %v1109, %v1111
      %v1114 = vsel %vm1112, %v1111, %v1109
      %v1115 = vsel %vm64, 1, 0
      %v1116 = vperm.slane %v1115, 0
      %v1117 = vperm.slane %v1115, 1
      %vm1118 = vcmp.eq.s32.totalorder %v1116, 1
      %vm1119 = vcmp.eq.s32.totalorder %v1117, 1
      %v1120 = vsel %vm1118, %v1113, 0.0
      %v1121 = vsel %vm1119, %v1114, 0.0
      %s1122 = scalar_lea.vmem %s8, 5
      %v1123 = vld [vmem:[%s1122] ss:$8 sm:$0x3]
      %v1125 = vperm.slane %v1123, 0
      %v1126 = vperm.slane %v1123, 1
      %v1129 = vmul.f32 %v1120, %v1125
      %v1130 = vmul.f32 %v1121, %v1126
      %v1131 = vadd.f32 %v1106, %v1129
      %v1132 = vadd.f32 %v1107, %v1130
      %v1133 = vsel %vm67, 1, 0
      %v1134 = vperm.slane %v1133, 0
      %v1135 = vperm.slane %v1133, 1
      %vm1136 = vcmp.eq.s32.totalorder %v1134, 1
      %vm1137 = vcmp.eq.s32.totalorder %v1135, 1
      %v1138 = vsel %vm1136, %v1014, 0.0
      %v1139 = vsel %vm1137, %v1015, 0.0
      %s1140 = scalar_lea.vmem %s8, 6
      %v1141 = vld [vmem:[%s1140] ss:$8 sm:$0x3]
      %v1143 = vperm.slane %v1141, 0
      %v1144 = vperm.slane %v1141, 1
      %v1147 = vmul.f32 %v1138, %v1143
      %v1148 = vmul.f32 %v1139, %v1144
      %v1149 = vadd.f32 %v1131, %v1147
      %v1150 = vadd.f32 %v1132, %v1148
      %v1151 = vsel %vm66, 1, 0
      %v1152 = vperm.slane %v1151, 0
      %v1153 = vperm.slane %v1151, 1
      %vm1154 = vcmp.eq.s32.totalorder %v1152, 1
      %vm1155 = vcmp.eq.s32.totalorder %v1153, 1
      %v1156 = vsel %vm1154, %v1038, 0.0
      %v1157 = vsel %vm1155, %v1039, 0.0
      %s1158 = scalar_lea.vmem %s8, 7
      %v1159 = vld [vmem:[%s1158] ss:$8 sm:$0x3]
      %v1161 = vperm.slane %v1159, 0
      %v1162 = vperm.slane %v1159, 1
      %v1165 = vmul.f32 %v1156, %v1161
      %v1166 = vmul.f32 %v1157, %v1162
      %v1167 = vadd.f32 %v1149, %v1165
      %v1168 = vadd.f32 %v1150, %v1166
      %v1169 = vsel %vm68, 1, 0
      %v1170 = vperm.slane %v1169, 0
      %v1171 = vperm.slane %v1169, 1
      %vm1172 = vcmp.eq.s32.totalorder %v1170, 1
      %vm1173 = vcmp.eq.s32.totalorder %v1171, 1
      %v1174 = vsel %vm1172, %v1063, 0.0
      %v1175 = vsel %vm1173, %v1064, 0.0
      %s1176 = scalar_lea.vmem %s8, 16
      %v1177 = vld [vmem:[%s1176] ss:$8 sm:$0x3]
      %v1179 = vperm.slane %v1177, 0
      %v1180 = vperm.slane %v1177, 1
      %v1183 = vmul.f32 %v1174, %v1179
      %v1184 = vmul.f32 %v1175, %v1180
      %v1185 = vadd.f32 %v1167, %v1183
      %v1186 = vadd.f32 %v1168, %v1184
      %s1187 = scalar_lea.vmem %s9, 3
      %v1188 = vld [vmem:[%s1187] ss:$8 sm:$0x3]
      %v1190 = vperm.slane %v1188, 0
      %v1191 = vperm.slane %v1188, 1
      %v1194 = vmul.f32 %v1185, %v1190
      %v1195 = vmul.f32 %v1186, %v1191
      %1196 = vrot.lane.b32.xlu0 %v1185, 1
      %v1197 = vpop.permute.xlu0 %1196
      %1198 = vrot.lane.b32.xlu0 %v1186, 1
      %v1199 = vpop.permute.xlu0 %1198
      %vm1200 = vcmp.lt.s32.totalorder %v88, 1
      %v1201 = vsel %vm1200, %v1197, %v1199
      %v1202 = vsel %vm1200, %v1199, %v1197
      %s1203 = scalar_lea.vmem %s9, 4
      %v1204 = vld [vmem:[%s1203] ss:$8 sm:$0x3]
      %v1206 = vperm.slane %v1204, 0
      %v1207 = vperm.slane %v1204, 1
      %v1210 = vmul.f32 %v1202, %v1206
      %v1211 = vmul.f32 %v1201, %v1207
      %v1212 = vadd.f32 %v1194, %v1210
      %v1213 = vadd.f32 %v1195, %v1211
      %1214 = vrot.lane.b32.xlu0 %v1185, 127
      %v1215 = vpop.permute.xlu0 %1214
      %1216 = vrot.lane.b32.xlu0 %v1186, 127
      %v1217 = vpop.permute.xlu0 %1216
      %vm1218 = vcmp.lt.s32.totalorder %v88, 127
      %v1219 = vsel %vm1218, %v1215, %v1217
      %v1220 = vsel %vm1218, %v1217, %v1215
      %s1221 = scalar_lea.vmem %s9, 2
      %v1222 = vld [vmem:[%s1221] ss:$8 sm:$0x3]
      %v1224 = vperm.slane %v1222, 0
      %v1225 = vperm.slane %v1222, 1
      %v1228 = vmul.f32 %v1219, %v1224
      %v1229 = vmul.f32 %v1220, %v1225
      %v1230 = vadd.f32 %v1212, %v1228
      %v1231 = vadd.f32 %v1213, %v1229
      %1232 = vrot.lane.b32.xlu0 %v1185, 2
      %v1233 = vpop.permute.xlu0 %1232
      %1234 = vrot.lane.b32.xlu0 %v1186, 2
      %v1235 = vpop.permute.xlu0 %1234
      %vm1236 = vcmp.lt.s32.totalorder %v88, 2
      %v1237 = vsel %vm1236, %v1233, %v1235
      %v1238 = vsel %vm1236, %v1235, %v1233
      %s1239 = scalar_lea.vmem %s9, 5
      %v1240 = vld [vmem:[%s1239] ss:$8 sm:$0x3]
      %v1242 = vperm.slane %v1240, 0
      %v1243 = vperm.slane %v1240, 1
      %v1246 = vmul.f32 %v1238, %v1242
      %v1247 = vmul.f32 %v1237, %v1243
      %v1248 = vadd.f32 %v1230, %v1246
      %v1249 = vadd.f32 %v1231, %v1247
      %1250 = vrot.lane.b32.xlu0 %v1185, 126
      %v1251 = vpop.permute.xlu0 %1250
      %1252 = vrot.lane.b32.xlu0 %v1186, 126
      %v1253 = vpop.permute.xlu0 %1252
      %vm1254 = vcmp.lt.s32.totalorder %v88, 126
      %v1255 = vsel %vm1254, %v1251, %v1253
      %v1256 = vsel %vm1254, %v1253, %v1251
      %s1257 = scalar_lea.vmem %s9, 1
      %v1258 = vld [vmem:[%s1257] ss:$8 sm:$0x3]
      %v1260 = vperm.slane %v1258, 0
      %v1261 = vperm.slane %v1258, 1
      %v1264 = vmul.f32 %v1255, %v1260
      %v1265 = vmul.f32 %v1256, %v1261
      %v1266 = vadd.f32 %v1248, %v1264
      %v1267 = vadd.f32 %v1249, %v1265
      %1268 = vrot.lane.b32.xlu0 %v1185, 3
      %v1269 = vpop.permute.xlu0 %1268
      %1270 = vrot.lane.b32.xlu0 %v1186, 3
      %v1271 = vpop.permute.xlu0 %1270
      %vm1272 = vcmp.lt.s32.totalorder %v88, 3
      %v1273 = vsel %vm1272, %v1269, %v1271
      %v1274 = vsel %vm1272, %v1271, %v1269
      %s1275 = scalar_lea.vmem %s9, 6
      %v1276 = vld [vmem:[%s1275] ss:$8 sm:$0x3]
      %v1278 = vperm.slane %v1276, 0
      %v1279 = vperm.slane %v1276, 1
      %v1282 = vmul.f32 %v1274, %v1278
      %v1283 = vmul.f32 %v1273, %v1279
      %v1284 = vadd.f32 %v1266, %v1282
      %v1285 = vadd.f32 %v1267, %v1283
      %1286 = vrot.lane.b32.xlu0 %v1185, 125
      %v1287 = vpop.permute.xlu0 %1286
      %1288 = vrot.lane.b32.xlu0 %v1186, 125
      %v1289 = vpop.permute.xlu0 %1288
      %vm1290 = vcmp.lt.s32.totalorder %v88, 125
      %v1291 = vsel %vm1290, %v1287, %v1289
      %v1292 = vsel %vm1290, %v1289, %v1287
      %v1293 = vld [vmem:[%s9] ss:$8 sm:$0x3]
      %v1295 = vperm.slane %v1293, 0
      %v1296 = vperm.slane %v1293, 1
      %v1299 = vmul.f32 %v1291, %v1295
      %v1300 = vmul.f32 %v1292, %v1296
      %v1301 = vadd.f32 %v1284, %v1299
      %v1302 = vadd.f32 %v1285, %v1300
      %v1303 = vsel %vm71, %v1301, 0.0
      %v1304 = vsel %vm71, %v1302, 0.0
      %v1305 = vrot.slane %v1303, 4
      %v1306 = vadd.f32 %v1303, %v1305
      %v1307 = vrot.slane %v1306, 2
      %v1308 = vadd.f32 %v1306, %v1307
      %v1309 = vrot.slane %v1308, 1
      %v1310 = vadd.f32 %v1308, %v1309
      %v1311 = vrot.slane %v1304, 4
      %v1312 = vadd.f32 %v1304, %v1311
      %v1313 = vrot.slane %v1312, 2
      %v1314 = vadd.f32 %v1312, %v1313
      %v1315 = vrot.slane %v1314, 1
      %v1316 = vadd.f32 %v1314, %v1315
      %v1317 = vmul.f32 %v1303, %v1303
      %v1318 = vmul.f32 %v1304, %v1304
      %v1319 = vrot.slane %v1317, 4
      %v1320 = vadd.f32 %v1317, %v1319
      %v1321 = vrot.slane %v1320, 2
      %v1322 = vadd.f32 %v1320, %v1321
      %v1323 = vrot.slane %v1322, 1
      %v1324 = vadd.f32 %v1322, %v1323
      %v1325 = vrot.slane %v1318, 4
      %v1326 = vadd.f32 %v1318, %v1325
      %v1327 = vrot.slane %v1326, 2
      %v1328 = vadd.f32 %v1326, %v1327
      %v1329 = vrot.slane %v1328, 1
      %v1330 = vadd.f32 %v1328, %v1329
      %vm1331 = vcmask 1040384
      %v1332 = vsel %vm1331, %v1310, %v1324
      %v1333 = vsel %vm1331, %v1316, %v1330
      %1334 = vrot.lane.b32.xlu0 %v1332, 4
      %v1335 = vpop.permute.xlu0 %1334
      %1336 = vrot.lane.b32.xlu0 %v1333, 4
      %v1337 = vpop.permute.xlu0 %1336
      %v1338 = vsel %vm187, %v1335, %v1337
      %v1339 = vsel %vm187, %v1337, %v1335
      %v1340 = vadd.f32 %v1332, %v1339
      %v1341 = vadd.f32 %v1333, %v1338
      %1342 = vrot.lane.b32.xlu0 %v1340, 8
      %v1343 = vpop.permute.xlu0 %1342
      %1344 = vrot.lane.b32.xlu0 %v1341, 8
      %v1345 = vpop.permute.xlu0 %1344
      %v1346 = vsel %vm1087, %v1343, %v1345
      %v1347 = vsel %vm1087, %v1345, %v1343
      %v1348 = vadd.f32 %v1340, %v1347
      %v1349 = vadd.f32 %v1341, %v1346
      %1350 = vrot.lane.b32.xlu0 %v1348, 16
      %v1351 = vpop.permute.xlu0 %1350
      %1352 = vrot.lane.b32.xlu0 %v1349, 16
      %v1353 = vpop.permute.xlu0 %1352
      %vm1354 = vcmp.lt.s32.totalorder %v88, 16
      %v1355 = vsel %vm1354, %v1351, %v1353
      %v1356 = vsel %vm1354, %v1353, %v1351
      %v1357 = vadd.f32 %v1348, %v1356
      %v1358 = vadd.f32 %v1349, %v1355
      %1359 = vrot.lane.b32.xlu0 %v1357, 32
      %v1360 = vpop.permute.xlu0 %1359
      %1361 = vrot.lane.b32.xlu0 %v1358, 32
      %v1362 = vpop.permute.xlu0 %1361
      %v1363 = vsel %vm121, %v1360, %v1362
      %v1364 = vsel %vm121, %v1362, %v1360
      %v1365 = vadd.f32 %v1357, %v1364
      %v1366 = vadd.f32 %v1358, %v1363
      %1367 = vrot.lane.b32.xlu0 %v1365, 64
      %v1368 = vpop.permute.xlu0 %1367
      %1369 = vrot.lane.b32.xlu0 %v1366, 64
      %v1370 = vpop.permute.xlu0 %1369
      %v1371 = vsel %vm1037, %v1368, %v1370
      %v1372 = vsel %vm1037, %v1370, %v1368
      %v1373 = vadd.f32 %v1365, %v1372
      %v1374 = vadd.f32 %v1366, %v1371
      %v1375 = vadd.f32 %v1373, %v1374
      %v1376 = vmul.f32 %v1375, 0.0078125
      %v1377 = vmul.f32 %v1376, %v1376
      %v1379 = vrot.slane %v1377, 7
      %v1381 = vsub.f32 %v1376, %v1379
      %v1382 = vmax.f32 %v1381, 0.0
      %v1383 = vperm.slane %v1376, 0
      %v1384 = vsub.f32 %v1303, %v1383
      %v1385 = vsub.f32 %v1304, %v1383
      %v1386 = vadd.f32 %v1382, 1e-05
      %v1387 = vrsqrt.pop %v1386
      %v1388 = vmul.f32 %v1387, %v1386
      %v1389 = vmul.f32 %v1388, %v1387
      %v1390 = vmul.f32 0.5, %v1389
      %v1391 = vsub.f32 1.5, %v1390
      %v1392 = vmul.f32 %v1387, %v1391
      %vm1393 = vweird.f32 %v1386
      %vm1394 = vweird.f32 %v1387
      %vm1395 = vmor %vm1393, %vm1394
      %v1396 = vsel %vm1395, %v1387, %v1392
      %v1397 = vperm.slane %v1396, 1
      %v1398 = vmul.f32 %v1384, %v1397
      %v1399 = vmul.f32 %v1385, %v1397
      %v1400 = vld [vmem:[%s10] sm:$0xff]
      %v1401 = vld [vmem:[%s10 + $0x8] sm:$0xff]
      %s1402 = sld [smem:[#allocation2 + $0x4]]
      %p1403 = scmp.gt.f32.partialorder %s1402, 0.0
      %p1404 = scmp.le.f32.partialorder %s1402, 1.0
      %p1405 = pnand %p1403, %p1404
      %p1406 = pneg %p1405
      %s1407 = scalar_select %p1406, %s1402, 0.0
      %v1408 = vstv %s1407
      %v1409 = vmul.f32 %v1408, %v1398
      %v1410 = vmul.f32 %v1408, %v1399
      %v1411 = vadd.f32 %v1400, %v1409
      %v1412 = vadd.f32 %v1401, %v1410
      %1413 = vst [vmem:[%s10] sm:$0xff] %v1411
      %1414 = vst [vmem:[%s10 + $0x8] sm:$0xff] %v1412
    $region53: #{mixed_op_pcdarts_forward.1} parent=1 // pred_fallthru
      _
    // Predicated region
    $region54: #{mixed_op_pcdarts_forward.1} parent=1 // pred_check
      _
    $region55: #{mixed_op_pcdarts_forward.1} parent=1 // pred_check_branch
      %1416 = sbr.rel (0) target = $region57
    $region56: #{mixed_op_pcdarts_forward.1} parent=1 // pred_region
      _
    $region57: #{mixed_op_pcdarts_forward.1} parent=1 // pred_fallthru
      _
    // Predicated region
    $region58: #{mixed_op_pcdarts_forward.1} parent=1 // pred_check
      _
    $region59: #{mixed_op_pcdarts_forward.1} parent=1 // pred_check_branch
      %1418 = sbr.rel (0) target = $region61
    $region60: #{mixed_op_pcdarts_forward.1} parent=1 // pred_region
      _
    $region61: #{mixed_op_pcdarts_forward.1} parent=1 // pred_fallthru
      _
    %1419 = vsyncpa [#allocation3], 1

</llo_original>
